<compile_context>
chip_gen: v5e
topology: v5e:2x2
jax: 0.10.0
libtpu: 0.0.40
codegen_flags: <defaults>
</compile_context>

<pallas_src>
import functools

import numpy as np
import jax
import jax.numpy as jnp
from jax.experimental import pallas as pl
from jax.experimental.pallas import tpu as pltpu

_BN_EPS = 1e-5
_LANE = 128


def _round_up(n, m):
    return ((n + m - 1) // m) * m


def _gelu_tanh(x):
    # TODO(synk): exact erf-GELU has no guaranteed Mosaic lowering; the tanh
    # form (max |err| ~3e-4 vs torch.nn.GELU()) is used inside kernels.
    c = 0.7978845608028654  # sqrt(2/pi)
    return 0.5 * x * (1.0 + jnp.tanh(c * (x + 0.044715 * x * x * x)))


def _gelu_erf(x):
    # exact (erf-based) GELU for the pure-JAX reference
    return 0.5 * x * (1.0 + jax.lax.erf(x * 0.7071067811865476))


def _full_spec(shape):
    nd = len(shape)
    return pl.BlockSpec(shape, lambda i, _nd=nd: (0,) * _nd)


# ----------------------------------------------------------------------------
# Pallas kernels
# ----------------------------------------------------------------------------
def _freq1_kernel(w_ref, p_ref, s_ref, pool_ref, o_ref):
    """relu(W @ patches + shift) then 0/1 sum-pool matmul (bf16 operands)."""
    y = jnp.dot(w_ref[...], p_ref[0], preferred_element_type=jnp.float32)
    y = jnp.maximum(y + s_ref[...], 0.0)
    o_ref[0] = jnp.dot(y.astype(jnp.bfloat16), pool_ref[...],
                       preferred_element_type=jnp.float32)


def _tail_kernel(xp_ref, wa_ref, ba_ref, wb_ref, bb_ref, praw_ref, graw_ref,
                 p2_ref, w2_ref, s2_ref, plL_ref, wbig_ref, bbig_ref,
                 gf_ref, bc_ref, o_ref, *, batch, t_out, hw3):
    f32, bf16 = jnp.float32, jnp.bfloat16
    npad = bc_ref.shape[1]

    # ----- raw branch: two composed matmuls + GELU + time avg-pool -----------
    z = jnp.dot(xp_ref[...], wa_ref[...], preferred_element_type=f32)
    z = _gelu_tanh(z + ba_ref[...])
    y = jnp.dot(z.astype(bf16), wb_ref[...], preferred_element_type=f32)
    y = _gelu_tanh(y + bb_ref[...])                      # padded lanes stay 0
    pooled_raw = jnp.dot(praw_ref[...], y, preferred_element_type=f32)

    acc = jnp.zeros((batch, npad), f32) + bc_ref[...]    # classifier bias
    for u in range(t_out):                               # raw -> classifier
        acc = acc + jnp.dot(pooled_raw[u * batch:(u + 1) * batch, :],
                            graw_ref[u], preferred_element_type=f32)

    # ----- freq: conv2 + BN + ReLU + AvgPool(3) (scale folded into weights) --
    c2 = jnp.dot(p2_ref[...], w2_ref[...], preferred_element_type=f32)
    c2 = jnp.maximum(c2 + s2_ref[...], 0.0).astype(bf16)
    pooled2 = jnp.dot(plL_ref[...], c2, preferred_element_type=f32)

    # ----- (f3+BN+f4+BN) as per-spatial blocks, ReLU, pooled classifier ------
    jpad = bbig_ref.shape[1]
    pre = jnp.zeros((batch, jpad), f32) + bbig_ref[...]
    for s in range(hw3):
        pre = pre + jnp.dot(pooled2[s * batch:(s + 1) * batch, :],
                            wbig_ref[s], preferred_element_type=f32)
    acc = acc + jnp.dot(jnp.maximum(pre, 0.0), gf_ref[...],
                        preferred_element_type=f32)
    o_ref[...] = acc


# ----------------------------------------------------------------------------
# pallas_call wrappers
# ----------------------------------------------------------------------------
def _freq1_call(Wt1, Pt1, shift1, pool1):
    B, kin, npix = Pt1.shape
    cout = Wt1.shape[0]
    mp = pool1.shape[1]
    return pl.pallas_call(
        _freq1_kernel,
        out_shape=jax.ShapeDtypeStruct((B, cout, mp), jnp.float32),
        grid=(B,),
        in_specs=[
            pl.BlockSpec(Wt1.shape, lambda g: (0, 0)),
            pl.BlockSpec((1, kin, npix), lambda g: (g, 0, 0)),
            pl.BlockSpec(shift1.shape, lambda g: (0, 0)),
            pl.BlockSpec(pool1.shape, lambda g: (0, 0)),
        ],
        out_specs=pl.BlockSpec((1, cout, mp), lambda g: (g, 0, 0)),
        compiler_params=pltpu.CompilerParams(
            dimension_semantics=("parallel",)),
    )(Wt1, Pt1, shift1, pool1)


def _tail_call(Xp, W_A, b_A, W_B, b_B, P_raw, GrawBlk, Pt2T, Wt2T, shift2,
               poolL, WbigBlk, bbig, Gfreq, bc, *, batch, t_out, hw3, npad):
    args = (Xp, W_A, b_A, W_B, b_B, P_raw, GrawBlk, Pt2T, Wt2T, shift2,
            poolL, WbigBlk, bbig, Gfreq, bc)
    out_shape = jax.ShapeDtypeStruct((batch, npad), jnp.float32)
    return pl.pallas_call(
        functools.partial(_tail_kernel, batch=batch, t_out=t_out, hw3=hw3),
        out_shape=out_shape,
        grid=(1,),
        in_specs=[_full_spec(a.shape) for a in args],
        out_specs=_full_spec((batch, npad)),
        compiler_params=pltpu.CompilerParams(
            dimension_semantics=("arbitrary",)),
    )(*args)


# ----------------------------------------------------------------------------
# One-time weight folding (runs ONCE at setup, not in the per-call path)
# ----------------------------------------------------------------------------
def _bn_fold(bn, eps=_BN_EPS):
    s = bn["gamma"] / jnp.sqrt(bn["var"] + eps)
    t = bn["beta"] - bn["mean"] * s
    return s, t


def fold_tsff_params(p, *, B, C, T, S, num_classes, img_weight=0.02,
                     avepool=25):
    f32, bf16 = jnp.float32, jnp.bfloat16
    KT = int(p["tc2_w"].shape[-1])                  # 75
    K4 = int(p["f1_w"].shape[-1])                   # 4
    Tp = T - KT + 1
    To = Tp // avepool
    n24 = int(p["tc1_w"].shape[0])                  # 24
    H1 = S + 2 * 2 - K4 + 1                         # after f1 conv (pad 2)
    Hp1 = H1 // 8                                   # after AvgPool(8)
    H2 = Hp1 + 2 * 2 - K4 + 1                       # after f2 conv
    Hp2 = H2 // 3                                   # after AvgPool(3)
    HW3 = Hp2 * Hp2
    H4 = Hp2 + 2 * 2 - K4 + 1                       # after f4 depthwise conv
    Hf = H4 // 3                                    # after final AvgPool(3)
    n_cls = int(p["lin_w"].shape[0])
    feat = int(p["lin_w"].shape[1])
    assert To >= 1 and feat == 9 * To == 9 * Hf * Hf, (feat, To, Hf)
    Np = _round_up(n_cls, _LANE)
    Kp = _round_up(C * n24, _LANE)                  # raw hidden lanes
    Yp = _LANE                                      # 9 channels padded to 128
    J = 9 * H4 * H4
    Jp = _round_up(J, _LANE)

    Wc = np.asarray(p["lin_w"], np.float32)         # (n_cls, feat)

    # ------------------------ raw branch -------------------------------------
    s1, t1 = _bn_fold(p["tc1_bn"]); s2, t2 = _bn_fold(p["tc2_bn"])
    s3, t3 = _bn_fold(p["cc1_bn"]); s4, t4 = _bn_fold(p["cc2_bn"])
    W1 = p["tc1_w"][:, :, 0, 0]                     # (24, 9)
    W2 = p["tc2_w"][:, 0, 0, :]                     # (24, KT)
    W3 = p["cc1_w"][:, :, 0, 0]                     # (9, 24)
    W4 = p["cc2_w"][:, 0, :, 0]                     # (9, C)
    cw = p["channel_weight"][:, 0, :]               # (9, C)

    E = jnp.einsum("oh,hc->oc", W1, cw)             # (24, C)
    A = jnp.einsum("o,oc,ok->cko", s1 * s2, E, W2)  # (C, KT, 24)
    W_A = (jnp.eye(C, dtype=f32)[:, None, :, None] * A[:, :, None, :]
           ).reshape(C * KT, C * n24)               # block-diag over channel
    W_A = jnp.pad(W_A, ((0, 0), (0, Kp - C * n24))).astype(bf16)
    b_A = jnp.tile(s2 * t1 * jnp.sum(W2, axis=1) + t2, C)
    b_A = jnp.pad(b_A, (0, Kp - C * n24)).reshape(1, Kp).astype(f32)

    W_B = jnp.einsum("i,ic,io->coi", s3 * s4, W4, W3).reshape(C * n24, 9)
    W_B = jnp.pad(W_B, ((0, Kp - C * n24), (0, Yp - 9))).astype(bf16)
    b_B = s4 * t3 * jnp.sum(W4, axis=1) + t4
    b_B = jnp.pad(b_B, (0, Yp - 9)).reshape(1, Yp).astype(f32)

    # AvgPool3d((1,1,avepool)) as a left-multiply, rows ordered (u, b)
    P_raw = np.zeros((To * B, B * Tp), np.float32)
    for u in range(To):
        for b in range(B):
            col = b * Tp + u * avepool
            P_raw[u * B + b, col:col + avepool] = 1.0 / avepool

    GrawBlk = np.zeros((To, Yp, Np), np.float32)
    for u in range(To):
        GrawBlk[u, :9, :n_cls] = (1.0 - img_weight) * Wc[:, u::To].T

    # ------------------------ freq conv1 -------------------------------------
    sf1, tf1 = _bn_fold(p["f1_bn"]); sf2, tf2 = _bn_fold(p["f2_bn"])
    sf3, tf3 = _bn_fold(p["f3_bn"]); sf4, tf4 = _bn_fold(p["f4_bn"])
    Wt1 = ((p["f1_w"].reshape(16, -1) * sf1[:, None]) / 64.0).astype(bf16)
    shift1 = ((tf1 + sf1 * p["f1_b"]) / 64.0).reshape(-1, 1).astype(f32)
    pool1 = np.zeros((H1 * H1, _LANE), np.float32)  # 0/1 sum pool, lane-padded
    for y in range(Hp1 * 8):
        for x in range(Hp1 * 8):
            pool1[y * H1 + x, (y // 8) * Hp1 + (x // 8)] = 1.0

    # ------------------------ freq conv2 -------------------------------------
    Wt2T = ((p["f2_w"].reshape(32, -1) * sf2[:, None]) / 9.0).T.astype(bf16)
    shift2 = ((tf2 + sf2 * p["f2_b"]) / 9.0).reshape(1, -1).astype(f32)
    poolL = np.zeros((HW3 * B, B * H2 * H2), np.float32)   # rows (s, b)
    for b in range(B):
        for y in range(Hp2 * 3):
            for x in range(Hp2 * 3):
                s = (y // 3) * Hp2 + (x // 3)
                poolL[s * B + b, b * H2 * H2 + y * H2 + x] = 1.0

    # --------- f3 + BN + f4(depthwise) + BN composed, split per position s ---
    W3f = np.asarray(p["f3_w"], np.float32)[:, :, 0, 0]     # (9, 32)
    W4f = np.asarray(p["f4_w"], np.float32)[:, 0]            # (9, 4, 4)
    D = np.zeros((9, HW3, H4 * H4), np.float32)
    for y in range(Hp2):
        for x in range(Hp2):
            for pp in range(H4):
                for qq in range(H4):
                    ky, kx = y + 2 - pp, x + 2 - qq
                    if 0 <= ky < K4 and 0 <= kx < K4:
                        D[:, y * Hp2 + x, pp * H4 + qq] = W4f[:, ky, kx]
    sf3n, sf4n = np.asarray(sf3, np.float32), np.asarray(sf4, np.float32)
    tf3n, tf4n = np.asarray(tf3, np.float32), np.asarray(tf4, np.float32)
    WbigBlk = np.einsum("i,ic,isd->scid", sf3n * sf4n, W3f, D
                        ).reshape(HW3, 32, J)
    WbigBlk = np.pad(WbigBlk, ((0, 0), (0, 0), (0, Jp - J)))
    bbig = (sf4n * tf3n)[:, None] * D.sum(axis=1) + tf4n[:, None]
    bbig = np.pad(bbig.reshape(J), (0, Jp - J)).reshape(1, Jp)

    # final AvgPool(3) + flatten + img_weight + classifier (freq part)
    Gfreq = np.zeros((Jp, Np), np.float32)
    for i in range(9):
        for pp in range(H4):
            for qq in range(H4):
                if pp < Hf * 3 and qq < Hf * 3:
                    f = i * Hf * Hf + (pp // 3) * Hf + (qq // 3)
                    Gfreq[i * H4 * H4 + pp * H4 + qq, :n_cls] = (
                        img_weight / 9.0) * Wc[:, f]
    bc = np.zeros((1, Np), np.float32)
    bc[0, :n_cls] = np.asarray(p["lin_b"], np.float32)

    folded = dict(
        W_A=W_A, b_A=b_A, W_B=W_B, b_B=b_B,
        P_raw=jnp.asarray(P_raw), GrawBlk=jnp.asarray(GrawBlk),
        Wt1=Wt1, shift1=shift1, pool1=jnp.asarray(pool1, bf16),
        Wt2T=Wt2T, shift2=shift2, poolL=jnp.asarray(poolL, bf16),
        WbigBlk=jnp.asarray(WbigBlk), bbig=jnp.asarray(bbig),
        Gfreq=jnp.asarray(Gfreq), bc=jnp.asarray(bc))
    geom = dict(B=B, C=C, T=T, KT=KT, Tp=Tp, To=To, H1=H1, Hp1=Hp1, H2=H2,
                Hp2=Hp2, HW3=HW3, H4=H4, Hf=Hf, n_cls=n_cls, Np=Np)
    return folded, geom


# ----------------------------------------------------------------------------
# TSFF forward (per-call path: 3 patch ops + 2 pallas_call launches)
# ----------------------------------------------------------------------------
def tsff_forward(folded, g, x_raw, x_freq):
    f32, bf16 = jnp.float32, jnp.bfloat16
    B, C, KT, Tp = g["B"], g["C"], g["KT"], g["Tp"]

    # raw-branch time im2col: one op -> rows (b, t'), cols (c, k) c-major
    x2 = x_raw[:, 0].astype(f32)                                   # (B, C, T)
    rp = jax.lax.conv_general_dilated_patches(
        x2[:, :, None, :], (1, KT), (1, 1), [(0, 0), (0, 0)])      # (B,C*KT,1,Tp)
    Xp = (rp.reshape(B, C * KT, Tp).transpose(0, 2, 1)
          .reshape(B * Tp, C * KT).astype(bf16))

    # freq conv1 im2col: one op -> (B, 3*16, H1*H1), channels (c,ky,kx) c-major
    fp1 = jax.lax.conv_general_dilated_patches(
        x_freq.astype(f32), (4, 4), (1, 1), [(2, 2), (2, 2)])
    Pt1 = fp1.reshape(B, 3 * 16, g["H1"] * g["H1"]).astype(bf16)

    out1 = _freq1_call(folded["Wt1"], Pt1, folded["shift1"], folded["pool1"])
    pooled1 = out1[:, :, :g["Hp1"] * g["Hp1"]].reshape(
        B, 16, g["Hp1"], g["Hp1"])                                 # NCHW, f32

    # freq conv2 im2col: one op -> rows (b, y, x), cols (c,ky,kx)
    fp2 = jax.lax.conv_general_dilated_patches(
        pooled1, (4, 4), (1, 1), [(2, 2), (2, 2)])                 # (B,256,H2,H2)
    Pt2T = (fp2.reshape(B, 16 * 16, g["H2"] * g["H2"]).transpose(0, 2, 1)
            .reshape(B * g["H2"] * g["H2"], 16 * 16).astype(bf16))

    logits = _tail_call(
        Xp, folded["W_A"], folded["b_A"], folded["W_B"], folded["b_B"],
        folded["P_raw"], folded["GrawBlk"],
        Pt2T, folded["Wt2T"], folded["shift2"], folded["poolL"],
        folded["WbigBlk"], folded["bbig"], folded["Gfreq"], folded["bc"],
        batch=B, t_out=g["To"], hw3=g["HW3"], npad=g["Np"])
    return logits[:, :g["n_cls"]]


# ----------------------------------------------------------------------------
# Pure-JAX reference mirroring the PyTorch forward (eval mode, exact GELU)
# ----------------------------------------------------------------------------
def tsff_forward_ref(params, x_raw, x_freq, img_weight=0.02, avepool=25):
    p = params

    def conv(x, w, b=None, pad=(0, 0), groups=1):
        y = jax.lax.conv_general_dilated(
            x, w, window_strides=(1, 1),
            padding=[(pad[0], pad[0]), (pad[1], pad[1])],
            dimension_numbers=("NCHW", "OIHW", "NCHW"),
            feature_group_count=groups)
        if b is not None:
            y = y + b.reshape(1, -1, 1, 1)
        return y

    def bn(x, q, eps=_BN_EPS):
        s = q["gamma"] / jnp.sqrt(q["var"] + eps)
        t = q["beta"] - q["mean"] * s
        return x * s.reshape(1, -1, 1, 1) + t.reshape(1, -1, 1, 1)

    def pool(x, k):
        B_, C_, H_, W_ = x.shape
        Ho, Wo = H_ // k, W_ // k
        return x[:, :, :Ho * k, :Wo * k].reshape(
            B_, C_, Ho, k, Wo, k).mean(axis=(3, 5))

    xr = jnp.einsum("bdcw,hdc->bhcw", x_raw, p["channel_weight"])
    xr = bn(conv(xr, p["tc1_w"]), p["tc1_bn"])
    xr = _gelu_erf(bn(conv(xr, p["tc2_w"], groups=24), p["tc2_bn"]))
    xr = bn(conv(xr, p["cc1_w"]), p["cc1_bn"])
    xr = _gelu_erf(bn(conv(xr, p["cc2_w"], groups=9), p["cc2_bn"]))
    B_, C9, H1, W1 = xr.shape
    To = W1 // avepool
    xr = xr[..., :To * avepool].reshape(B_, C9, H1, To, avepool).mean(-1)
    raw_flat = xr.reshape(B_, -1)

    xf = jax.nn.relu(bn(conv(x_freq, p["f1_w"], p["f1_b"], pad=(2, 2)),
                        p["f1_bn"]))
    xf = pool(xf, 8)
    xf = jax.nn.relu(bn(conv(xf, p["f2_w"], p["f2_b"], pad=(2, 2)),
                        p["f2_bn"]))
    xf = pool(xf, 3)
    xf = bn(conv(xf, p["f3_w"]), p["f3_bn"])
    xf = jax.nn.relu(bn(conv(xf, p["f4_w"], pad=(2, 2), groups=9), p["f4_bn"]))
    xf = pool(xf, 3)
    freq_flat = xf.reshape(B_, -1)

    weighted = raw_flat * (1.0 - img_weight) + freq_flat * img_weight
    return weighted @ p["lin_w"].T + p["lin_b"]


# ----------------------------------------------------------------------------
# Deterministic parameter initialization (shapes from TSFF.__init__)
# ----------------------------------------------------------------------------
def init_tsff_params(key, channels, feat_dim, num_classes):
    ks = iter(jax.random.split(key, 64))

    def rnd(shape, scale=0.1):
        return (scale * jax.random.normal(next(ks), shape)).astype(jnp.float32)

    def bn_init(n):
        return {
            "gamma": (1.0 + 0.1 * jax.random.normal(next(ks), (n,))
                      ).astype(jnp.float32),
            "beta": rnd((n,)),
            "mean": rnd((n,)),
            "var": (1.0 + 0.5 * jax.random.uniform(next(ks), (n,))
                    ).astype(jnp.float32),
        }

    bound = float(np.sqrt(6.0 / (9 + channels)))
    p = {}
    p["channel_weight"] = jax.random.uniform(
        next(ks), (9, 1, channels), jnp.float32, -bound, bound)
    p["tc1_w"] = rnd((24, 9, 1, 1));        p["tc1_bn"] = bn_init(24)
    p["tc2_w"] = rnd((24, 1, 1, 75));       p["tc2_bn"] = bn_init(24)
    p["cc1_w"] = rnd((9, 24, 1, 1));        p["cc1_bn"] = bn_init(9)
    p["cc2_w"] = rnd((9, 1, channels, 1));  p["cc2_bn"] = bn_init(9)
    p["f1_w"] = rnd((16, 3, 4, 4)); p["f1_b"] = rnd((16,)); p["f1_bn"] = bn_init(16)
    p["f2_w"] = rnd((32, 16, 4, 4)); p["f2_b"] = rnd((32,)); p["f2_bn"] = bn_init(32)
    p["f3_w"] = rnd((9, 32, 1, 1));         p["f3_bn"] = bn_init(9)
    p["f4_w"] = rnd((9, 1, 4, 4));          p["f4_bn"] = bn_init(9)
    p["lin_w"] = rnd((num_classes, feat_dim))
    p["lin_b"] = rnd((num_classes,))
    return p


# ----------------------------------------------------------------------------
if __name__ == "__main__":
    # Small shapes consistent with the forward pass (the hard-coded (1,75)
    # temporal kernel needs samples > 74; fusion requires equal feature dims).
    B, channels, samples, S = 2, 3, 100, 47
    avepool, num_classes, img_weight = 25, 2, 0.02

    To = (samples - 75 + 1) // avepool
    h = S + 1; h = h // 8; h = h + 1; h = h // 3; h = h + 1; h = h // 3
    feat_raw, feat_freq = 9 * 1 * To, 9 * h * h
    assert feat_raw == feat_freq, (feat_raw, feat_freq)
    feat_dim = feat_raw

    key = jax.random.PRNGKey(0)
    kp, kr, kf = jax.random.split(key, 3)
    params = init_tsff_params(kp, channels, feat_dim, num_classes)
    x_raw = jax.random.normal(kr, (B, 1, channels, samples), jnp.float32)
    x_freq = jax.random.normal(kf, (B, 3, S, S), jnp.float32)

    # One-time weight folding (outside the per-call path).
    folded, geom = fold_tsff_params(
        params, B=B, C=channels, T=samples, S=S, num_classes=num_classes,
        img_weight=img_weight, avepool=avepool)

    fwd = jax.jit(lambda xr, xf: tsff_forward(folded, geom, xr, xf))
    out = jax.block_until_ready(fwd(x_raw, x_freq))
    assert out.shape == (B, num_classes)

    ref = tsff_forward_ref(params, x_raw, x_freq, img_weight=img_weight,
                           avepool=avepool)
    # Mixed-precision kernel (bf16 MXU operands, tanh-GELU) vs f32/erf reference.
    np.testing.assert_allclose(np.asarray(out), np.asarray(ref),
                               rtol=1e-2, atol=1e-2)

    # TODO(synk): Dropout / training-mode BatchNorm are train-time stochastic
    # ops; this kernel implements inference semantics (Dropout=identity,
    # BN=running stats).
    print("KERNEL_OK")
</pallas_src>

<mosaic_0001>
module attributes {stable_mosaic.version = 11 : i64} {
  func.func @_freq1_kernel(%arg0: i32, %arg1: memref<16x48xbf16, #tpu.memory_space<vmem>>, %arg2: memref<1x48x2304xbf16, #tpu.memory_space<vmem>>, %arg3: memref<16x1xf32, #tpu.memory_space<vmem>>, %arg4: memref<2304x128xbf16, #tpu.memory_space<vmem>>, %arg5: memref<1x16x128xf32, #tpu.memory_space<vmem>>) attributes {dimension_semantics = [#tpu.dimension_semantics<parallel>], iteration_bounds = array<i64: 2>, scalar_prefetch = 0 : i64, scratch_operands = 0 : i64, tpu.core_type = #tpu.core_type<tc>, window_params = [{pipeline_mode = #tpu.pipeline_mode<synchronous>, transform_indices = @transform_0, window_bounds = array<i64: 16, 48>}, {transform_indices = @transform_1, window_bounds = array<i64: 1, 48, 2304>}, {pipeline_mode = #tpu.pipeline_mode<synchronous>, transform_indices = @transform_2, window_bounds = array<i64: 16, 1>}, {pipeline_mode = #tpu.pipeline_mode<synchronous>, transform_indices = @transform_3, window_bounds = array<i64: 2304, 128>}, {transform_indices = @transform_4, window_bounds = array<i64: 1, 16, 128>}]} {
    %c0 = arith.constant 0 : index
    %c0_0 = arith.constant 0 : index
    %0 = vector.load %arg1[%c0, %c0_0] : memref<16x48xbf16, #tpu.memory_space<vmem>>, vector<16x48xbf16>
    %c0_1 = arith.constant 0 : index
    %c0_2 = arith.constant 0 : index
    %c0_3 = arith.constant 0 : index
    %1 = vector.load %arg2[%c0_1, %c0_2, %c0_3] : memref<1x48x2304xbf16, #tpu.memory_space<vmem>>, vector<1x48x2304xbf16>
    %2 = vector.shape_cast %1 : vector<1x48x2304xbf16> to vector<48x2304xbf16>
    %cst = arith.constant dense<0.000000e+00> : vector<16x2304xf32>
    %3 = tpu.matmul %0, %2, %cst {dimension_numbers = #tpu.dot_dimension_numbers<[1], [0], [0], [1], [0, 0, 1, 1], [], []>} : vector<16x48xbf16>, vector<48x2304xbf16>, vector<16x2304xf32> -> vector<16x2304xf32>
    %c0_4 = arith.constant 0 : index
    %c0_5 = arith.constant 0 : index
    %4 = vector.load %arg3[%c0_4, %c0_5] : memref<16x1xf32, #tpu.memory_space<vmem>>, vector<16x1xf32>
    %5 = vector.broadcast %4 : vector<16x1xf32> to vector<16x2304xf32>
    %6 = arith.addf %3, %5 : vector<16x2304xf32>
    %cst_6 = arith.constant 0.000000e+00 : f32
    %7 = vector.broadcast %cst_6 : f32 to vector<16x2304xf32>
    %8 = arith.maximumf %6, %7 : vector<16x2304xf32>
    %9 = arith.truncf %8 : vector<16x2304xf32> to vector<16x2304xbf16>
    %c0_7 = arith.constant 0 : index
    %c0_8 = arith.constant 0 : index
    %10 = vector.load %arg4[%c0_7, %c0_8] : memref<2304x128xbf16, #tpu.memory_space<vmem>>, vector<2304x128xbf16>
    %cst_9 = arith.constant dense<0.000000e+00> : vector<16x128xf32>
    %11 = tpu.matmul %9, %10, %cst_9 {dimension_numbers = #tpu.dot_dimension_numbers<[1], [0], [0], [1], [0, 0, 1, 1], [], []>} : vector<16x2304xbf16>, vector<2304x128xbf16>, vector<16x128xf32> -> vector<16x128xf32>
    %c0_10 = arith.constant 0 : index
    %c0_11 = arith.constant 0 : index
    %c0_12 = arith.constant 0 : index
    %12 = vector.load %arg5[%c0_10, %c0_11, %c0_12] : memref<1x16x128xf32, #tpu.memory_space<vmem>>, vector<1x16x128xf32>
    %13 = vector.shape_cast %12 : vector<1x16x128xf32> to vector<16x128xf32>
    %14 = vector.shape_cast %11 : vector<16x128xf32> to vector<1x16x128xf32>
    tpu.vector_store %arg5[%c0_10, %c0_11, %c0_12], %14 {strides = array<i32>} : memref<1x16x128xf32, #tpu.memory_space<vmem>>, vector<1x16x128xf32>,
    return
  }
  func.func @transform_0(%arg0: i32) -> (i32, i32) {
    %c0_i32 = arith.constant 0 : i32
    %c0_i32_0 = arith.constant 0 : i32
    %c0_i32_1 = arith.constant 0 : i32
    return %c0_i32, %c0_i32_0 : i32, i32
  }
  func.func @transform_1(%arg0: i32) -> (i32, i32, i32) {
    %c0_i32 = arith.constant 0 : i32
    %c0_i32_0 = arith.constant 0 : i32
    %c0_i32_1 = arith.constant 0 : i32
    return %arg0, %c0_i32, %c0_i32_0 : i32, i32, i32
  }
  func.func @transform_2(%arg0: i32) -> (i32, i32) {
    %c0_i32 = arith.constant 0 : i32
    %c0_i32_0 = arith.constant 0 : i32
    %c0_i32_1 = arith.constant 0 : i32
    return %c0_i32, %c0_i32_0 : i32, i32
  }
  func.func @transform_3(%arg0: i32) -> (i32, i32) {
    %c0_i32 = arith.constant 0 : i32
    %c0_i32_0 = arith.constant 0 : i32
    %c0_i32_1 = arith.constant 0 : i32
    return %c0_i32, %c0_i32_0 : i32, i32
  }
  func.func @transform_4(%arg0: i32) -> (i32, i32, i32) {
    %c0_i32 = arith.constant 0 : i32
    %c0_i32_0 = arith.constant 0 : i32
    %c0_i32_1 = arith.constant 0 : i32
    return %arg0, %c0_i32, %c0_i32_0 : i32, i32, i32
  }
}

module attributes {stable_mosaic.version = 11 : i64} {
  func.func @_tail_kernel(%arg0: i32, %arg1: memref<52x225xbf16, #tpu.memory_space<vmem>>, %arg2: memref<225x128xbf16, #tpu.memory_space<vmem>>, %arg3: memref<1x128xf32, #tpu.memory_space<vmem>>, %arg4: memref<128x128xbf16, #tpu.memory_space<vmem>>, %arg5: memref<1x128xf32, #tpu.memory_space<vmem>>, %arg6: memref<2x52xf32, #tpu.memory_space<vmem>>, %arg7: memref<1x128x128xf32, #tpu.memory_space<vmem>>, %arg8: memref<98x256xbf16, #tpu.memory_space<vmem>>, %arg9: memref<256x32xbf16, #tpu.memory_space<vmem>>, %arg10: memref<1x32xf32, #tpu.memory_space<vmem>>, %arg11: memref<8x98xbf16, #tpu.memory_space<vmem>>, %arg12: memref<4x32x128xf32, #tpu.memory_space<vmem>>, %arg13: memref<1x128xf32, #tpu.memory_space<vmem>>, %arg14: memref<128x128xf32, #tpu.memory_space<vmem>>, %arg15: memref<1x128xf32, #tpu.memory_space<vmem>>, %arg16: memref<2x128xf32, #tpu.memory_space<vmem>>) attributes {dimension_semantics = [#tpu.dimension_semantics<arbitrary>], iteration_bounds = array<i64: 1>, scalar_prefetch = 0 : i64, scratch_operands = 0 : i64, tpu.core_type = #tpu.core_type<tc>, window_params = [{pipeline_mode = #tpu.pipeline_mode<synchronous>, transform_indices = @transform_0, window_bounds = array<i64: 52, 225>}, {pipeline_mode = #tpu.pipeline_mode<synchronous>, transform_indices = @transform_1, window_bounds = array<i64: 225, 128>}, {pipeline_mode = #tpu.pipeline_mode<synchronous>, transform_indices = @transform_2, window_bounds = array<i64: 1, 128>}, {pipeline_mode = #tpu.pipeline_mode<synchronous>, transform_indices = @transform_3, window_bounds = array<i64: 128, 128>}, {pipeline_mode = #tpu.pipeline_mode<synchronous>, transform_indices = @transform_4, window_bounds = array<i64: 1, 128>}, {pipeline_mode = #tpu.pipeline_mode<synchronous>, transform_indices = @transform_5, window_bounds = array<i64: 2, 52>}, {pipeline_mode = #tpu.pipeline_mode<synchronous>, transform_indices = @transform_6, window_bounds = array<i64: 1, 128, 128>}, {pipeline_mode = #tpu.pipeline_mode<synchronous>, transform_indices = @transform_7, window_bounds = array<i64: 98, 256>}, {pipeline_mode = #tpu.pipeline_mode<synchronous>, transform_indices = @transform_8, window_bounds = array<i64: 256, 32>}, {pipeline_mode = #tpu.pipeline_mode<synchronous>, transform_indices = @transform_9, window_bounds = array<i64: 1, 32>}, {pipeline_mode = #tpu.pipeline_mode<synchronous>, transform_indices = @transform_10, window_bounds = array<i64: 8, 98>}, {pipeline_mode = #tpu.pipeline_mode<synchronous>, transform_indices = @transform_11, window_bounds = array<i64: 4, 32, 128>}, {pipeline_mode = #tpu.pipeline_mode<synchronous>, transform_indices = @transform_12, window_bounds = array<i64: 1, 128>}, {pipeline_mode = #tpu.pipeline_mode<synchronous>, transform_indices = @transform_13, window_bounds = array<i64: 128, 128>}, {pipeline_mode = #tpu.pipeline_mode<synchronous>, transform_indices = @transform_14, window_bounds = array<i64: 1, 128>}, {pipeline_mode = #tpu.pipeline_mode<synchronous>, transform_indices = @transform_15, window_bounds = array<i64: 2, 128>}]} {
    %c0 = arith.constant 0 : index
    %c0_0 = arith.constant 0 : index
    %0 = vector.load %arg1[%c0, %c0_0] : memref<52x225xbf16, #tpu.memory_space<vmem>>, vector<52x225xbf16>
    %c0_1 = arith.constant 0 : index
    %c0_2 = arith.constant 0 : index
    %1 = vector.load %arg2[%c0_1, %c0_2] : memref<225x128xbf16, #tpu.memory_space<vmem>>, vector<225x128xbf16>
    %cst = arith.constant dense<0.000000e+00> : vector<52x128xf32>
    %2 = tpu.matmul %0, %1, %cst {dimension_numbers = #tpu.dot_dimension_numbers<[1], [0], [0], [1], [0, 0, 1, 1], [], []>} : vector<52x225xbf16>, vector<225x128xbf16>, vector<52x128xf32> -> vector<52x128xf32>
    %c0_3 = arith.constant 0 : index
    %c0_4 = arith.constant 0 : index
    %3 = vector.load %arg3[%c0_3, %c0_4] : memref<1x128xf32, #tpu.memory_space<vmem>>, vector<1x128xf32>
    %4 = vector.broadcast %3 : vector<1x128xf32> to vector<52x128xf32>
    %5 = arith.addf %2, %4 : vector<52x128xf32>
    %cst_5 = arith.constant 5.000000e-01 : f32
    %6 = vector.broadcast %cst_5 : f32 to vector<52x128xf32>
    %7 = arith.mulf %6, %5 : vector<52x128xf32>
    %cst_6 = arith.constant 4.471500e-02 : f32
    %8 = vector.broadcast %cst_6 : f32 to vector<52x128xf32>
    %9 = arith.mulf %8, %5 : vector<52x128xf32>
    %10 = arith.mulf %9, %5 : vector<52x128xf32>
    %11 = arith.mulf %10, %5 : vector<52x128xf32>
    %12 = arith.addf %5, %11 : vector<52x128xf32>
    %cst_7 = arith.constant 0.797884583 : f32
    %13 = vector.broadcast %cst_7 : f32 to vector<52x128xf32>
    %14 = arith.mulf %13, %12 : vector<52x128xf32>
    %15 = math.tanh %14 : vector<52x128xf32>
    %cst_8 = arith.constant 1.000000e+00 : f32
    %16 = vector.broadcast %cst_8 : f32 to vector<52x128xf32>
    %17 = arith.addf %16, %15 : vector<52x128xf32>
    %18 = arith.mulf %7, %17 : vector<52x128xf32>
    %19 = arith.truncf %18 : vector<52x128xf32> to vector<52x128xbf16>
    %c0_9 = arith.constant 0 : index
    %c0_10 = arith.constant 0 : index
    %20 = vector.load %arg4[%c0_9, %c0_10] : memref<128x128xbf16, #tpu.memory_space<vmem>>, vector<128x128xbf16>
    %cst_11 = arith.constant dense<0.000000e+00> : vector<52x128xf32>
    %21 = tpu.matmul %19, %20, %cst_11 {dimension_numbers = #tpu.dot_dimension_numbers<[1], [0], [0], [1], [0, 0, 1, 1], [], []>} : vector<52x128xbf16>, vector<128x128xbf16>, vector<52x128xf32> -> vector<52x128xf32>
    %c0_12 = arith.constant 0 : index
    %c0_13 = arith.constant 0 : index
    %22 = vector.load %arg5[%c0_12, %c0_13] : memref<1x128xf32, #tpu.memory_space<vmem>>, vector<1x128xf32>
    %23 = vector.broadcast %22 : vector<1x128xf32> to vector<52x128xf32>
    %24 = arith.addf %21, %23 : vector<52x128xf32>
    %cst_14 = arith.constant 5.000000e-01 : f32
    %25 = vector.broadcast %cst_14 : f32 to vector<52x128xf32>
    %26 = arith.mulf %25, %24 : vector<52x128xf32>
    %cst_15 = arith.constant 4.471500e-02 : f32
    %27 = vector.broadcast %cst_15 : f32 to vector<52x128xf32>
    %28 = arith.mulf %27, %24 : vector<52x128xf32>
    %29 = arith.mulf %28, %24 : vector<52x128xf32>
    %30 = arith.mulf %29, %24 : vector<52x128xf32>
    %31 = arith.addf %24, %30 : vector<52x128xf32>
    %cst_16 = arith.constant 0.797884583 : f32
    %32 = vector.broadcast %cst_16 : f32 to vector<52x128xf32>
    %33 = arith.mulf %32, %31 : vector<52x128xf32>
    %34 = math.tanh %33 : vector<52x128xf32>
    %cst_17 = arith.constant 1.000000e+00 : f32
    %35 = vector.broadcast %cst_17 : f32 to vector<52x128xf32>
    %36 = arith.addf %35, %34 : vector<52x128xf32>
    %37 = arith.mulf %26, %36 : vector<52x128xf32>
    %c0_18 = arith.constant 0 : index
    %c0_19 = arith.constant 0 : index
    %38 = vector.load %arg6[%c0_18, %c0_19] : memref<2x52xf32, #tpu.memory_space<vmem>>, vector<2x52xf32>
    %cst_20 = arith.constant dense<0.000000e+00> : vector<2x128xf32>
    %39 = tpu.matmul %38, %37, %cst_20 {dimension_numbers = #tpu.dot_dimension_numbers<[1], [0], [0], [1], [0, 0, 1, 1], [], []>} : vector<2x52xf32>, vector<52x128xf32>, vector<2x128xf32> -> vector<2x128xf32>
    %cst_21 = arith.constant 0.000000e+00 : f32
    %40 = vector.broadcast %cst_21 : f32 to vector<2x128xf32>
    %c0_22 = arith.constant 0 : index
    %c0_23 = arith.constant 0 : index
    %41 = vector.load %arg15[%c0_22, %c0_23] : memref<1x128xf32, #tpu.memory_space<vmem>>, vector<1x128xf32>
    %42 = vector.broadcast %41 : vector<1x128xf32> to vector<2x128xf32>
    %43 = arith.addf %40, %42 : vector<2x128xf32>
    %c0_24 = arith.constant 0 : index
    %c0_25 = arith.constant 0 : index
    %c0_26 = arith.constant 0 : index
    %44 = vector.load %arg7[%c0_24, %c0_25, %c0_26] : memref<1x128x128xf32, #tpu.memory_space<vmem>>, vector<1x128x128xf32>
    %45 = vector.shape_cast %44 : vector<1x128x128xf32> to vector<128x128xf32>
    %cst_27 = arith.constant dense<0.000000e+00> : vector<2x128xf32>
    %46 = tpu.matmul %39, %45, %cst_27 {dimension_numbers = #tpu.dot_dimension_numbers<[1], [0], [0], [1], [0, 0, 1, 1], [], []>} : vector<2x128xf32>, vector<128x128xf32>, vector<2x128xf32> -> vector<2x128xf32>
    %47 = arith.addf %43, %46 : vector<2x128xf32>
    %c0_28 = arith.constant 0 : index
    %c0_29 = arith.constant 0 : index
    %48 = vector.load %arg8[%c0_28, %c0_29] : memref<98x256xbf16, #tpu.memory_space<vmem>>, vector<98x256xbf16>
    %c0_30 = arith.constant 0 : index
    %c0_31 = arith.constant 0 : index
    %49 = vector.load %arg9[%c0_30, %c0_31] : memref<256x32xbf16, #tpu.memory_space<vmem>>, vector<256x32xbf16>
    %cst_32 = arith.constant dense<0.000000e+00> : vector<98x32xf32>
    %50 = tpu.matmul %48, %49, %cst_32 {dimension_numbers = #tpu.dot_dimension_numbers<[1], [0], [0], [1], [0, 0, 1, 1], [], []>} : vector<98x256xbf16>, vector<256x32xbf16>, vector<98x32xf32> -> vector<98x32xf32>
    %c0_33 = arith.constant 0 : index
    %c0_34 = arith.constant 0 : index
    %51 = vector.load %arg10[%c0_33, %c0_34] : memref<1x32xf32, #tpu.memory_space<vmem>>, vector<1x32xf32>
    %52 = vector.broadcast %51 : vector<1x32xf32> to vector<98x32xf32>
    %53 = arith.addf %50, %52 : vector<98x32xf32>
    %cst_35 = arith.constant 0.000000e+00 : f32
    %54 = vector.broadcast %cst_35 : f32 to vector<98x32xf32>
    %55 = arith.maximumf %53, %54 : vector<98x32xf32>
    %56 = arith.truncf %55 : vector<98x32xf32> to vector<98x32xbf16>
    %c0_36 = arith.constant 0 : index
    %c0_37 = arith.constant 0 : index
    %57 = vector.load %arg11[%c0_36, %c0_37] : memref<8x98xbf16, #tpu.memory_space<vmem>>, vector<8x98xbf16>
    %cst_38 = arith.constant dense<0.000000e+00> : vector<8x32xf32>
    %58 = tpu.matmul %57, %56, %cst_38 {dimension_numbers = #tpu.dot_dimension_numbers<[1], [0], [0], [1], [0, 0, 1, 1], [], []>} : vector<8x98xbf16>, vector<98x32xbf16>, vector<8x32xf32> -> vector<8x32xf32>
    %cst_39 = arith.constant 0.000000e+00 : f32
    %59 = vector.broadcast %cst_39 : f32 to vector<2x128xf32>
    %c0_40 = arith.constant 0 : index
    %c0_41 = arith.constant 0 : index
    %60 = vector.load %arg13[%c0_40, %c0_41] : memref<1x128xf32, #tpu.memory_space<vmem>>, vector<1x128xf32>
    %61 = vector.broadcast %60 : vector<1x128xf32> to vector<2x128xf32>
    %62 = arith.addf %59, %61 : vector<2x128xf32>
    %63 = vector.extract_strided_slice %58 {offsets = [0, 0], sizes = [2, 32], strides = [1, 1]} : vector<8x32xf32> to vector<2x32xf32>
    %c0_42 = arith.constant 0 : index
    %c0_43 = arith.constant 0 : index
    %c0_44 = arith.constant 0 : index
    %64 = vector.load %arg12[%c0_42, %c0_43, %c0_44] : memref<4x32x128xf32, #tpu.memory_space<vmem>>, vector<1x32x128xf32>
    %65 = vector.shape_cast %64 : vector<1x32x128xf32> to vector<32x128xf32>
    %cst_45 = arith.constant dense<0.000000e+00> : vector<2x128xf32>
    %66 = tpu.matmul %63, %65, %cst_45 {dimension_numbers = #tpu.dot_dimension_numbers<[1], [0], [0], [1], [0, 0, 1, 1], [], []>} : vector<2x32xf32>, vector<32x128xf32>, vector<2x128xf32> -> vector<2x128xf32>
    %67 = arith.addf %62, %66 : vector<2x128xf32>
    %68 = vector.extract_strided_slice %58 {offsets = [2, 0], sizes = [2, 32], strides = [1, 1]} : vector<8x32xf32> to vector<2x32xf32>
    %c1 = arith.constant 1 : index
    %c0_46 = arith.constant 0 : index
    %c0_47 = arith.constant 0 : index
    %69 = vector.load %arg12[%c1, %c0_46, %c0_47] : memref<4x32x128xf32, #tpu.memory_space<vmem>>, vector<1x32x128xf32>
    %70 = vector.shape_cast %69 : vector<1x32x128xf32> to vector<32x128xf32>
    %cst_48 = arith.constant dense<0.000000e+00> : vector<2x128xf32>
    %71 = tpu.matmul %68, %70, %cst_48 {dimension_numbers = #tpu.dot_dimension_numbers<[1], [0], [0], [1], [0, 0, 1, 1], [], []>} : vector<2x32xf32>, vector<32x128xf32>, vector<2x128xf32> -> vector<2x128xf32>
    %72 = arith.addf %67, %71 : vector<2x128xf32>
    %73 = vector.extract_strided_slice %58 {offsets = [4, 0], sizes = [2, 32], strides = [1, 1]} : vector<8x32xf32> to vector<2x32xf32>
    %c2 = arith.constant 2 : index
    %c0_49 = arith.constant 0 : index
    %c0_50 = arith.constant 0 : index
    %74 = vector.load %arg12[%c2, %c0_49, %c0_50] : memref<4x32x128xf32, #tpu.memory_space<vmem>>, vector<1x32x128xf32>
    %75 = vector.shape_cast %74 : vector<1x32x128xf32> to vector<32x128xf32>
    %cst_51 = arith.constant dense<0.000000e+00> : vector<2x128xf32>
    %76 = tpu.matmul %73, %75, %cst_51 {dimension_numbers = #tpu.dot_dimension_numbers<[1], [0], [0], [1], [0, 0, 1, 1], [], []>} : vector<2x32xf32>, vector<32x128xf32>, vector<2x128xf32> -> vector<2x128xf32>
    %77 = arith.addf %72, %76 : vector<2x128xf32>
    %78 = vector.extract_strided_slice %58 {offsets = [6, 0], sizes = [2, 32], strides = [1, 1]} : vector<8x32xf32> to vector<2x32xf32>
    %c3 = arith.constant 3 : index
    %c0_52 = arith.constant 0 : index
    %c0_53 = arith.constant 0 : index
    %79 = vector.load %arg12[%c3, %c0_52, %c0_53] : memref<4x32x128xf32, #tpu.memory_space<vmem>>, vector<1x32x128xf32>
    %80 = vector.shape_cast %79 : vector<1x32x128xf32> to vector<32x128xf32>
    %cst_54 = arith.constant dense<0.000000e+00> : vector<2x128xf32>
    %81 = tpu.matmul %78, %80, %cst_54 {dimension_numbers = #tpu.dot_dimension_numbers<[1], [0], [0], [1], [0, 0, 1, 1], [], []>} : vector<2x32xf32>, vector<32x128xf32>, vector<2x128xf32> -> vector<2x128xf32>
    %82 = arith.addf %77, %81 : vector<2x128xf32>
    %cst_55 = arith.constant 0.000000e+00 : f32
    %83 = vector.broadcast %cst_55 : f32 to vector<2x128xf32>
    %84 = arith.maximumf %82, %83 : vector<2x128xf32>
    %c0_56 = arith.constant 0 : index
    %c0_57 = arith.constant 0 : index
    %85 = vector.load %arg14[%c0_56, %c0_57] : memref<128x128xf32, #tpu.memory_space<vmem>>, vector<128x128xf32>
    %cst_58 = arith.constant dense<0.000000e+00> : vector<2x128xf32>
    %86 = tpu.matmul %84, %85, %cst_58 {dimension_numbers = #tpu.dot_dimension_numbers<[1], [0], [0], [1], [0, 0, 1, 1], [], []>} : vector<2x128xf32>, vector<128x128xf32>, vector<2x128xf32> -> vector<2x128xf32>
    %87 = arith.addf %47, %86 : vector<2x128xf32>
    %c0_59 = arith.constant 0 : index
    %c0_60 = arith.constant 0 : index
    %88 = vector.load %arg16[%c0_59, %c0_60] : memref<2x128xf32, #tpu.memory_space<vmem>>, vector<2x128xf32>
    tpu.vector_store %arg16[%c0_59, %c0_60], %87 {strides = array<i32>} : memref<2x128xf32, #tpu.memory_space<vmem>>, vector<2x128xf32>,
    return
  }
  func.func @transform_0(%arg0: i32) -> (i32, i32) {
    %c0_i32 = arith.constant 0 : i32
    %c0_i32_0 = arith.constant 0 : i32
    %c0_i32_1 = arith.constant 0 : i32
    return %c0_i32, %c0_i32_0 : i32, i32
  }
  func.func @transform_1(%arg0: i32) -> (i32, i32) {
    %c0_i32 = arith.constant 0 : i32
    %c0_i32_0 = arith.constant 0 : i32
    %c0_i32_1 = arith.constant 0 : i32
    return %c0_i32, %c0_i32_0 : i32, i32
  }
  func.func @transform_2(%arg0: i32) -> (i32, i32) {
    %c0_i32 = arith.constant 0 : i32
    %c0_i32_0 = arith.constant 0 : i32
    %c0_i32_1 = arith.constant 0 : i32
    return %c0_i32, %c0_i32_0 : i32, i32
  }
  func.func @transform_3(%arg0: i32) -> (i32, i32) {
    %c0_i32 = arith.constant 0 : i32
    %c0_i32_0 = arith.constant 0 : i32
    %c0_i32_1 = arith.constant 0 : i32
    return %c0_i32, %c0_i32_0 : i32, i32
  }
  func.func @transform_4(%arg0: i32) -> (i32, i32) {
    %c0_i32 = arith.constant 0 : i32
    %c0_i32_0 = arith.constant 0 : i32
    %c0_i32_1 = arith.constant 0 : i32
    return %c0_i32, %c0_i32_0 : i32, i32
  }
  func.func @transform_5(%arg0: i32) -> (i32, i32) {
    %c0_i32 = arith.constant 0 : i32
    %c0_i32_0 = arith.constant 0 : i32
    %c0_i32_1 = arith.constant 0 : i32
    return %c0_i32, %c0_i32_0 : i32, i32
  }
  func.func @transform_6(%arg0: i32) -> (i32, i32, i32) {
    %c0_i32 = arith.constant 0 : i32
    %c0_i32_0 = arith.constant 0 : i32
    %c0_i32_1 = arith.constant 0 : i32
    %c0_i32_2 = arith.constant 0 : i32
    return %c0_i32, %c0_i32_0, %c0_i32_1 : i32, i32, i32
  }
  func.func @transform_7(%arg0: i32) -> (i32, i32) {
    %c0_i32 = arith.constant 0 : i32
    %c0_i32_0 = arith.constant 0 : i32
    %c0_i32_1 = arith.constant 0 : i32
    return %c0_i32, %c0_i32_0 : i32, i32
  }
  func.func @transform_8(%arg0: i32) -> (i32, i32) {
    %c0_i32 = arith.constant 0 : i32
    %c0_i32_0 = arith.constant 0 : i32
    %c0_i32_1 = arith.constant 0 : i32
    return %c0_i32, %c0_i32_0 : i32, i32
  }
  func.func @transform_9(%arg0: i32) -> (i32, i32) {
    %c0_i32 = arith.constant 0 : i32
    %c0_i32_0 = arith.constant 0 : i32
    %c0_i32_1 = arith.constant 0 : i32
    return %c0_i32, %c0_i32_0 : i32, i32
  }
  func.func @transform_10(%arg0: i32) -> (i32, i32) {
    %c0_i32 = arith.constant 0 : i32
    %c0_i32_0 = arith.constant 0 : i32
    %c0_i32_1 = arith.constant 0 : i32
    return %c0_i32, %c0_i32_0 : i32, i32
  }
  func.func @transform_11(%arg0: i32) -> (i32, i32, i32) {
    %c0_i32 = arith.constant 0 : i32
    %c0_i32_0 = arith.constant 0 : i32
    %c0_i32_1 = arith.constant 0 : i32
    %c0_i32_2 = arith.constant 0 : i32
    return %c0_i32, %c0_i32_0, %c0_i32_1 : i32, i32, i32
  }
  func.func @transform_12(%arg0: i32) -> (i32, i32) {
    %c0_i32 = arith.constant 0 : i32
    %c0_i32_0 = arith.constant 0 : i32
    %c0_i32_1 = arith.constant 0 : i32
    return %c0_i32, %c0_i32_0 : i32, i32
  }
  func.func @transform_13(%arg0: i32) -> (i32, i32) {
    %c0_i32 = arith.constant 0 : i32
    %c0_i32_0 = arith.constant 0 : i32
    %c0_i32_1 = arith.constant 0 : i32
    return %c0_i32, %c0_i32_0 : i32, i32
  }
  func.func @transform_14(%arg0: i32) -> (i32, i32) {
    %c0_i32 = arith.constant 0 : i32
    %c0_i32_0 = arith.constant 0 : i32
    %c0_i32_1 = arith.constant 0 : i32
    return %c0_i32, %c0_i32_0 : i32, i32
  }
  func.func @transform_15(%arg0: i32) -> (i32, i32) {
    %c0_i32 = arith.constant 0 : i32
    %c0_i32_0 = arith.constant 0 : i32
    %c0_i32_1 = arith.constant 0 : i32
    return %c0_i32, %c0_i32_0 : i32, i32
  }
}

</mosaic_0001>

<llo_original>
// kernel: _lambda_.2
$region0: #{_lambda_.2}
  #allocation0 [shape = 'u32[]', space=smem, size = 0x4, offset = 0x4, fixed_abs, tag = 'smem constant byte address 0x4 - core index']
  #allocation1 [shape = 'u32[72,128]{1,0:T(1,128)}', space=vmem, size = 0x9000, scoped, tag = 'internal scratch']
  %s0 = inlined_call_operand.vmem [shape: bf16[16,48], index: 0, kind: input, shape index: {}]
  %s1 = inlined_call_operand.vmem [shape: bf16[2,48,2304], index: 1, kind: input, shape index: {}]
  %s2 = inlined_call_operand.vmem [shape: f32[16,1], index: 2, kind: input, shape index: {}]
  %s3 = inlined_call_operand.vmem [shape: bf16[2304,128], index: 3, kind: input, shape index: {}]
  %s4 = inlined_call_operand.vmem [shape: f32[2,16,128], index: 4, kind: output, shape index: {}]
  %s5 = sld [smem:[#allocation0]]
  $region49: #{_lambda_.2} parent=0
    _
  %s7 = ssub.s32 1, %s5
  %s8 = scalar_select 0, %s7, %s5
  loop: start=0, step=1, limit=4
  $region2: #{_lambda_.2} parent=0 // loop_pre_header
    _
  $region3: #{_lambda_.2} parent=0 // loop_header
    %s10 = sphi 0, %s14
    %p11 = scmp.ge.s32.totalorder %s10, 4
    %s18 = sphi 0, %s18
    %s20 = sphi 0, %s18
    %s21 = sphi 0, %s20
    %s35 = sphi 0, %s21
    %s41 = sphi 0, %s43
    %s44 = sphi 0, %s41
    %s45 = sphi 0, %s44
    %s61 = sphi 0, %s45
    %s65 = sphi 0, %s65
    %s67 = sphi 0, %s65
    %s68 = sphi 0, %s67
    %s82 = sphi 0, %s68
    %s86 = sphi 0, %s86
    %s88 = sphi 0, %s86
    %s89 = sphi 0, %s88
    %s103 = sphi 0, %s89
    %s109 = sphi 0, %s111
    %s112 = sphi 0, %s109
    %s113 = sphi 0, %s112
    %s129 = sphi 0, %s113
  $region4: #{_lambda_.2} parent=0 // loop_header_branch
    %13 = sbr.rel (%p11) target = $region8
  $region5: #{_lambda_.2} parent=0 // loop_body
    %s15 = ssub.s32 %s10, 1
    %s16 = ssub.s32 %s10, 2
    %s17 = sadd.s32 %s10, 1
    %s19 = sadd.s32 %s18, 1
    %p22 = scmp.eq.s32.totalorder %s10, 1
    %p23 = scmp.ne.s32.totalorder %s18, %s20
    %p24 = scmp.eq.s32.totalorder %s10, 0
    %p25 = por %p23, %p24
    %p26 = scmp.ne.s32.totalorder %s18, %s20
    %p27 = scmp.eq.s32.totalorder %s15, 1
    %p28 = por %p26, %p27
    %p29 = scmp.ne.s32.totalorder %s20, %s21
    %p30 = scmp.eq.s32.totalorder %s15, 0
    %p31 = por %p29, %p30
    %p32 = scmp.ne.s32.totalorder %s20, %s21
    %p33 = scmp.eq.s32.totalorder %s16, 1
    %p34 = por %p32, %p33
    %p36 = scmp.ne.s32.totalorder %s21, %s35
    %p37 = scmp.eq.s32.totalorder %s16, 0
    %p38 = por %p36, %p37
    %s39 = ssub.s32 %s10, %s17
    %p40 = scmp.eq.s32.totalorder %s39, 0
    %s42 = sadd.s32 %s41, 1
    %s43 = scalar_select %p40, %s41, %s42
    %p46 = pneg %p40
    %p47 = scmp.eq.s32.totalorder %s10, 1
    %p48 = por %p46, %p47
    %p49 = scmp.ne.s32.totalorder %s41, %s44
    %p50 = scmp.eq.s32.totalorder %s10, 0
    %p51 = por %p49, %p50
    %p52 = scmp.ne.s32.totalorder %s41, %s44
    %p53 = scmp.eq.s32.totalorder %s15, 1
    %p54 = por %p52, %p53
    %p55 = scmp.ne.s32.totalorder %s44, %s45
    %p56 = scmp.eq.s32.totalorder %s15, 0
    %p57 = por %p55, %p56
    %p58 = scmp.ne.s32.totalorder %s44, %s45
    %p59 = scmp.eq.s32.totalorder %s16, 1
    %p60 = por %p58, %p59
    %p62 = scmp.ne.s32.totalorder %s45, %s61
    %p63 = scmp.eq.s32.totalorder %s16, 0
    %p64 = por %p62, %p63
    %s66 = sadd.s32 %s65, 1
    %p69 = scmp.eq.s32.totalorder %s10, 1
    %p70 = scmp.ne.s32.totalorder %s65, %s67
    %p71 = scmp.eq.s32.totalorder %s10, 0
    %p72 = por %p70, %p71
    %p73 = scmp.ne.s32.totalorder %s65, %s67
    %p74 = scmp.eq.s32.totalorder %s15, 1
    %p75 = por %p73, %p74
    %p76 = scmp.ne.s32.totalorder %s67, %s68
    %p77 = scmp.eq.s32.totalorder %s15, 0
    %p78 = por %p76, %p77
    %p79 = scmp.ne.s32.totalorder %s67, %s68
    %p80 = scmp.eq.s32.totalorder %s16, 1
    %p81 = por %p79, %p80
    %p83 = scmp.ne.s32.totalorder %s68, %s82
    %p84 = scmp.eq.s32.totalorder %s16, 0
    %p85 = por %p83, %p84
    %s87 = sadd.s32 %s86, 1
    %p90 = scmp.eq.s32.totalorder %s10, 1
    %p91 = scmp.ne.s32.totalorder %s86, %s88
    %p92 = scmp.eq.s32.totalorder %s10, 0
    %p93 = por %p91, %p92
    %p94 = scmp.ne.s32.totalorder %s86, %s88
    %p95 = scmp.eq.s32.totalorder %s15, 1
    %p96 = por %p94, %p95
    %p97 = scmp.ne.s32.totalorder %s88, %s89
    %p98 = scmp.eq.s32.totalorder %s15, 0
    %p99 = por %p97, %p98
    %p100 = scmp.ne.s32.totalorder %s88, %s89
    %p101 = scmp.eq.s32.totalorder %s16, 1
    %p102 = por %p100, %p101
    %p104 = scmp.ne.s32.totalorder %s89, %s103
    %p105 = scmp.eq.s32.totalorder %s16, 0
    %p106 = por %p104, %p105
    %s107 = ssub.s32 %s10, %s17
    %p108 = scmp.eq.s32.totalorder %s107, 0
    %s110 = sadd.s32 %s109, 1
    %s111 = scalar_select %p108, %s109, %s110
    %p114 = pneg %p108
    %p115 = scmp.eq.s32.totalorder %s10, 1
    %p116 = por %p114, %p115
    %p117 = scmp.ne.s32.totalorder %s109, %s112
    %p118 = scmp.eq.s32.totalorder %s10, 0
    %p119 = por %p117, %p118
    %p120 = scmp.ne.s32.totalorder %s109, %s112
    %p121 = scmp.eq.s32.totalorder %s15, 1
    %p122 = por %p120, %p121
    %p123 = scmp.ne.s32.totalorder %s112, %s113
    %p124 = scmp.eq.s32.totalorder %s15, 0
    %p125 = por %p123, %p124
    %p126 = scmp.ne.s32.totalorder %s112, %s113
    %p127 = scmp.eq.s32.totalorder %s16, 1
    %p128 = por %p126, %p127
    %p130 = scmp.ne.s32.totalorder %s113, %s129
    %p131 = scmp.eq.s32.totalorder %s16, 0
    %p132 = por %p130, %p131
    %p133 = scmp.le.s32.totalorder 1, %s10
    %p134 = scmp.lt.s32.totalorder %s10, 3
    %p135 = pnand %p133, %p134
    %p136 = pneg %p135
    // Predicated region
    $region9: #{_lambda_.2} parent=5 // pred_check
      _
    $region10: #{_lambda_.2} parent=5 // pred_check_branch
      %138 = sbr.rel (%p135) target = $region12
    $region11: #{_lambda_.2} parent=5 // pred_region
      %s139 = ssub.s32 %s10, 1
      // Predicated region
      $region13: #{_lambda_.2} parent=11 // pred_check
        %p140 = pneg %p31
      $region14: #{_lambda_.2} parent=11 // pred_check_branch
        %142 = sbr.rel (%p140) target = $region16
      $region15: #{_lambda_.2} parent=11 // pred_region
        _
      $region16: #{_lambda_.2} parent=11 // pred_fallthru
        _
      // Predicated region
      $region17: #{_lambda_.2} parent=11 // pred_check
        %p143 = pneg %p78
      $region18: #{_lambda_.2} parent=11 // pred_check_branch
        %145 = sbr.rel (%p143) target = $region20
      $region19: #{_lambda_.2} parent=11 // pred_region
        _
      $region20: #{_lambda_.2} parent=11 // pred_fallthru
        _
      // Predicated region
      $region21: #{_lambda_.2} parent=11 // pred_check
        %p146 = pneg %p99
      $region22: #{_lambda_.2} parent=11 // pred_check_branch
        %148 = sbr.rel (%p146) target = $region24
      $region23: #{_lambda_.2} parent=11 // pred_region
        _
      $region24: #{_lambda_.2} parent=11 // pred_fallthru
        _
    $region12: #{_lambda_.2} parent=5 // pred_fallthru
      _
    %p149 = scmp.lt.s32.totalorder %s10, 2
    // Predicated region
    $region25: #{_lambda_.2} parent=5 // pred_check
      %p150 = pneg %p149
    $region26: #{_lambda_.2} parent=5 // pred_check_branch
      %152 = sbr.rel (%p150) target = $region28
    $region27: #{_lambda_.2} parent=5 // pred_region
      // Predicated region
      $region29: #{_lambda_.2} parent=27 // pred_check
        %p153 = pneg %p51
      $region30: #{_lambda_.2} parent=27 // pred_check_branch
        %155 = sbr.rel (%p153) target = $region32
      $region31: #{_lambda_.2} parent=27 // pred_region
        %p156 = scmp.lt.s32.totalorder %s10, 1
        %s157 = scalar_select %p156, %s10, 1
        %s158 = smul.addr %s157, 108
        %s159 = smul.addr %s158, 4
        %s160 = scalar_lea.vmem %s1, %s159
      $region32: #{_lambda_.2} parent=27 // pred_fallthru
        _
    $region28: #{_lambda_.2} parent=5 // pred_fallthru
      _
    %p161 = scmp.le.s32.totalorder 1, %s10
    %p162 = scmp.lt.s32.totalorder %s10, 3
    %p163 = pnand %p161, %p162
    %p164 = pneg %p163
    // Predicated region
    $region33: #{_lambda_.2} parent=5 // pred_check
      _
    $region34: #{_lambda_.2} parent=5 // pred_check_branch
      %166 = sbr.rel (%p163) target = $region36
    $region35: #{_lambda_.2} parent=5 // pred_region
      %s167 = ssub.s32 %s10, 1
      %p168 = pneg %p31
      %p169 = pneg %p28
      %p170 = scmp.lt.s32.totalorder %s15, 1
      %s171 = scalar_select %p170, %s15, 1
      %s172 = smul.addr %s171, 108
      %s173 = smul.addr %s172, 4
      %s174 = scalar_lea.vmem %s1, %s173
      %p175 = pneg %p57
      %p176 = pneg %p54
      %p177 = pneg %p78
      %p178 = pneg %p75
      %p179 = pneg %p99
      %p180 = pneg %p96
      %p181 = pneg %p125
      %p182 = pneg %p122
      %p183 = scmp.lt.s32.totalorder %s15, 1
      %s184 = scalar_select %p183, %s15, 1
      %s185 = smul.addr %s184, 2
      %s186 = smul.addr %s185, 8
      %s187 = scalar_lea.vmem %s4, %s186
      %p188 = scmp.lt.s32.totalorder %s15, 1
      %s189 = scalar_select %p188, %s15, 1
      %s190 = smul.addr %s189, 108
      %s191 = smul.addr %s190, 4
      %s192 = scalar_lea.vmem %s1, %s191
      %p193 = scmp.lt.s32.totalorder %s15, 1
      %s194 = scalar_select %p193, %s15, 1
      %s195 = smul.addr %s194, 2
      %s196 = smul.addr %s195, 8
      %s197 = scalar_lea.vmem %s4, %s196
      %v199 = vld [vmem:[%s0] sm:$0xf]
      %v200 = vld [vmem:[%s0 + $0x4] sm:$0xf]
      %v201 = vld [vmem:[%s192] sm:$0xff]
      %v202 = vld [vmem:[%s192 + $0x8] sm:$0xff]
      %v203 = vld [vmem:[%s192 + $0x10] sm:$0xff]
      %v204 = vld [vmem:[%s192 + $0x18] sm:$0xff]
      %v205 = vld [vmem:[%s192 + $0x20] sm:$0xff]
      %v206 = vld [vmem:[%s192 + $0x28] sm:$0xff]
      %v207 = vld [vmem:[%s192 + $0x30] sm:$0xff]
      %v208 = vld [vmem:[%s192 + $0x38] sm:$0xff]
      %v209 = vld [vmem:[%s192 + $0x40] sm:$0xff]
      %v210 = vld [vmem:[%s192 + $0x48] sm:$0xff]
      %v211 = vld [vmem:[%s192 + $0x50] sm:$0xff]
      %v212 = vld [vmem:[%s192 + $0x58] sm:$0xff]
      %v213 = vld [vmem:[%s192 + $0x60] sm:$0xff]
      %v214 = vld [vmem:[%s192 + $0x68] sm:$0xff]
      %v215 = vld [vmem:[%s192 + $0x70] sm:$0xff]
      %v216 = vld [vmem:[%s192 + $0x78] sm:$0xff]
      %v217 = vld [vmem:[%s192 + $0x80] sm:$0xff]
      %v218 = vld [vmem:[%s192 + $0x88] sm:$0xff]
      %v219 = vld [vmem:[%s192 + $0x90] sm:$0xff]
      %v220 = vld [vmem:[%s192 + $0x98] sm:$0xff]
      %v221 = vld [vmem:[%s192 + $0xa0] sm:$0xff]
      %v222 = vld [vmem:[%s192 + $0xa8] sm:$0xff]
      %v223 = vld [vmem:[%s192 + $0xb0] sm:$0xff]
      %v224 = vld [vmem:[%s192 + $0xb8] sm:$0xff]
      %v225 = vld [vmem:[%s192 + $0xc0] sm:$0xff]
      %v226 = vld [vmem:[%s192 + $0xc8] sm:$0xff]
      %v227 = vld [vmem:[%s192 + $0xd0] sm:$0xff]
      %v228 = vld [vmem:[%s192 + $0xd8] sm:$0xff]
      %v229 = vld [vmem:[%s192 + $0xe0] sm:$0xff]
      %v230 = vld [vmem:[%s192 + $0xe8] sm:$0xff]
      %v231 = vld [vmem:[%s192 + $0xf0] sm:$0xff]
      %v232 = vld [vmem:[%s192 + $0xf8] sm:$0xff]
      %v233 = vld [vmem:[%s192 + $0x100] sm:$0xff]
      %v234 = vld [vmem:[%s192 + $0x108] sm:$0xff]
      %v235 = vld [vmem:[%s192 + $0x110] sm:$0xff]
      %v236 = vld [vmem:[%s192 + $0x118] sm:$0xff]
      %v237 = vld [vmem:[%s192 + $0x120] sm:$0xff]
      %v238 = vld [vmem:[%s192 + $0x128] sm:$0xff]
      %v239 = vld [vmem:[%s192 + $0x130] sm:$0xff]
      %v240 = vld [vmem:[%s192 + $0x138] sm:$0xff]
      %v241 = vld [vmem:[%s192 + $0x140] sm:$0xff]
      %v242 = vld [vmem:[%s192 + $0x148] sm:$0xff]
      %v243 = vld [vmem:[%s192 + $0x150] sm:$0xff]
      %v244 = vld [vmem:[%s192 + $0x158] sm:$0xff]
      %v245 = vld [vmem:[%s192 + $0x160] sm:$0xff]
      %v246 = vld [vmem:[%s192 + $0x168] sm:$0xff]
      %v247 = vld [vmem:[%s192 + $0x170] sm:$0xff]
      %v248 = vld [vmem:[%s192 + $0x178] sm:$0xff]
      %v249 = vld [vmem:[%s192 + $0x180] sm:$0xff]
      %v250 = vld [vmem:[%s192 + $0x188] sm:$0xff]
      %v251 = vld [vmem:[%s192 + $0x190] sm:$0xff]
      %v252 = vld [vmem:[%s192 + $0x198] sm:$0xff]
      %v253 = vld [vmem:[%s192 + $0x1a0] sm:$0xff]
      %v254 = vld [vmem:[%s192 + $0x1a8] sm:$0xff]
      %v255 = vld [vmem:[%s2] sm:$0xff]
      %v256 = vld [vmem:[%s2 + $0x8] sm:$0xff]
      %258 = vset.pattern.permute.xlu0 0
      %259 = vperm.xlu0 %258, %v255
      %v260 = vpop.permute.xlu0 %259
      %263 = vset.pattern.permute.xlu0 0
      %264 = vperm.xlu0 %263, %v256
      %v265 = vpop.permute.xlu0 %264
      %v269 = vunpack.c.l.b16 %v199
      %v270 = vunpack.c.l.b16 %v200
      %v271 = vpack.c.b16 %v270, %v269
      %v326 = vunpack.c.l.b16 %v201
      %v327 = vunpack.c.h.b16 %v201
      %v328 = vunpack.c.l.b16 %v202
      %v329 = vunpack.c.h.b16 %v202
      %v330 = vunpack.c.l.b16 %v203
      %v331 = vunpack.c.h.b16 %v203
      %v332 = vunpack.c.l.b16 %v204
      %v333 = vunpack.c.h.b16 %v204
      %v334 = vunpack.c.l.b16 %v205
      %v335 = vunpack.c.h.b16 %v205
      %v336 = vunpack.c.l.b16 %v206
      %v337 = vunpack.c.h.b16 %v206
      %v338 = vunpack.c.l.b16 %v207
      %v339 = vunpack.c.h.b16 %v207
      %v340 = vunpack.c.l.b16 %v208
      %v341 = vunpack.c.h.b16 %v208
      %v342 = vunpack.c.l.b16 %v209
      %v343 = vunpack.c.h.b16 %v209
      %v344 = vunpack.c.l.b16 %v210
      %v345 = vunpack.c.h.b16 %v210
      %v346 = vunpack.c.l.b16 %v211
      %v347 = vunpack.c.h.b16 %v211
      %v348 = vunpack.c.l.b16 %v212
      %v349 = vunpack.c.h.b16 %v212
      %v350 = vunpack.c.l.b16 %v213
      %v351 = vunpack.c.h.b16 %v213
      %v352 = vunpack.c.l.b16 %v214
      %v353 = vunpack.c.h.b16 %v214
      %v354 = vunpack.c.l.b16 %v215
      %v355 = vunpack.c.h.b16 %v215
      %v356 = vunpack.c.l.b16 %v216
      %v357 = vunpack.c.h.b16 %v216
      %v358 = vunpack.c.l.b16 %v217
      %v359 = vunpack.c.h.b16 %v217
      %v360 = vunpack.c.l.b16 %v218
      %v361 = vunpack.c.h.b16 %v218
      %v362 = vunpack.c.l.b16 %v219
      %v363 = vunpack.c.h.b16 %v219
      %v364 = vunpack.c.l.b16 %v220
      %v365 = vunpack.c.h.b16 %v220
      %v366 = vunpack.c.l.b16 %v221
      %v367 = vunpack.c.h.b16 %v221
      %v368 = vunpack.c.l.b16 %v222
      %v369 = vunpack.c.h.b16 %v222
      %v370 = vunpack.c.l.b16 %v223
      %v371 = vunpack.c.h.b16 %v223
      %v372 = vunpack.c.l.b16 %v224
      %v373 = vunpack.c.h.b16 %v224
      %v374 = vunpack.c.l.b16 %v225
      %v375 = vunpack.c.h.b16 %v225
      %v376 = vunpack.c.l.b16 %v226
      %v377 = vunpack.c.h.b16 %v226
      %v378 = vunpack.c.l.b16 %v227
      %v379 = vunpack.c.h.b16 %v227
      %v380 = vunpack.c.l.b16 %v228
      %v381 = vunpack.c.h.b16 %v228
      %v382 = vunpack.c.l.b16 %v229
      %v383 = vunpack.c.h.b16 %v229
      %v384 = vunpack.c.l.b16 %v230
      %v385 = vunpack.c.h.b16 %v230
      %v386 = vunpack.c.l.b16 %v231
      %v387 = vunpack.c.h.b16 %v231
      %v388 = vunpack.c.l.b16 %v232
      %v389 = vunpack.c.h.b16 %v232
      %v390 = vunpack.c.l.b16 %v233
      %v391 = vunpack.c.h.b16 %v233
      %v392 = vunpack.c.l.b16 %v234
      %v393 = vunpack.c.h.b16 %v234
      %v394 = vunpack.c.l.b16 %v235
      %v395 = vunpack.c.h.b16 %v235
      %v396 = vunpack.c.l.b16 %v236
      %v397 = vunpack.c.h.b16 %v236
      %v398 = vunpack.c.l.b16 %v237
      %v399 = vunpack.c.h.b16 %v237
      %v400 = vunpack.c.l.b16 %v238
      %v401 = vunpack.c.h.b16 %v238
      %v402 = vunpack.c.l.b16 %v239
      %v403 = vunpack.c.h.b16 %v239
      %v404 = vunpack.c.l.b16 %v240
      %v405 = vunpack.c.h.b16 %v240
      %v406 = vunpack.c.l.b16 %v241
      %v407 = vunpack.c.h.b16 %v241
      %v408 = vunpack.c.l.b16 %v242
      %v409 = vunpack.c.h.b16 %v242
      %v410 = vunpack.c.l.b16 %v243
      %v411 = vunpack.c.h.b16 %v243
      %v412 = vunpack.c.l.b16 %v244
      %v413 = vunpack.c.h.b16 %v244
      %v414 = vunpack.c.l.b16 %v245
      %v415 = vunpack.c.h.b16 %v245
      %v416 = vunpack.c.l.b16 %v246
      %v417 = vunpack.c.h.b16 %v246
      %v418 = vunpack.c.l.b16 %v247
      %v419 = vunpack.c.h.b16 %v247
      %v420 = vunpack.c.l.b16 %v248
      %v421 = vunpack.c.h.b16 %v248
      %v422 = vunpack.c.l.b16 %v249
      %v423 = vunpack.c.h.b16 %v249
      %v424 = vunpack.c.l.b16 %v250
      %v425 = vunpack.c.h.b16 %v250
      %v426 = vunpack.c.l.b16 %v251
      %v427 = vunpack.c.h.b16 %v251
      %v428 = vunpack.c.l.b16 %v252
      %v429 = vunpack.c.h.b16 %v252
      %v430 = vunpack.c.l.b16 %v253
      %v431 = vunpack.c.h.b16 %v253
      %v432 = vunpack.c.l.b16 %v254
      %v433 = vunpack.c.h.b16 %v254
      %v434 = vpack.c.b16 %v344, %v326
      %v435 = vpack.c.b16 %v345, %v327
      %v436 = vpack.c.b16 %v346, %v328
      %v437 = vpack.c.b16 %v347, %v329
      %v438 = vpack.c.b16 %v348, %v330
      %v439 = vpack.c.b16 %v349, %v331
      %v440 = vpack.c.b16 %v350, %v332
      %v441 = vpack.c.b16 %v351, %v333
      %v442 = vpack.c.b16 %v352, %v334
      %v443 = vpack.c.b16 %v353, %v335
      %v444 = vpack.c.b16 %v354, %v336
      %v445 = vpack.c.b16 %v355, %v337
      %v446 = vpack.c.b16 %v356, %v338
      %v447 = vpack.c.b16 %v357, %v339
      %v448 = vpack.c.b16 %v358, %v340
      %v449 = vpack.c.b16 %v359, %v341
      %v450 = vpack.c.b16 %v360, %v342
      %v451 = vpack.c.b16 %v361, %v343
      %v452 = vpack.c.b16 %v380, %v362
      %v453 = vpack.c.b16 %v381, %v363
      %v454 = vpack.c.b16 %v382, %v364
      %v455 = vpack.c.b16 %v383, %v365
      %v456 = vpack.c.b16 %v384, %v366
      %v457 = vpack.c.b16 %v385, %v367
      %v458 = vpack.c.b16 %v386, %v368
      %v459 = vpack.c.b16 %v387, %v369
      %v460 = vpack.c.b16 %v388, %v370
      %v461 = vpack.c.b16 %v389, %v371
      %v462 = vpack.c.b16 %v390, %v372
      %v463 = vpack.c.b16 %v391, %v373
      %v464 = vpack.c.b16 %v392, %v374
      %v465 = vpack.c.b16 %v393, %v375
      %v466 = vpack.c.b16 %v394, %v376
      %v467 = vpack.c.b16 %v395, %v377
      %v468 = vpack.c.b16 %v396, %v378
      %v469 = vpack.c.b16 %v397, %v379
      %v470 = vpack.c.b16 %v416, %v398
      %v471 = vpack.c.b16 %v417, %v399
      %v472 = vpack.c.b16 %v418, %v400
      %v473 = vpack.c.b16 %v419, %v401
      %v474 = vpack.c.b16 %v420, %v402
      %v475 = vpack.c.b16 %v421, %v403
      %v476 = vpack.c.b16 %v422, %v404
      %v477 = vpack.c.b16 %v423, %v405
      %v478 = vpack.c.b16 %v424, %v406
      %v479 = vpack.c.b16 %v425, %v407
      %v480 = vpack.c.b16 %v426, %v408
      %v481 = vpack.c.b16 %v427, %v409
      %v482 = vpack.c.b16 %v428, %v410
      %v483 = vpack.c.b16 %v429, %v411
      %v484 = vpack.c.b16 %v430, %v412
      %v485 = vpack.c.b16 %v431, %v413
      %v486 = vpack.c.b16 %v432, %v414
      %v487 = vpack.c.b16 %v433, %v415
      %vm542 = vcmask 392192
      %v544 = vsel %vm542, %v271, 0
      %546 = vmatpush.bf16.msra.mxu0 0
      %547 = vmatpush.bf16.msra.mxu0 0
      %548 = vmatpush.bf16.msra.mxu0 0
      %549 = vmatpush.bf16.msra.mxu0 0
      %550 = vmatpush.bf16.msra.mxu0 0
      %551 = vmatpush.bf16.msra.mxu0 %v470
      %552 = vmatpush.bf16.msra.mxu0 %v452
      %553 = vmatpush.bf16.msra.mxu0 %v434
      %554 = vmatmul.bf16.gmra.mxu0 %v544
      %v555 = vpop.f32.mrf.mxu0
      %v556 = vadd.f32 %v260, %v555
      %v557 = vpop.f32.mrf.mxu0
      %v558 = vadd.f32 %v265, %v557
      %559 = vdwg.mxu0
      %560 = vmatpush.bf16.msra.mxu0 0
      %561 = vmatpush.bf16.msra.mxu0 0
      %562 = vmatpush.bf16.msra.mxu0 0
      %563 = vmatpush.bf16.msra.mxu0 0
      %564 = vmatpush.bf16.msra.mxu0 0
      %565 = vmatpush.bf16.msra.mxu0 %v471
      %566 = vmatpush.bf16.msra.mxu0 %v453
      %567 = vmatpush.bf16.msra.mxu0 %v435
      %568 = vmatmul.bf16.gmra.mxu0 %v544
      %v569 = vpop.f32.mrf.mxu0
      %v570 = vadd.f32 %v260, %v569
      %v571 = vpop.f32.mrf.mxu0
      %v572 = vadd.f32 %v265, %v571
      %573 = vdwg.mxu0
      %574 = vmatpush.bf16.msra.mxu0 0
      %575 = vmatpush.bf16.msra.mxu0 0
      %576 = vmatpush.bf16.msra.mxu0 0
      %577 = vmatpush.bf16.msra.mxu0 0
      %578 = vmatpush.bf16.msra.mxu0 0
      %579 = vmatpush.bf16.msra.mxu0 %v472
      %580 = vmatpush.bf16.msra.mxu0 %v454
      %581 = vmatpush.bf16.msra.mxu0 %v436
      %582 = vmatmul.bf16.gmra.mxu0 %v544
      %v583 = vpop.f32.mrf.mxu0
      %v584 = vadd.f32 %v260, %v583
      %v585 = vpop.f32.mrf.mxu0
      %v586 = vadd.f32 %v265, %v585
      %587 = vdwg.mxu0
      %588 = vmatpush.bf16.msra.mxu0 0
      %589 = vmatpush.bf16.msra.mxu0 0
      %590 = vmatpush.bf16.msra.mxu0 0
      %591 = vmatpush.bf16.msra.mxu0 0
      %592 = vmatpush.bf16.msra.mxu0 0
      %593 = vmatpush.bf16.msra.mxu0 %v473
      %594 = vmatpush.bf16.msra.mxu0 %v455
      %595 = vmatpush.bf16.msra.mxu0 %v437
      %596 = vmatmul.bf16.gmra.mxu0 %v544
      %v597 = vpop.f32.mrf.mxu0
      %v598 = vadd.f32 %v260, %v597
      %v599 = vpop.f32.mrf.mxu0
      %v600 = vadd.f32 %v265, %v599
      %601 = vdwg.mxu0
      %602 = vmatpush.bf16.msra.mxu0 0
      %603 = vmatpush.bf16.msra.mxu0 0
      %604 = vmatpush.bf16.msra.mxu0 0
      %605 = vmatpush.bf16.msra.mxu0 0
      %606 = vmatpush.bf16.msra.mxu0 0
      %607 = vmatpush.bf16.msra.mxu0 %v474
      %608 = vmatpush.bf16.msra.mxu0 %v456
      %609 = vmatpush.bf16.msra.mxu0 %v438
      %610 = vmatmul.bf16.gmra.mxu0 %v544
      %v611 = vpop.f32.mrf.mxu0
      %v612 = vadd.f32 %v260, %v611
      %v613 = vpop.f32.mrf.mxu0
      %v614 = vadd.f32 %v265, %v613
      %615 = vdwg.mxu0
      %616 = vmatpush.bf16.msra.mxu0 0
      %617 = vmatpush.bf16.msra.mxu0 0
      %618 = vmatpush.bf16.msra.mxu0 0
      %619 = vmatpush.bf16.msra.mxu0 0
      %620 = vmatpush.bf16.msra.mxu0 0
      %621 = vmatpush.bf16.msra.mxu0 %v475
      %622 = vmatpush.bf16.msra.mxu0 %v457
      %623 = vmatpush.bf16.msra.mxu0 %v439
      %624 = vmatmul.bf16.gmra.mxu0 %v544
      %v625 = vpop.f32.mrf.mxu0
      %v626 = vadd.f32 %v260, %v625
      %v627 = vpop.f32.mrf.mxu0
      %v628 = vadd.f32 %v265, %v627
      %629 = vdwg.mxu0
      %630 = vmatpush.bf16.msra.mxu0 0
      %631 = vmatpush.bf16.msra.mxu0 0
      %632 = vmatpush.bf16.msra.mxu0 0
      %633 = vmatpush.bf16.msra.mxu0 0
      %634 = vmatpush.bf16.msra.mxu0 0
      %635 = vmatpush.bf16.msra.mxu0 %v476
      %636 = vmatpush.bf16.msra.mxu0 %v458
      %637 = vmatpush.bf16.msra.mxu0 %v440
      %638 = vmatmul.bf16.gmra.mxu0 %v544
      %v639 = vpop.f32.mrf.mxu0
      %v640 = vadd.f32 %v260, %v639
      %v641 = vpop.f32.mrf.mxu0
      %v642 = vadd.f32 %v265, %v641
      %643 = vdwg.mxu0
      %644 = vmatpush.bf16.msra.mxu0 0
      %645 = vmatpush.bf16.msra.mxu0 0
      %646 = vmatpush.bf16.msra.mxu0 0
      %647 = vmatpush.bf16.msra.mxu0 0
      %648 = vmatpush.bf16.msra.mxu0 0
      %649 = vmatpush.bf16.msra.mxu0 %v477
      %650 = vmatpush.bf16.msra.mxu0 %v459
      %651 = vmatpush.bf16.msra.mxu0 %v441
      %652 = vmatmul.bf16.gmra.mxu0 %v544
      %v653 = vpop.f32.mrf.mxu0
      %v654 = vadd.f32 %v260, %v653
      %v655 = vpop.f32.mrf.mxu0
      %v656 = vadd.f32 %v265, %v655
      %657 = vdwg.mxu0
      %658 = vmatpush.bf16.msra.mxu0 0
      %659 = vmatpush.bf16.msra.mxu0 0
      %660 = vmatpush.bf16.msra.mxu0 0
      %661 = vmatpush.bf16.msra.mxu0 0
      %662 = vmatpush.bf16.msra.mxu0 0
      %663 = vmatpush.bf16.msra.mxu0 %v478
      %664 = vmatpush.bf16.msra.mxu0 %v460
      %665 = vmatpush.bf16.msra.mxu0 %v442
      %666 = vmatmul.bf16.gmra.mxu0 %v544
      %v667 = vpop.f32.mrf.mxu0
      %v668 = vadd.f32 %v260, %v667
      %v669 = vpop.f32.mrf.mxu0
      %v670 = vadd.f32 %v265, %v669
      %671 = vdwg.mxu0
      %672 = vmatpush.bf16.msra.mxu0 0
      %673 = vmatpush.bf16.msra.mxu0 0
      %674 = vmatpush.bf16.msra.mxu0 0
      %675 = vmatpush.bf16.msra.mxu0 0
      %676 = vmatpush.bf16.msra.mxu0 0
      %677 = vmatpush.bf16.msra.mxu0 %v479
      %678 = vmatpush.bf16.msra.mxu0 %v461
      %679 = vmatpush.bf16.msra.mxu0 %v443
      %680 = vmatmul.bf16.gmra.mxu0 %v544
      %v681 = vpop.f32.mrf.mxu0
      %v682 = vadd.f32 %v260, %v681
      %v683 = vpop.f32.mrf.mxu0
      %v684 = vadd.f32 %v265, %v683
      %685 = vdwg.mxu0
      %686 = vmatpush.bf16.msra.mxu0 0
      %687 = vmatpush.bf16.msra.mxu0 0
      %688 = vmatpush.bf16.msra.mxu0 0
      %689 = vmatpush.bf16.msra.mxu0 0
      %690 = vmatpush.bf16.msra.mxu0 0
      %691 = vmatpush.bf16.msra.mxu0 %v480
      %692 = vmatpush.bf16.msra.mxu0 %v462
      %693 = vmatpush.bf16.msra.mxu0 %v444
      %694 = vmatmul.bf16.gmra.mxu0 %v544
      %v695 = vpop.f32.mrf.mxu0
      %v696 = vadd.f32 %v260, %v695
      %v697 = vpop.f32.mrf.mxu0
      %v698 = vadd.f32 %v265, %v697
      %699 = vdwg.mxu0
      %700 = vmatpush.bf16.msra.mxu0 0
      %701 = vmatpush.bf16.msra.mxu0 0
      %702 = vmatpush.bf16.msra.mxu0 0
      %703 = vmatpush.bf16.msra.mxu0 0
      %704 = vmatpush.bf16.msra.mxu0 0
      %705 = vmatpush.bf16.msra.mxu0 %v481
      %706 = vmatpush.bf16.msra.mxu0 %v463
      %707 = vmatpush.bf16.msra.mxu0 %v445
      %708 = vmatmul.bf16.gmra.mxu0 %v544
      %v709 = vpop.f32.mrf.mxu0
      %v710 = vadd.f32 %v260, %v709
      %v711 = vpop.f32.mrf.mxu0
      %v712 = vadd.f32 %v265, %v711
      %713 = vdwg.mxu0
      %714 = vmatpush.bf16.msra.mxu0 0
      %715 = vmatpush.bf16.msra.mxu0 0
      %716 = vmatpush.bf16.msra.mxu0 0
      %717 = vmatpush.bf16.msra.mxu0 0
      %718 = vmatpush.bf16.msra.mxu0 0
      %719 = vmatpush.bf16.msra.mxu0 %v482
      %720 = vmatpush.bf16.msra.mxu0 %v464
      %721 = vmatpush.bf16.msra.mxu0 %v446
      %722 = vmatmul.bf16.gmra.mxu0 %v544
      %v723 = vpop.f32.mrf.mxu0
      %v724 = vadd.f32 %v260, %v723
      %v725 = vpop.f32.mrf.mxu0
      %v726 = vadd.f32 %v265, %v725
      %727 = vdwg.mxu0
      %728 = vmatpush.bf16.msra.mxu0 0
      %729 = vmatpush.bf16.msra.mxu0 0
      %730 = vmatpush.bf16.msra.mxu0 0
      %731 = vmatpush.bf16.msra.mxu0 0
      %732 = vmatpush.bf16.msra.mxu0 0
      %733 = vmatpush.bf16.msra.mxu0 %v483
      %734 = vmatpush.bf16.msra.mxu0 %v465
      %735 = vmatpush.bf16.msra.mxu0 %v447
      %736 = vmatmul.bf16.gmra.mxu0 %v544
      %v737 = vpop.f32.mrf.mxu0
      %v738 = vadd.f32 %v260, %v737
      %v739 = vpop.f32.mrf.mxu0
      %v740 = vadd.f32 %v265, %v739
      %741 = vdwg.mxu0
      %742 = vmatpush.bf16.msra.mxu0 0
      %743 = vmatpush.bf16.msra.mxu0 0
      %744 = vmatpush.bf16.msra.mxu0 0
      %745 = vmatpush.bf16.msra.mxu0 0
      %746 = vmatpush.bf16.msra.mxu0 0
      %747 = vmatpush.bf16.msra.mxu0 %v484
      %748 = vmatpush.bf16.msra.mxu0 %v466
      %749 = vmatpush.bf16.msra.mxu0 %v448
      %750 = vmatmul.bf16.gmra.mxu0 %v544
      %v751 = vpop.f32.mrf.mxu0
      %v752 = vadd.f32 %v260, %v751
      %v753 = vpop.f32.mrf.mxu0
      %v754 = vadd.f32 %v265, %v753
      %755 = vdwg.mxu0
      %756 = vmatpush.bf16.msra.mxu0 0
      %757 = vmatpush.bf16.msra.mxu0 0
      %758 = vmatpush.bf16.msra.mxu0 0
      %759 = vmatpush.bf16.msra.mxu0 0
      %760 = vmatpush.bf16.msra.mxu0 0
      %761 = vmatpush.bf16.msra.mxu0 %v485
      %762 = vmatpush.bf16.msra.mxu0 %v467
      %763 = vmatpush.bf16.msra.mxu0 %v449
      %764 = vmatmul.bf16.gmra.mxu0 %v544
      %v765 = vpop.f32.mrf.mxu0
      %v766 = vadd.f32 %v260, %v765
      %v767 = vpop.f32.mrf.mxu0
      %v768 = vadd.f32 %v265, %v767
      %769 = vdwg.mxu0
      %770 = vmatpush.bf16.msra.mxu0 0
      %771 = vmatpush.bf16.msra.mxu0 0
      %772 = vmatpush.bf16.msra.mxu0 0
      %773 = vmatpush.bf16.msra.mxu0 0
      %774 = vmatpush.bf16.msra.mxu0 0
      %775 = vmatpush.bf16.msra.mxu0 %v486
      %776 = vmatpush.bf16.msra.mxu0 %v468
      %777 = vmatpush.bf16.msra.mxu0 %v450
      %778 = vmatmul.bf16.gmra.mxu0 %v544
      %v779 = vpop.f32.mrf.mxu0
      %v780 = vadd.f32 %v260, %v779
      %v781 = vpop.f32.mrf.mxu0
      %v782 = vadd.f32 %v265, %v781
      %783 = vdwg.mxu0
      %784 = vmatpush.bf16.msra.mxu0 0
      %785 = vmatpush.bf16.msra.mxu0 0
      %786 = vmatpush.bf16.msra.mxu0 0
      %787 = vmatpush.bf16.msra.mxu0 0
      %788 = vmatpush.bf16.msra.mxu0 0
      %789 = vmatpush.bf16.msra.mxu0 %v487
      %790 = vmatpush.bf16.msra.mxu0 %v469
      %791 = vmatpush.bf16.msra.mxu0 %v451
      %792 = vmatmul.bf16.gmra.mxu0 %v544
      %v793 = vpop.f32.mrf.mxu0
      %v794 = vadd.f32 %v260, %v793
      %v795 = vpop.f32.mrf.mxu0
      %v796 = vadd.f32 %v265, %v795
      %797 = vdwg.mxu0
      %v798 = vmax.f32 %v556, 0.0
      %v799 = vmax.f32 %v570, 0.0
      %v800 = vmax.f32 %v584, 0.0
      %v801 = vmax.f32 %v598, 0.0
      %v802 = vmax.f32 %v612, 0.0
      %v803 = vmax.f32 %v626, 0.0
      %v804 = vmax.f32 %v640, 0.0
      %v805 = vmax.f32 %v654, 0.0
      %v806 = vmax.f32 %v668, 0.0
      %v807 = vmax.f32 %v682, 0.0
      %v808 = vmax.f32 %v696, 0.0
      %v809 = vmax.f32 %v710, 0.0
      %v810 = vmax.f32 %v724, 0.0
      %v811 = vmax.f32 %v738, 0.0
      %v812 = vmax.f32 %v752, 0.0
      %v813 = vmax.f32 %v766, 0.0
      %v814 = vmax.f32 %v780, 0.0
      %v815 = vmax.f32 %v794, 0.0
      %v816 = vmax.f32 %v558, 0.0
      %v817 = vmax.f32 %v572, 0.0
      %v818 = vmax.f32 %v586, 0.0
      %v819 = vmax.f32 %v600, 0.0
      %v820 = vmax.f32 %v614, 0.0
      %v821 = vmax.f32 %v628, 0.0
      %v822 = vmax.f32 %v642, 0.0
      %v823 = vmax.f32 %v656, 0.0
      %v824 = vmax.f32 %v670, 0.0
      %v825 = vmax.f32 %v684, 0.0
      %v826 = vmax.f32 %v698, 0.0
      %v827 = vmax.f32 %v712, 0.0
      %v828 = vmax.f32 %v726, 0.0
      %v829 = vmax.f32 %v740, 0.0
      %v830 = vmax.f32 %v754, 0.0
      %v831 = vmax.f32 %v768, 0.0
      %v832 = vmax.f32 %v782, 0.0
      %v833 = vmax.f32 %v796, 0.0
      %v834 = vpack.c.bf16 %v816, %v798
      %v835 = vpack.c.bf16 %v817, %v799
      %v836 = vpack.c.bf16 %v818, %v800
      %v837 = vpack.c.bf16 %v819, %v801
      %v838 = vpack.c.bf16 %v820, %v802
      %v839 = vpack.c.bf16 %v821, %v803
      %v840 = vpack.c.bf16 %v822, %v804
      %v841 = vpack.c.bf16 %v823, %v805
      %v842 = vpack.c.bf16 %v824, %v806
      %v843 = vpack.c.bf16 %v825, %v807
      %v844 = vpack.c.bf16 %v826, %v808
      %v845 = vpack.c.bf16 %v827, %v809
      %v846 = vpack.c.bf16 %v828, %v810
      %v847 = vpack.c.bf16 %v829, %v811
      %v848 = vpack.c.bf16 %v830, %v812
      %v849 = vpack.c.bf16 %v831, %v813
      %v850 = vpack.c.bf16 %v832, %v814
      %v851 = vpack.c.bf16 %v833, %v815
      %v852 = vld [vmem:[%s3] sm:$0xf]
      %v853 = vld [vmem:[%s3 + $0x4] sm:$0xf]
      %v854 = vld [vmem:[%s3 + $0x8] sm:$0xf]
      %v855 = vld [vmem:[%s3 + $0xc] sm:$0xf]
      %v856 = vld [vmem:[%s3 + $0x10] sm:$0xf]
      %v857 = vld [vmem:[%s3 + $0x14] sm:$0xf]
      %v858 = vld [vmem:[%s3 + $0x18] sm:$0xf]
      %v859 = vld [vmem:[%s3 + $0x1c] sm:$0xf]
      %v860 = vld [vmem:[%s3 + $0x20] sm:$0xf]
      %v861 = vld [vmem:[%s3 + $0x24] sm:$0xf]
      %v862 = vld [vmem:[%s3 + $0x28] sm:$0xf]
      %v863 = vld [vmem:[%s3 + $0x2c] sm:$0xf]
      %v864 = vld [vmem:[%s3 + $0x30] sm:$0xf]
      %v865 = vld [vmem:[%s3 + $0x34] sm:$0xf]
      %v866 = vld [vmem:[%s3 + $0x38] sm:$0xf]
      %v867 = vld [vmem:[%s3 + $0x3c] sm:$0xf]
      %v868 = vld [vmem:[%s3 + $0x40] sm:$0xf]
      %v869 = vld [vmem:[%s3 + $0x44] sm:$0xf]
      %v870 = vld [vmem:[%s3 + $0x48] sm:$0xf]
      %v871 = vld [vmem:[%s3 + $0x4c] sm:$0xf]
      %v872 = vld [vmem:[%s3 + $0x50] sm:$0xf]
      %v873 = vld [vmem:[%s3 + $0x54] sm:$0xf]
      %v874 = vld [vmem:[%s3 + $0x58] sm:$0xf]
      %v875 = vld [vmem:[%s3 + $0x5c] sm:$0xf]
      %v876 = vld [vmem:[%s3 + $0x60] sm:$0xf]
      %v877 = vld [vmem:[%s3 + $0x64] sm:$0xf]
      %v878 = vld [vmem:[%s3 + $0x68] sm:$0xf]
      %v879 = vld [vmem:[%s3 + $0x6c] sm:$0xf]
      %v880 = vld [vmem:[%s3 + $0x70] sm:$0xf]
      %v881 = vld [vmem:[%s3 + $0x74] sm:$0xf]
      %v882 = vld [vmem:[%s3 + $0x78] sm:$0xf]
      %v883 = vld [vmem:[%s3 + $0x7c] sm:$0xf]
      %v884 = vld [vmem:[%s3 + $0x80] sm:$0xf]
      %v885 = vld [vmem:[%s3 + $0x84] sm:$0xf]
      %v886 = vld [vmem:[%s3 + $0x88] sm:$0xf]
      %v887 = vld [vmem:[%s3 + $0x8c] sm:$0xf]
      %v888 = vld [vmem:[%s3 + $0x90] sm:$0xf]
      %v889 = vld [vmem:[%s3 + $0x94] sm:$0xf]
      %v890 = vld [vmem:[%s3 + $0x98] sm:$0xf]
      %v891 = vld [vmem:[%s3 + $0x9c] sm:$0xf]
      %v892 = vld [vmem:[%s3 + $0xa0] sm:$0xf]
      %v893 = vld [vmem:[%s3 + $0xa4] sm:$0xf]
      %v894 = vld [vmem:[%s3 + $0xa8] sm:$0xf]
      %v895 = vld [vmem:[%s3 + $0xac] sm:$0xf]
      %v896 = vld [vmem:[%s3 + $0xb0] sm:$0xf]
      %v897 = vld [vmem:[%s3 + $0xb4] sm:$0xf]
      %v898 = vld [vmem:[%s3 + $0xb8] sm:$0xf]
      %v899 = vld [vmem:[%s3 + $0xbc] sm:$0xf]
      %v900 = vld [vmem:[%s3 + $0xc0] sm:$0xf]
      %v901 = vld [vmem:[%s3 + $0xc4] sm:$0xf]
      %v902 = vld [vmem:[%s3 + $0xc8] sm:$0xf]
      %v903 = vld [vmem:[%s3 + $0xcc] sm:$0xf]
      %v904 = vld [vmem:[%s3 + $0xd0] sm:$0xf]
      %v905 = vld [vmem:[%s3 + $0xd4] sm:$0xf]
      %v906 = vld [vmem:[%s3 + $0xd8] sm:$0xf]
      %v907 = vld [vmem:[%s3 + $0xdc] sm:$0xf]
      %v908 = vld [vmem:[%s3 + $0xe0] sm:$0xf]
      %v909 = vld [vmem:[%s3 + $0xe4] sm:$0xf]
      %v910 = vld [vmem:[%s3 + $0xe8] sm:$0xf]
      %v911 = vld [vmem:[%s3 + $0xec] sm:$0xf]
      %v912 = vld [vmem:[%s3 + $0xf0] sm:$0xf]
      %v913 = vld [vmem:[%s3 + $0xf4] sm:$0xf]
      %v914 = vld [vmem:[%s3 + $0xf8] sm:$0xf]
      %v915 = vld [vmem:[%s3 + $0xfc] sm:$0xf]
      %v916 = vld [vmem:[%s3 + $0x100] sm:$0xf]
      %v917 = vld [vmem:[%s3 + $0x104] sm:$0xf]
      %v918 = vld [vmem:[%s3 + $0x108] sm:$0xf]
      %v919 = vld [vmem:[%s3 + $0x10c] sm:$0xf]
      %v920 = vld [vmem:[%s3 + $0x110] sm:$0xf]
      %v921 = vld [vmem:[%s3 + $0x114] sm:$0xf]
      %v922 = vld [vmem:[%s3 + $0x118] sm:$0xf]
      %v923 = vld [vmem:[%s3 + $0x11c] sm:$0xf]
      %v924 = vld [vmem:[%s3 + $0x120] sm:$0xf]
      %v925 = vld [vmem:[%s3 + $0x124] sm:$0xf]
      %v926 = vld [vmem:[%s3 + $0x128] sm:$0xf]
      %v927 = vld [vmem:[%s3 + $0x12c] sm:$0xf]
      %v928 = vld [vmem:[%s3 + $0x130] sm:$0xf]
      %v929 = vld [vmem:[%s3 + $0x134] sm:$0xf]
      %v930 = vld [vmem:[%s3 + $0x138] sm:$0xf]
      %v931 = vld [vmem:[%s3 + $0x13c] sm:$0xf]
      %v932 = vld [vmem:[%s3 + $0x140] sm:$0xf]
      %v933 = vld [vmem:[%s3 + $0x144] sm:$0xf]
      %v934 = vld [vmem:[%s3 + $0x148] sm:$0xf]
      %v935 = vld [vmem:[%s3 + $0x14c] sm:$0xf]
      %v936 = vld [vmem:[%s3 + $0x150] sm:$0xf]
      %v937 = vld [vmem:[%s3 + $0x154] sm:$0xf]
      %v938 = vld [vmem:[%s3 + $0x158] sm:$0xf]
      %v939 = vld [vmem:[%s3 + $0x15c] sm:$0xf]
      %v940 = vld [vmem:[%s3 + $0x160] sm:$0xf]
      %v941 = vld [vmem:[%s3 + $0x164] sm:$0xf]
      %v942 = vld [vmem:[%s3 + $0x168] sm:$0xf]
      %v943 = vld [vmem:[%s3 + $0x16c] sm:$0xf]
      %v944 = vld [vmem:[%s3 + $0x170] sm:$0xf]
      %v945 = vld [vmem:[%s3 + $0x174] sm:$0xf]
      %v946 = vld [vmem:[%s3 + $0x178] sm:$0xf]
      %v947 = vld [vmem:[%s3 + $0x17c] sm:$0xf]
      %v948 = vld [vmem:[%s3 + $0x180] sm:$0xf]
      %v949 = vld [vmem:[%s3 + $0x184] sm:$0xf]
      %v950 = vld [vmem:[%s3 + $0x188] sm:$0xf]
      %v951 = vld [vmem:[%s3 + $0x18c] sm:$0xf]
      %v952 = vld [vmem:[%s3 + $0x190] sm:$0xf]
      %v953 = vld [vmem:[%s3 + $0x194] sm:$0xf]
      %v954 = vld [vmem:[%s3 + $0x198] sm:$0xf]
      %v955 = vld [vmem:[%s3 + $0x19c] sm:$0xf]
      %v956 = vld [vmem:[%s3 + $0x1a0] sm:$0xf]
      %v957 = vld [vmem:[%s3 + $0x1a4] sm:$0xf]
      %v958 = vld [vmem:[%s3 + $0x1a8] sm:$0xf]
      %v959 = vld [vmem:[%s3 + $0x1ac] sm:$0xf]
      %v960 = vld [vmem:[%s3 + $0x1b0] sm:$0xf]
      %v961 = vld [vmem:[%s3 + $0x1b4] sm:$0xf]
      %v962 = vld [vmem:[%s3 + $0x1b8] sm:$0xf]
      %v963 = vld [vmem:[%s3 + $0x1bc] sm:$0xf]
      %v964 = vld [vmem:[%s3 + $0x1c0] sm:$0xf]
      %v965 = vld [vmem:[%s3 + $0x1c4] sm:$0xf]
      %v966 = vld [vmem:[%s3 + $0x1c8] sm:$0xf]
      %v967 = vld [vmem:[%s3 + $0x1cc] sm:$0xf]
      %v968 = vld [vmem:[%s3 + $0x1d0] sm:$0xf]
      %v969 = vld [vmem:[%s3 + $0x1d4] sm:$0xf]
      %v970 = vld [vmem:[%s3 + $0x1d8] sm:$0xf]
      %v971 = vld [vmem:[%s3 + $0x1dc] sm:$0xf]
      %v972 = vld [vmem:[%s3 + $0x1e0] sm:$0xf]
      %v973 = vld [vmem:[%s3 + $0x1e4] sm:$0xf]
      %v974 = vld [vmem:[%s3 + $0x1e8] sm:$0xf]
      %v975 = vld [vmem:[%s3 + $0x1ec] sm:$0xf]
      %v976 = vld [vmem:[%s3 + $0x1f0] sm:$0xf]
      %v977 = vld [vmem:[%s3 + $0x1f4] sm:$0xf]
      %v978 = vld [vmem:[%s3 + $0x1f8] sm:$0xf]
      %v979 = vld [vmem:[%s3 + $0x1fc] sm:$0xf]
      %v980 = vld [vmem:[%s3 + $0x200] sm:$0xf]
      %v981 = vld [vmem:[%s3 + $0x204] sm:$0xf]
      %v982 = vld [vmem:[%s3 + $0x208] sm:$0xf]
      %v983 = vld [vmem:[%s3 + $0x20c] sm:$0xf]
      %v984 = vld [vmem:[%s3 + $0x210] sm:$0xf]
      %v985 = vld [vmem:[%s3 + $0x214] sm:$0xf]
      %v986 = vld [vmem:[%s3 + $0x218] sm:$0xf]
      %v987 = vld [vmem:[%s3 + $0x21c] sm:$0xf]
      %v988 = vld [vmem:[%s3 + $0x220] sm:$0xf]
      %v989 = vld [vmem:[%s3 + $0x224] sm:$0xf]
      %v990 = vld [vmem:[%s3 + $0x228] sm:$0xf]
      %v991 = vld [vmem:[%s3 + $0x22c] sm:$0xf]
      %v992 = vld [vmem:[%s3 + $0x230] sm:$0xf]
      %v993 = vld [vmem:[%s3 + $0x234] sm:$0xf]
      %v994 = vld [vmem:[%s3 + $0x238] sm:$0xf]
      %v995 = vld [vmem:[%s3 + $0x23c] sm:$0xf]
      %v996 = vld [vmem:[%s3 + $0x240] sm:$0xf]
      %v997 = vld [vmem:[%s3 + $0x244] sm:$0xf]
      %v998 = vld [vmem:[%s3 + $0x248] sm:$0xf]
      %v999 = vld [vmem:[%s3 + $0x24c] sm:$0xf]
      %v1000 = vld [vmem:[%s3 + $0x250] sm:$0xf]
      %v1001 = vld [vmem:[%s3 + $0x254] sm:$0xf]
      %v1002 = vld [vmem:[%s3 + $0x258] sm:$0xf]
      %v1003 = vld [vmem:[%s3 + $0x25c] sm:$0xf]
      %v1004 = vld [vmem:[%s3 + $0x260] sm:$0xf]
      %v1005 = vld [vmem:[%s3 + $0x264] sm:$0xf]
      %v1006 = vld [vmem:[%s3 + $0x268] sm:$0xf]
      %v1007 = vld [vmem:[%s3 + $0x26c] sm:$0xf]
      %v1008 = vld [vmem:[%s3 + $0x270] sm:$0xf]
      %v1009 = vld [vmem:[%s3 + $0x274] sm:$0xf]
      %v1010 = vld [vmem:[%s3 + $0x278] sm:$0xf]
      %v1011 = vld [vmem:[%s3 + $0x27c] sm:$0xf]
      %v1012 = vld [vmem:[%s3 + $0x280] sm:$0xf]
      %v1013 = vld [vmem:[%s3 + $0x284] sm:$0xf]
      %v1014 = vld [vmem:[%s3 + $0x288] sm:$0xf]
      %v1015 = vld [vmem:[%s3 + $0x28c] sm:$0xf]
      %v1016 = vld [vmem:[%s3 + $0x290] sm:$0xf]
      %v1017 = vld [vmem:[%s3 + $0x294] sm:$0xf]
      %v1018 = vld [vmem:[%s3 + $0x298] sm:$0xf]
      %v1019 = vld [vmem:[%s3 + $0x29c] sm:$0xf]
      %v1020 = vld [vmem:[%s3 + $0x2a0] sm:$0xf]
      %v1021 = vld [vmem:[%s3 + $0x2a4] sm:$0xf]
      %v1022 = vld [vmem:[%s3 + $0x2a8] sm:$0xf]
      %v1023 = vld [vmem:[%s3 + $0x2ac] sm:$0xf]
      %v1024 = vld [vmem:[%s3 + $0x2b0] sm:$0xf]
      %v1025 = vld [vmem:[%s3 + $0x2b4] sm:$0xf]
      %v1026 = vld [vmem:[%s3 + $0x2b8] sm:$0xf]
      %v1027 = vld [vmem:[%s3 + $0x2bc] sm:$0xf]
      %v1028 = vld [vmem:[%s3 + $0x2c0] sm:$0xf]
      %v1029 = vld [vmem:[%s3 + $0x2c4] sm:$0xf]
      %v1030 = vld [vmem:[%s3 + $0x2c8] sm:$0xf]
      %v1031 = vld [vmem:[%s3 + $0x2cc] sm:$0xf]
      %v1032 = vld [vmem:[%s3 + $0x2d0] sm:$0xf]
      %v1033 = vld [vmem:[%s3 + $0x2d4] sm:$0xf]
      %v1034 = vld [vmem:[%s3 + $0x2d8] sm:$0xf]
      %v1035 = vld [vmem:[%s3 + $0x2dc] sm:$0xf]
      %v1036 = vld [vmem:[%s3 + $0x2e0] sm:$0xf]
      %v1037 = vld [vmem:[%s3 + $0x2e4] sm:$0xf]
      %v1038 = vld [vmem:[%s3 + $0x2e8] sm:$0xf]
      %v1039 = vld [vmem:[%s3 + $0x2ec] sm:$0xf]
      %v1040 = vld [vmem:[%s3 + $0x2f0] sm:$0xf]
      %v1041 = vld [vmem:[%s3 + $0x2f4] sm:$0xf]
      %v1042 = vld [vmem:[%s3 + $0x2f8] sm:$0xf]
      %v1043 = vld [vmem:[%s3 + $0x2fc] sm:$0xf]
      %v1044 = vld [vmem:[%s3 + $0x300] sm:$0xf]
      %v1045 = vld [vmem:[%s3 + $0x304] sm:$0xf]
      %v1046 = vld [vmem:[%s3 + $0x308] sm:$0xf]
      %v1047 = vld [vmem:[%s3 + $0x30c] sm:$0xf]
      %v1048 = vld [vmem:[%s3 + $0x310] sm:$0xf]
      %v1049 = vld [vmem:[%s3 + $0x314] sm:$0xf]
      %v1050 = vld [vmem:[%s3 + $0x318] sm:$0xf]
      %v1051 = vld [vmem:[%s3 + $0x31c] sm:$0xf]
      %v1052 = vld [vmem:[%s3 + $0x320] sm:$0xf]
      %v1053 = vld [vmem:[%s3 + $0x324] sm:$0xf]
      %v1054 = vld [vmem:[%s3 + $0x328] sm:$0xf]
      %v1055 = vld [vmem:[%s3 + $0x32c] sm:$0xf]
      %v1056 = vld [vmem:[%s3 + $0x330] sm:$0xf]
      %v1057 = vld [vmem:[%s3 + $0x334] sm:$0xf]
      %v1058 = vld [vmem:[%s3 + $0x338] sm:$0xf]
      %v1059 = vld [vmem:[%s3 + $0x33c] sm:$0xf]
      %v1060 = vld [vmem:[%s3 + $0x340] sm:$0xf]
      %v1061 = vld [vmem:[%s3 + $0x344] sm:$0xf]
      %v1062 = vld [vmem:[%s3 + $0x348] sm:$0xf]
      %v1063 = vld [vmem:[%s3 + $0x34c] sm:$0xf]
      %v1064 = vld [vmem:[%s3 + $0x350] sm:$0xf]
      %v1065 = vld [vmem:[%s3 + $0x354] sm:$0xf]
      %v1066 = vld [vmem:[%s3 + $0x358] sm:$0xf]
      %v1067 = vld [vmem:[%s3 + $0x35c] sm:$0xf]
      %v1068 = vld [vmem:[%s3 + $0x360] sm:$0xf]
      %v1069 = vld [vmem:[%s3 + $0x364] sm:$0xf]
      %v1070 = vld [vmem:[%s3 + $0x368] sm:$0xf]
      %v1071 = vld [vmem:[%s3 + $0x36c] sm:$0xf]
      %v1072 = vld [vmem:[%s3 + $0x370] sm:$0xf]
      %v1073 = vld [vmem:[%s3 + $0x374] sm:$0xf]
      %v1074 = vld [vmem:[%s3 + $0x378] sm:$0xf]
      %v1075 = vld [vmem:[%s3 + $0x37c] sm:$0xf]
      %v1076 = vld [vmem:[%s3 + $0x380] sm:$0xf]
      %v1077 = vld [vmem:[%s3 + $0x384] sm:$0xf]
      %v1078 = vld [vmem:[%s3 + $0x388] sm:$0xf]
      %v1079 = vld [vmem:[%s3 + $0x38c] sm:$0xf]
      %v1080 = vld [vmem:[%s3 + $0x390] sm:$0xf]
      %v1081 = vld [vmem:[%s3 + $0x394] sm:$0xf]
      %v1082 = vld [vmem:[%s3 + $0x398] sm:$0xf]
      %v1083 = vld [vmem:[%s3 + $0x39c] sm:$0xf]
      %v1084 = vld [vmem:[%s3 + $0x3a0] sm:$0xf]
      %v1085 = vld [vmem:[%s3 + $0x3a4] sm:$0xf]
      %v1086 = vld [vmem:[%s3 + $0x3a8] sm:$0xf]
      %v1087 = vld [vmem:[%s3 + $0x3ac] sm:$0xf]
      %v1088 = vld [vmem:[%s3 + $0x3b0] sm:$0xf]
      %v1089 = vld [vmem:[%s3 + $0x3b4] sm:$0xf]
      %v1090 = vld [vmem:[%s3 + $0x3b8] sm:$0xf]
      %v1091 = vld [vmem:[%s3 + $0x3bc] sm:$0xf]
      %v1092 = vld [vmem:[%s3 + $0x3c0] sm:$0xf]
      %v1093 = vld [vmem:[%s3 + $0x3c4] sm:$0xf]
      %v1094 = vld [vmem:[%s3 + $0x3c8] sm:$0xf]
      %v1095 = vld [vmem:[%s3 + $0x3cc] sm:$0xf]
      %v1096 = vld [vmem:[%s3 + $0x3d0] sm:$0xf]
      %v1097 = vld [vmem:[%s3 + $0x3d4] sm:$0xf]
      %v1098 = vld [vmem:[%s3 + $0x3d8] sm:$0xf]
      %v1099 = vld [vmem:[%s3 + $0x3dc] sm:$0xf]
      %v1100 = vld [vmem:[%s3 + $0x3e0] sm:$0xf]
      %v1101 = vld [vmem:[%s3 + $0x3e4] sm:$0xf]
      %v1102 = vld [vmem:[%s3 + $0x3e8] sm:$0xf]
      %v1103 = vld [vmem:[%s3 + $0x3ec] sm:$0xf]
      %v1104 = vld [vmem:[%s3 + $0x3f0] sm:$0xf]
      %v1105 = vld [vmem:[%s3 + $0x3f4] sm:$0xf]
      %v1106 = vld [vmem:[%s3 + $0x3f8] sm:$0xf]
      %v1107 = vld [vmem:[%s3 + $0x3fc] sm:$0xf]
      %v1108 = vld [vmem:[%s3 + $0x400] sm:$0xf]
      %v1109 = vld [vmem:[%s3 + $0x404] sm:$0xf]
      %v1110 = vld [vmem:[%s3 + $0x408] sm:$0xf]
      %v1111 = vld [vmem:[%s3 + $0x40c] sm:$0xf]
      %v1112 = vld [vmem:[%s3 + $0x410] sm:$0xf]
      %v1113 = vld [vmem:[%s3 + $0x414] sm:$0xf]
      %v1114 = vld [vmem:[%s3 + $0x418] sm:$0xf]
      %v1115 = vld [vmem:[%s3 + $0x41c] sm:$0xf]
      %v1116 = vld [vmem:[%s3 + $0x420] sm:$0xf]
      %v1117 = vld [vmem:[%s3 + $0x424] sm:$0xf]
      %v1118 = vld [vmem:[%s3 + $0x428] sm:$0xf]
      %v1119 = vld [vmem:[%s3 + $0x42c] sm:$0xf]
      %v1120 = vld [vmem:[%s3 + $0x430] sm:$0xf]
      %v1121 = vld [vmem:[%s3 + $0x434] sm:$0xf]
      %v1122 = vld [vmem:[%s3 + $0x438] sm:$0xf]
      %v1123 = vld [vmem:[%s3 + $0x43c] sm:$0xf]
      %v1124 = vld [vmem:[%s3 + $0x440] sm:$0xf]
      %v1125 = vld [vmem:[%s3 + $0x444] sm:$0xf]
      %v1126 = vld [vmem:[%s3 + $0x448] sm:$0xf]
      %v1127 = vld [vmem:[%s3 + $0x44c] sm:$0xf]
      %v1128 = vld [vmem:[%s3 + $0x450] sm:$0xf]
      %v1129 = vld [vmem:[%s3 + $0x454] sm:$0xf]
      %v1130 = vld [vmem:[%s3 + $0x458] sm:$0xf]
      %v1131 = vld [vmem:[%s3 + $0x45c] sm:$0xf]
      %v1132 = vld [vmem:[%s3 + $0x460] sm:$0xf]
      %v1133 = vld [vmem:[%s3 + $0x464] sm:$0xf]
      %v1134 = vld [vmem:[%s3 + $0x468] sm:$0xf]
      %v1135 = vld [vmem:[%s3 + $0x46c] sm:$0xf]
      %v1136 = vld [vmem:[%s3 + $0x470] sm:$0xf]
      %v1137 = vld [vmem:[%s3 + $0x474] sm:$0xf]
      %v1138 = vld [vmem:[%s3 + $0x478] sm:$0xf]
      %v1139 = vld [vmem:[%s3 + $0x47c] sm:$0xf]
      %v1428 = vunpack.c.l.b16 %v852
      %v1429 = vunpack.c.l.b16 %v853
      %v1430 = vunpack.c.l.b16 %v854
      %v1431 = vunpack.c.l.b16 %v855
      %v1432 = vunpack.c.l.b16 %v856
      %v1433 = vunpack.c.l.b16 %v857
      %v1434 = vunpack.c.l.b16 %v858
      %v1435 = vunpack.c.l.b16 %v859
      %v1436 = vunpack.c.l.b16 %v860
      %v1437 = vunpack.c.l.b16 %v861
      %v1438 = vunpack.c.l.b16 %v862
      %v1439 = vunpack.c.l.b16 %v863
      %v1440 = vunpack.c.l.b16 %v864
      %v1441 = vunpack.c.l.b16 %v865
      %v1442 = vunpack.c.l.b16 %v866
      %v1443 = vunpack.c.l.b16 %v867
      %v1444 = vunpack.c.l.b16 %v868
      %v1445 = vunpack.c.l.b16 %v869
      %v1446 = vunpack.c.l.b16 %v870
      %v1447 = vunpack.c.l.b16 %v871
      %v1448 = vunpack.c.l.b16 %v872
      %v1449 = vunpack.c.l.b16 %v873
      %v1450 = vunpack.c.l.b16 %v874
      %v1451 = vunpack.c.l.b16 %v875
      %v1452 = vunpack.c.l.b16 %v876
      %v1453 = vunpack.c.l.b16 %v877
      %v1454 = vunpack.c.l.b16 %v878
      %v1455 = vunpack.c.l.b16 %v879
      %v1456 = vunpack.c.l.b16 %v880
      %v1457 = vunpack.c.l.b16 %v881
      %v1458 = vunpack.c.l.b16 %v882
      %v1459 = vunpack.c.l.b16 %v883
      %v1460 = vunpack.c.l.b16 %v884
      %v1461 = vunpack.c.l.b16 %v885
      %v1462 = vunpack.c.l.b16 %v886
      %v1463 = vunpack.c.l.b16 %v887
      %v1464 = vunpack.c.l.b16 %v888
      %v1465 = vunpack.c.l.b16 %v889
      %v1466 = vunpack.c.l.b16 %v890
      %v1467 = vunpack.c.l.b16 %v891
      %v1468 = vunpack.c.l.b16 %v892
      %v1469 = vunpack.c.l.b16 %v893
      %v1470 = vunpack.c.l.b16 %v894
      %v1471 = vunpack.c.l.b16 %v895
      %v1472 = vunpack.c.l.b16 %v896
      %v1473 = vunpack.c.l.b16 %v897
      %v1474 = vunpack.c.l.b16 %v898
      %v1475 = vunpack.c.l.b16 %v899
      %v1476 = vunpack.c.l.b16 %v900
      %v1477 = vunpack.c.l.b16 %v901
      %v1478 = vunpack.c.l.b16 %v902
      %v1479 = vunpack.c.l.b16 %v903
      %v1480 = vunpack.c.l.b16 %v904
      %v1481 = vunpack.c.l.b16 %v905
      %v1482 = vunpack.c.l.b16 %v906
      %v1483 = vunpack.c.l.b16 %v907
      %v1484 = vunpack.c.l.b16 %v908
      %v1485 = vunpack.c.l.b16 %v909
      %v1486 = vunpack.c.l.b16 %v910
      %v1487 = vunpack.c.l.b16 %v911
      %v1488 = vunpack.c.l.b16 %v912
      %v1489 = vunpack.c.l.b16 %v913
      %v1490 = vunpack.c.l.b16 %v914
      %v1491 = vunpack.c.l.b16 %v915
      %v1492 = vunpack.c.l.b16 %v916
      %v1493 = vunpack.c.l.b16 %v917
      %v1494 = vunpack.c.l.b16 %v918
      %v1495 = vunpack.c.l.b16 %v919
      %v1496 = vunpack.c.l.b16 %v920
      %v1497 = vunpack.c.l.b16 %v921
      %v1498 = vunpack.c.l.b16 %v922
      %v1499 = vunpack.c.l.b16 %v923
      %v1500 = vunpack.c.l.b16 %v924
      %v1501 = vunpack.c.l.b16 %v925
      %v1502 = vunpack.c.l.b16 %v926
      %v1503 = vunpack.c.l.b16 %v927
      %v1504 = vunpack.c.l.b16 %v928
      %v1505 = vunpack.c.l.b16 %v929
      %v1506 = vunpack.c.l.b16 %v930
      %v1507 = vunpack.c.l.b16 %v931
      %v1508 = vunpack.c.l.b16 %v932
      %v1509 = vunpack.c.l.b16 %v933
      %v1510 = vunpack.c.l.b16 %v934
      %v1511 = vunpack.c.l.b16 %v935
      %v1512 = vunpack.c.l.b16 %v936
      %v1513 = vunpack.c.l.b16 %v937
      %v1514 = vunpack.c.l.b16 %v938
      %v1515 = vunpack.c.l.b16 %v939
      %v1516 = vunpack.c.l.b16 %v940
      %v1517 = vunpack.c.l.b16 %v941
      %v1518 = vunpack.c.l.b16 %v942
      %v1519 = vunpack.c.l.b16 %v943
      %v1520 = vunpack.c.l.b16 %v944
      %v1521 = vunpack.c.l.b16 %v945
      %v1522 = vunpack.c.l.b16 %v946
      %v1523 = vunpack.c.l.b16 %v947
      %v1524 = vunpack.c.l.b16 %v948
      %v1525 = vunpack.c.l.b16 %v949
      %v1526 = vunpack.c.l.b16 %v950
      %v1527 = vunpack.c.l.b16 %v951
      %v1528 = vunpack.c.l.b16 %v952
      %v1529 = vunpack.c.l.b16 %v953
      %v1530 = vunpack.c.l.b16 %v954
      %v1531 = vunpack.c.l.b16 %v955
      %v1532 = vunpack.c.l.b16 %v956
      %v1533 = vunpack.c.l.b16 %v957
      %v1534 = vunpack.c.l.b16 %v958
      %v1535 = vunpack.c.l.b16 %v959
      %v1536 = vunpack.c.l.b16 %v960
      %v1537 = vunpack.c.l.b16 %v961
      %v1538 = vunpack.c.l.b16 %v962
      %v1539 = vunpack.c.l.b16 %v963
      %v1540 = vunpack.c.l.b16 %v964
      %v1541 = vunpack.c.l.b16 %v965
      %v1542 = vunpack.c.l.b16 %v966
      %v1543 = vunpack.c.l.b16 %v967
      %v1544 = vunpack.c.l.b16 %v968
      %v1545 = vunpack.c.l.b16 %v969
      %v1546 = vunpack.c.l.b16 %v970
      %v1547 = vunpack.c.l.b16 %v971
      %v1548 = vunpack.c.l.b16 %v972
      %v1549 = vunpack.c.l.b16 %v973
      %v1550 = vunpack.c.l.b16 %v974
      %v1551 = vunpack.c.l.b16 %v975
      %v1552 = vunpack.c.l.b16 %v976
      %v1553 = vunpack.c.l.b16 %v977
      %v1554 = vunpack.c.l.b16 %v978
      %v1555 = vunpack.c.l.b16 %v979
      %v1556 = vunpack.c.l.b16 %v980
      %v1557 = vunpack.c.l.b16 %v981
      %v1558 = vunpack.c.l.b16 %v982
      %v1559 = vunpack.c.l.b16 %v983
      %v1560 = vunpack.c.l.b16 %v984
      %v1561 = vunpack.c.l.b16 %v985
      %v1562 = vunpack.c.l.b16 %v986
      %v1563 = vunpack.c.l.b16 %v987
      %v1564 = vunpack.c.l.b16 %v988
      %v1565 = vunpack.c.l.b16 %v989
      %v1566 = vunpack.c.l.b16 %v990
      %v1567 = vunpack.c.l.b16 %v991
      %v1568 = vunpack.c.l.b16 %v992
      %v1569 = vunpack.c.l.b16 %v993
      %v1570 = vunpack.c.l.b16 %v994
      %v1571 = vunpack.c.l.b16 %v995
      %v1572 = vunpack.c.l.b16 %v996
      %v1573 = vunpack.c.l.b16 %v997
      %v1574 = vunpack.c.l.b16 %v998
      %v1575 = vunpack.c.l.b16 %v999
      %v1576 = vunpack.c.l.b16 %v1000
      %v1577 = vunpack.c.l.b16 %v1001
      %v1578 = vunpack.c.l.b16 %v1002
      %v1579 = vunpack.c.l.b16 %v1003
      %v1580 = vunpack.c.l.b16 %v1004
      %v1581 = vunpack.c.l.b16 %v1005
      %v1582 = vunpack.c.l.b16 %v1006
      %v1583 = vunpack.c.l.b16 %v1007
      %v1584 = vunpack.c.l.b16 %v1008
      %v1585 = vunpack.c.l.b16 %v1009
      %v1586 = vunpack.c.l.b16 %v1010
      %v1587 = vunpack.c.l.b16 %v1011
      %v1588 = vunpack.c.l.b16 %v1012
      %v1589 = vunpack.c.l.b16 %v1013
      %v1590 = vunpack.c.l.b16 %v1014
      %v1591 = vunpack.c.l.b16 %v1015
      %v1592 = vunpack.c.l.b16 %v1016
      %v1593 = vunpack.c.l.b16 %v1017
      %v1594 = vunpack.c.l.b16 %v1018
      %v1595 = vunpack.c.l.b16 %v1019
      %v1596 = vunpack.c.l.b16 %v1020
      %v1597 = vunpack.c.l.b16 %v1021
      %v1598 = vunpack.c.l.b16 %v1022
      %v1599 = vunpack.c.l.b16 %v1023
      %v1600 = vunpack.c.l.b16 %v1024
      %v1601 = vunpack.c.l.b16 %v1025
      %v1602 = vunpack.c.l.b16 %v1026
      %v1603 = vunpack.c.l.b16 %v1027
      %v1604 = vunpack.c.l.b16 %v1028
      %v1605 = vunpack.c.l.b16 %v1029
      %v1606 = vunpack.c.l.b16 %v1030
      %v1607 = vunpack.c.l.b16 %v1031
      %v1608 = vunpack.c.l.b16 %v1032
      %v1609 = vunpack.c.l.b16 %v1033
      %v1610 = vunpack.c.l.b16 %v1034
      %v1611 = vunpack.c.l.b16 %v1035
      %v1612 = vunpack.c.l.b16 %v1036
      %v1613 = vunpack.c.l.b16 %v1037
      %v1614 = vunpack.c.l.b16 %v1038
      %v1615 = vunpack.c.l.b16 %v1039
      %v1616 = vunpack.c.l.b16 %v1040
      %v1617 = vunpack.c.l.b16 %v1041
      %v1618 = vunpack.c.l.b16 %v1042
      %v1619 = vunpack.c.l.b16 %v1043
      %v1620 = vunpack.c.l.b16 %v1044
      %v1621 = vunpack.c.l.b16 %v1045
      %v1622 = vunpack.c.l.b16 %v1046
      %v1623 = vunpack.c.l.b16 %v1047
      %v1624 = vunpack.c.l.b16 %v1048
      %v1625 = vunpack.c.l.b16 %v1049
      %v1626 = vunpack.c.l.b16 %v1050
      %v1627 = vunpack.c.l.b16 %v1051
      %v1628 = vunpack.c.l.b16 %v1052
      %v1629 = vunpack.c.l.b16 %v1053
      %v1630 = vunpack.c.l.b16 %v1054
      %v1631 = vunpack.c.l.b16 %v1055
      %v1632 = vunpack.c.l.b16 %v1056
      %v1633 = vunpack.c.l.b16 %v1057
      %v1634 = vunpack.c.l.b16 %v1058
      %v1635 = vunpack.c.l.b16 %v1059
      %v1636 = vunpack.c.l.b16 %v1060
      %v1637 = vunpack.c.l.b16 %v1061
      %v1638 = vunpack.c.l.b16 %v1062
      %v1639 = vunpack.c.l.b16 %v1063
      %v1640 = vunpack.c.l.b16 %v1064
      %v1641 = vunpack.c.l.b16 %v1065
      %v1642 = vunpack.c.l.b16 %v1066
      %v1643 = vunpack.c.l.b16 %v1067
      %v1644 = vunpack.c.l.b16 %v1068
      %v1645 = vunpack.c.l.b16 %v1069
      %v1646 = vunpack.c.l.b16 %v1070
      %v1647 = vunpack.c.l.b16 %v1071
      %v1648 = vunpack.c.l.b16 %v1072
      %v1649 = vunpack.c.l.b16 %v1073
      %v1650 = vunpack.c.l.b16 %v1074
      %v1651 = vunpack.c.l.b16 %v1075
      %v1652 = vunpack.c.l.b16 %v1076
      %v1653 = vunpack.c.l.b16 %v1077
      %v1654 = vunpack.c.l.b16 %v1078
      %v1655 = vunpack.c.l.b16 %v1079
      %v1656 = vunpack.c.l.b16 %v1080
      %v1657 = vunpack.c.l.b16 %v1081
      %v1658 = vunpack.c.l.b16 %v1082
      %v1659 = vunpack.c.l.b16 %v1083
      %v1660 = vunpack.c.l.b16 %v1084
      %v1661 = vunpack.c.l.b16 %v1085
      %v1662 = vunpack.c.l.b16 %v1086
      %v1663 = vunpack.c.l.b16 %v1087
      %v1664 = vunpack.c.l.b16 %v1088
      %v1665 = vunpack.c.l.b16 %v1089
      %v1666 = vunpack.c.l.b16 %v1090
      %v1667 = vunpack.c.l.b16 %v1091
      %v1668 = vunpack.c.l.b16 %v1092
      %v1669 = vunpack.c.l.b16 %v1093
      %v1670 = vunpack.c.l.b16 %v1094
      %v1671 = vunpack.c.l.b16 %v1095
      %v1672 = vunpack.c.l.b16 %v1096
      %v1673 = vunpack.c.l.b16 %v1097
      %v1674 = vunpack.c.l.b16 %v1098
      %v1675 = vunpack.c.l.b16 %v1099
      %v1676 = vunpack.c.l.b16 %v1100
      %v1677 = vunpack.c.l.b16 %v1101
      %v1678 = vunpack.c.l.b16 %v1102
      %v1679 = vunpack.c.l.b16 %v1103
      %v1680 = vunpack.c.l.b16 %v1104
      %v1681 = vunpack.c.l.b16 %v1105
      %v1682 = vunpack.c.l.b16 %v1106
      %v1683 = vunpack.c.l.b16 %v1107
      %v1684 = vunpack.c.l.b16 %v1108
      %v1685 = vunpack.c.l.b16 %v1109
      %v1686 = vunpack.c.l.b16 %v1110
      %v1687 = vunpack.c.l.b16 %v1111
      %v1688 = vunpack.c.l.b16 %v1112
      %v1689 = vunpack.c.l.b16 %v1113
      %v1690 = vunpack.c.l.b16 %v1114
      %v1691 = vunpack.c.l.b16 %v1115
      %v1692 = vunpack.c.l.b16 %v1116
      %v1693 = vunpack.c.l.b16 %v1117
      %v1694 = vunpack.c.l.b16 %v1118
      %v1695 = vunpack.c.l.b16 %v1119
      %v1696 = vunpack.c.l.b16 %v1120
      %v1697 = vunpack.c.l.b16 %v1121
      %v1698 = vunpack.c.l.b16 %v1122
      %v1699 = vunpack.c.l.b16 %v1123
      %v1700 = vunpack.c.l.b16 %v1124
      %v1701 = vunpack.c.l.b16 %v1125
      %v1702 = vunpack.c.l.b16 %v1126
      %v1703 = vunpack.c.l.b16 %v1127
      %v1704 = vunpack.c.l.b16 %v1128
      %v1705 = vunpack.c.l.b16 %v1129
      %v1706 = vunpack.c.l.b16 %v1130
      %v1707 = vunpack.c.l.b16 %v1131
      %v1708 = vunpack.c.l.b16 %v1132
      %v1709 = vunpack.c.l.b16 %v1133
      %v1710 = vunpack.c.l.b16 %v1134
      %v1711 = vunpack.c.l.b16 %v1135
      %v1712 = vunpack.c.l.b16 %v1136
      %v1713 = vunpack.c.l.b16 %v1137
      %v1714 = vunpack.c.l.b16 %v1138
      %v1715 = vunpack.c.l.b16 %v1139
      %v1716 = vpack.c.b16 %v1429, %v1428
      %v1717 = vpack.c.b16 %v1431, %v1430
      %v1718 = vpack.c.b16 %v1433, %v1432
      %v1719 = vpack.c.b16 %v1435, %v1434
      %v1720 = vpack.c.b16 %v1437, %v1436
      %v1721 = vpack.c.b16 %v1439, %v1438
      %v1722 = vpack.c.b16 %v1441, %v1440
      %v1723 = vpack.c.b16 %v1443, %v1442
      %v1724 = vpack.c.b16 %v1445, %v1444
      %v1725 = vpack.c.b16 %v1447, %v1446
      %v1726 = vpack.c.b16 %v1449, %v1448
      %v1727 = vpack.c.b16 %v1451, %v1450
      %v1728 = vpack.c.b16 %v1453, %v1452
      %v1729 = vpack.c.b16 %v1455, %v1454
      %v1730 = vpack.c.b16 %v1457, %v1456
      %v1731 = vpack.c.b16 %v1459, %v1458
      %v1732 = vpack.c.b16 %v1461, %v1460
      %v1733 = vpack.c.b16 %v1463, %v1462
      %v1734 = vpack.c.b16 %v1465, %v1464
      %v1735 = vpack.c.b16 %v1467, %v1466
      %v1736 = vpack.c.b16 %v1469, %v1468
      %v1737 = vpack.c.b16 %v1471, %v1470
      %v1738 = vpack.c.b16 %v1473, %v1472
      %v1739 = vpack.c.b16 %v1475, %v1474
      %v1740 = vpack.c.b16 %v1477, %v1476
      %v1741 = vpack.c.b16 %v1479, %v1478
      %v1742 = vpack.c.b16 %v1481, %v1480
      %v1743 = vpack.c.b16 %v1483, %v1482
      %v1744 = vpack.c.b16 %v1485, %v1484
      %v1745 = vpack.c.b16 %v1487, %v1486
      %v1746 = vpack.c.b16 %v1489, %v1488
      %v1747 = vpack.c.b16 %v1491, %v1490
      %v1748 = vpack.c.b16 %v1493, %v1492
      %v1749 = vpack.c.b16 %v1495, %v1494
      %v1750 = vpack.c.b16 %v1497, %v1496
      %v1751 = vpack.c.b16 %v1499, %v1498
      %v1752 = vpack.c.b16 %v1501, %v1500
      %v1753 = vpack.c.b16 %v1503, %v1502
      %v1754 = vpack.c.b16 %v1505, %v1504
      %v1755 = vpack.c.b16 %v1507, %v1506
      %v1756 = vpack.c.b16 %v1509, %v1508
      %v1757 = vpack.c.b16 %v1511, %v1510
      %v1758 = vpack.c.b16 %v1513, %v1512
      %v1759 = vpack.c.b16 %v1515, %v1514
      %v1760 = vpack.c.b16 %v1517, %v1516
      %v1761 = vpack.c.b16 %v1519, %v1518
      %v1762 = vpack.c.b16 %v1521, %v1520
      %v1763 = vpack.c.b16 %v1523, %v1522
      %v1764 = vpack.c.b16 %v1525, %v1524
      %v1765 = vpack.c.b16 %v1527, %v1526
      %v1766 = vpack.c.b16 %v1529, %v1528
      %v1767 = vpack.c.b16 %v1531, %v1530
      %v1768 = vpack.c.b16 %v1533, %v1532
      %v1769 = vpack.c.b16 %v1535, %v1534
      %v1770 = vpack.c.b16 %v1537, %v1536
      %v1771 = vpack.c.b16 %v1539, %v1538
      %v1772 = vpack.c.b16 %v1541, %v1540
      %v1773 = vpack.c.b16 %v1543, %v1542
      %v1774 = vpack.c.b16 %v1545, %v1544
      %v1775 = vpack.c.b16 %v1547, %v1546
      %v1776 = vpack.c.b16 %v1549, %v1548
      %v1777 = vpack.c.b16 %v1551, %v1550
      %v1778 = vpack.c.b16 %v1553, %v1552
      %v1779 = vpack.c.b16 %v1555, %v1554
      %v1780 = vpack.c.b16 %v1557, %v1556
      %v1781 = vpack.c.b16 %v1559, %v1558
      %v1782 = vpack.c.b16 %v1561, %v1560
      %v1783 = vpack.c.b16 %v1563, %v1562
      %v1784 = vpack.c.b16 %v1565, %v1564
      %v1785 = vpack.c.b16 %v1567, %v1566
      %v1786 = vpack.c.b16 %v1569, %v1568
      %v1787 = vpack.c.b16 %v1571, %v1570
      %v1788 = vpack.c.b16 %v1573, %v1572
      %v1789 = vpack.c.b16 %v1575, %v1574
      %v1790 = vpack.c.b16 %v1577, %v1576
      %v1791 = vpack.c.b16 %v1579, %v1578
      %v1792 = vpack.c.b16 %v1581, %v1580
      %v1793 = vpack.c.b16 %v1583, %v1582
      %v1794 = vpack.c.b16 %v1585, %v1584
      %v1795 = vpack.c.b16 %v1587, %v1586
      %v1796 = vpack.c.b16 %v1589, %v1588
      %v1797 = vpack.c.b16 %v1591, %v1590
      %v1798 = vpack.c.b16 %v1593, %v1592
      %v1799 = vpack.c.b16 %v1595, %v1594
      %v1800 = vpack.c.b16 %v1597, %v1596
      %v1801 = vpack.c.b16 %v1599, %v1598
      %v1802 = vpack.c.b16 %v1601, %v1600
      %v1803 = vpack.c.b16 %v1603, %v1602
      %v1804 = vpack.c.b16 %v1605, %v1604
      %v1805 = vpack.c.b16 %v1607, %v1606
      %v1806 = vpack.c.b16 %v1609, %v1608
      %v1807 = vpack.c.b16 %v1611, %v1610
      %v1808 = vpack.c.b16 %v1613, %v1612
      %v1809 = vpack.c.b16 %v1615, %v1614
      %v1810 = vpack.c.b16 %v1617, %v1616
      %v1811 = vpack.c.b16 %v1619, %v1618
      %v1812 = vpack.c.b16 %v1621, %v1620
      %v1813 = vpack.c.b16 %v1623, %v1622
      %v1814 = vpack.c.b16 %v1625, %v1624
      %v1815 = vpack.c.b16 %v1627, %v1626
      %v1816 = vpack.c.b16 %v1629, %v1628
      %v1817 = vpack.c.b16 %v1631, %v1630
      %v1818 = vpack.c.b16 %v1633, %v1632
      %v1819 = vpack.c.b16 %v1635, %v1634
      %v1820 = vpack.c.b16 %v1637, %v1636
      %v1821 = vpack.c.b16 %v1639, %v1638
      %v1822 = vpack.c.b16 %v1641, %v1640
      %v1823 = vpack.c.b16 %v1643, %v1642
      %v1824 = vpack.c.b16 %v1645, %v1644
      %v1825 = vpack.c.b16 %v1647, %v1646
      %v1826 = vpack.c.b16 %v1649, %v1648
      %v1827 = vpack.c.b16 %v1651, %v1650
      %v1828 = vpack.c.b16 %v1653, %v1652
      %v1829 = vpack.c.b16 %v1655, %v1654
      %v1830 = vpack.c.b16 %v1657, %v1656
      %v1831 = vpack.c.b16 %v1659, %v1658
      %v1832 = vpack.c.b16 %v1661, %v1660
      %v1833 = vpack.c.b16 %v1663, %v1662
      %v1834 = vpack.c.b16 %v1665, %v1664
      %v1835 = vpack.c.b16 %v1667, %v1666
      %v1836 = vpack.c.b16 %v1669, %v1668
      %v1837 = vpack.c.b16 %v1671, %v1670
      %v1838 = vpack.c.b16 %v1673, %v1672
      %v1839 = vpack.c.b16 %v1675, %v1674
      %v1840 = vpack.c.b16 %v1677, %v1676
      %v1841 = vpack.c.b16 %v1679, %v1678
      %v1842 = vpack.c.b16 %v1681, %v1680
      %v1843 = vpack.c.b16 %v1683, %v1682
      %v1844 = vpack.c.b16 %v1685, %v1684
      %v1845 = vpack.c.b16 %v1687, %v1686
      %v1846 = vpack.c.b16 %v1689, %v1688
      %v1847 = vpack.c.b16 %v1691, %v1690
      %v1848 = vpack.c.b16 %v1693, %v1692
      %v1849 = vpack.c.b16 %v1695, %v1694
      %v1850 = vpack.c.b16 %v1697, %v1696
      %v1851 = vpack.c.b16 %v1699, %v1698
      %v1852 = vpack.c.b16 %v1701, %v1700
      %v1853 = vpack.c.b16 %v1703, %v1702
      %v1854 = vpack.c.b16 %v1705, %v1704
      %v1855 = vpack.c.b16 %v1707, %v1706
      %v1856 = vpack.c.b16 %v1709, %v1708
      %v1857 = vpack.c.b16 %v1711, %v1710
      %v1858 = vpack.c.b16 %v1713, %v1712
      %v1859 = vpack.c.b16 %v1715, %v1714
      %2004 = vmatpush.bf16.msra.mxu0 %v1723
      %2005 = vmatpush.bf16.msra.mxu0 %v1722
      %2006 = vmatpush.bf16.msra.mxu0 %v1721
      %2007 = vmatpush.bf16.msra.mxu0 %v1720
      %2008 = vmatpush.bf16.msra.mxu0 %v1719
      %2009 = vmatpush.bf16.msra.mxu0 %v1718
      %2010 = vmatpush.bf16.msra.mxu0 %v1717
      %2011 = vmatpush.bf16.msra.mxu0 %v1716
      %2012 = vmatmul.bf16.gmra.mxu0 %v834
      %v2013 = vpop.f32.mrf.mxu0
      %v2014 = vadd.f32 0.0, %v2013
      %v2015 = vpop.f32.mrf.mxu0
      %v2016 = vadd.f32 0.0, %v2015
      %2017 = vdwg.mxu0
      %2018 = vmatpush.bf16.msra.mxu0 %v1731
      %2019 = vmatpush.bf16.msra.mxu0 %v1730
      %2020 = vmatpush.bf16.msra.mxu0 %v1729
      %2021 = vmatpush.bf16.msra.mxu0 %v1728
      %2022 = vmatpush.bf16.msra.mxu0 %v1727
      %2023 = vmatpush.bf16.msra.mxu0 %v1726
      %2024 = vmatpush.bf16.msra.mxu0 %v1725
      %2025 = vmatpush.bf16.msra.mxu0 %v1724
      %2026 = vmatmul.bf16.gmra.mxu0 %v835
      %v2027 = vpop.f32.mrf.mxu0
      %v2028 = vadd.f32 %v2014, %v2027
      %v2029 = vpop.f32.mrf.mxu0
      %v2030 = vadd.f32 %v2016, %v2029
      %2031 = vdwg.mxu0
      %2032 = vmatpush.bf16.msra.mxu0 %v1739
      %2033 = vmatpush.bf16.msra.mxu0 %v1738
      %2034 = vmatpush.bf16.msra.mxu0 %v1737
      %2035 = vmatpush.bf16.msra.mxu0 %v1736
      %2036 = vmatpush.bf16.msra.mxu0 %v1735
      %2037 = vmatpush.bf16.msra.mxu0 %v1734
      %2038 = vmatpush.bf16.msra.mxu0 %v1733
      %2039 = vmatpush.bf16.msra.mxu0 %v1732
      %2040 = vmatmul.bf16.gmra.mxu0 %v836
      %v2041 = vpop.f32.mrf.mxu0
      %v2042 = vadd.f32 %v2028, %v2041
      %v2043 = vpop.f32.mrf.mxu0
      %v2044 = vadd.f32 %v2030, %v2043
      %2045 = vdwg.mxu0
      %2046 = vmatpush.bf16.msra.mxu0 %v1747
      %2047 = vmatpush.bf16.msra.mxu0 %v1746
      %2048 = vmatpush.bf16.msra.mxu0 %v1745
      %2049 = vmatpush.bf16.msra.mxu0 %v1744
      %2050 = vmatpush.bf16.msra.mxu0 %v1743
      %2051 = vmatpush.bf16.msra.mxu0 %v1742
      %2052 = vmatpush.bf16.msra.mxu0 %v1741
      %2053 = vmatpush.bf16.msra.mxu0 %v1740
      %2054 = vmatmul.bf16.gmra.mxu0 %v837
      %v2055 = vpop.f32.mrf.mxu0
      %v2056 = vadd.f32 %v2042, %v2055
      %v2057 = vpop.f32.mrf.mxu0
      %v2058 = vadd.f32 %v2044, %v2057
      %2059 = vdwg.mxu0
      %2060 = vmatpush.bf16.msra.mxu0 %v1755
      %2061 = vmatpush.bf16.msra.mxu0 %v1754
      %2062 = vmatpush.bf16.msra.mxu0 %v1753
      %2063 = vmatpush.bf16.msra.mxu0 %v1752
      %2064 = vmatpush.bf16.msra.mxu0 %v1751
      %2065 = vmatpush.bf16.msra.mxu0 %v1750
      %2066 = vmatpush.bf16.msra.mxu0 %v1749
      %2067 = vmatpush.bf16.msra.mxu0 %v1748
      %2068 = vmatmul.bf16.gmra.mxu0 %v838
      %v2069 = vpop.f32.mrf.mxu0
      %v2070 = vadd.f32 %v2056, %v2069
      %v2071 = vpop.f32.mrf.mxu0
      %v2072 = vadd.f32 %v2058, %v2071
      %2073 = vdwg.mxu0
      %2074 = vmatpush.bf16.msra.mxu0 %v1763
      %2075 = vmatpush.bf16.msra.mxu0 %v1762
      %2076 = vmatpush.bf16.msra.mxu0 %v1761
      %2077 = vmatpush.bf16.msra.mxu0 %v1760
      %2078 = vmatpush.bf16.msra.mxu0 %v1759
      %2079 = vmatpush.bf16.msra.mxu0 %v1758
      %2080 = vmatpush.bf16.msra.mxu0 %v1757
      %2081 = vmatpush.bf16.msra.mxu0 %v1756
      %2082 = vmatmul.bf16.gmra.mxu0 %v839
      %v2083 = vpop.f32.mrf.mxu0
      %v2084 = vadd.f32 %v2070, %v2083
      %v2085 = vpop.f32.mrf.mxu0
      %v2086 = vadd.f32 %v2072, %v2085
      %2087 = vdwg.mxu0
      %2088 = vmatpush.bf16.msra.mxu0 %v1771
      %2089 = vmatpush.bf16.msra.mxu0 %v1770
      %2090 = vmatpush.bf16.msra.mxu0 %v1769
      %2091 = vmatpush.bf16.msra.mxu0 %v1768
      %2092 = vmatpush.bf16.msra.mxu0 %v1767
      %2093 = vmatpush.bf16.msra.mxu0 %v1766
      %2094 = vmatpush.bf16.msra.mxu0 %v1765
      %2095 = vmatpush.bf16.msra.mxu0 %v1764
      %2096 = vmatmul.bf16.gmra.mxu0 %v840
      %v2097 = vpop.f32.mrf.mxu0
      %v2098 = vadd.f32 %v2084, %v2097
      %v2099 = vpop.f32.mrf.mxu0
      %v2100 = vadd.f32 %v2086, %v2099
      %2101 = vdwg.mxu0
      %2102 = vmatpush.bf16.msra.mxu0 %v1779
      %2103 = vmatpush.bf16.msra.mxu0 %v1778
      %2104 = vmatpush.bf16.msra.mxu0 %v1777
      %2105 = vmatpush.bf16.msra.mxu0 %v1776
      %2106 = vmatpush.bf16.msra.mxu0 %v1775
      %2107 = vmatpush.bf16.msra.mxu0 %v1774
      %2108 = vmatpush.bf16.msra.mxu0 %v1773
      %2109 = vmatpush.bf16.msra.mxu0 %v1772
      %2110 = vmatmul.bf16.gmra.mxu0 %v841
      %v2111 = vpop.f32.mrf.mxu0
      %v2112 = vadd.f32 %v2098, %v2111
      %v2113 = vpop.f32.mrf.mxu0
      %v2114 = vadd.f32 %v2100, %v2113
      %2115 = vdwg.mxu0
      %2116 = vmatpush.bf16.msra.mxu0 %v1787
      %2117 = vmatpush.bf16.msra.mxu0 %v1786
      %2118 = vmatpush.bf16.msra.mxu0 %v1785
      %2119 = vmatpush.bf16.msra.mxu0 %v1784
      %2120 = vmatpush.bf16.msra.mxu0 %v1783
      %2121 = vmatpush.bf16.msra.mxu0 %v1782
      %2122 = vmatpush.bf16.msra.mxu0 %v1781
      %2123 = vmatpush.bf16.msra.mxu0 %v1780
      %2124 = vmatmul.bf16.gmra.mxu0 %v842
      %v2125 = vpop.f32.mrf.mxu0
      %v2126 = vadd.f32 %v2112, %v2125
      %v2127 = vpop.f32.mrf.mxu0
      %v2128 = vadd.f32 %v2114, %v2127
      %2129 = vdwg.mxu0
      %2130 = vmatpush.bf16.msra.mxu0 %v1795
      %2131 = vmatpush.bf16.msra.mxu0 %v1794
      %2132 = vmatpush.bf16.msra.mxu0 %v1793
      %2133 = vmatpush.bf16.msra.mxu0 %v1792
      %2134 = vmatpush.bf16.msra.mxu0 %v1791
      %2135 = vmatpush.bf16.msra.mxu0 %v1790
      %2136 = vmatpush.bf16.msra.mxu0 %v1789
      %2137 = vmatpush.bf16.msra.mxu0 %v1788
      %2138 = vmatmul.bf16.gmra.mxu0 %v843
      %v2139 = vpop.f32.mrf.mxu0
      %v2140 = vadd.f32 %v2126, %v2139
      %v2141 = vpop.f32.mrf.mxu0
      %v2142 = vadd.f32 %v2128, %v2141
      %2143 = vdwg.mxu0
      %2144 = vmatpush.bf16.msra.mxu0 %v1803
      %2145 = vmatpush.bf16.msra.mxu0 %v1802
      %2146 = vmatpush.bf16.msra.mxu0 %v1801
      %2147 = vmatpush.bf16.msra.mxu0 %v1800
      %2148 = vmatpush.bf16.msra.mxu0 %v1799
      %2149 = vmatpush.bf16.msra.mxu0 %v1798
      %2150 = vmatpush.bf16.msra.mxu0 %v1797
      %2151 = vmatpush.bf16.msra.mxu0 %v1796
      %2152 = vmatmul.bf16.gmra.mxu0 %v844
      %v2153 = vpop.f32.mrf.mxu0
      %v2154 = vadd.f32 %v2140, %v2153
      %v2155 = vpop.f32.mrf.mxu0
      %v2156 = vadd.f32 %v2142, %v2155
      %2157 = vdwg.mxu0
      %2158 = vmatpush.bf16.msra.mxu0 %v1811
      %2159 = vmatpush.bf16.msra.mxu0 %v1810
      %2160 = vmatpush.bf16.msra.mxu0 %v1809
      %2161 = vmatpush.bf16.msra.mxu0 %v1808
      %2162 = vmatpush.bf16.msra.mxu0 %v1807
      %2163 = vmatpush.bf16.msra.mxu0 %v1806
      %2164 = vmatpush.bf16.msra.mxu0 %v1805
      %2165 = vmatpush.bf16.msra.mxu0 %v1804
      %2166 = vmatmul.bf16.gmra.mxu0 %v845
      %v2167 = vpop.f32.mrf.mxu0
      %v2168 = vadd.f32 %v2154, %v2167
      %v2169 = vpop.f32.mrf.mxu0
      %v2170 = vadd.f32 %v2156, %v2169
      %2171 = vdwg.mxu0
      %2172 = vmatpush.bf16.msra.mxu0 %v1819
      %2173 = vmatpush.bf16.msra.mxu0 %v1818
      %2174 = vmatpush.bf16.msra.mxu0 %v1817
      %2175 = vmatpush.bf16.msra.mxu0 %v1816
      %2176 = vmatpush.bf16.msra.mxu0 %v1815
      %2177 = vmatpush.bf16.msra.mxu0 %v1814
      %2178 = vmatpush.bf16.msra.mxu0 %v1813
      %2179 = vmatpush.bf16.msra.mxu0 %v1812
      %2180 = vmatmul.bf16.gmra.mxu0 %v846
      %v2181 = vpop.f32.mrf.mxu0
      %v2182 = vadd.f32 %v2168, %v2181
      %v2183 = vpop.f32.mrf.mxu0
      %v2184 = vadd.f32 %v2170, %v2183
      %2185 = vdwg.mxu0
      %2186 = vmatpush.bf16.msra.mxu0 %v1827
      %2187 = vmatpush.bf16.msra.mxu0 %v1826
      %2188 = vmatpush.bf16.msra.mxu0 %v1825
      %2189 = vmatpush.bf16.msra.mxu0 %v1824
      %2190 = vmatpush.bf16.msra.mxu0 %v1823
      %2191 = vmatpush.bf16.msra.mxu0 %v1822
      %2192 = vmatpush.bf16.msra.mxu0 %v1821
      %2193 = vmatpush.bf16.msra.mxu0 %v1820
      %2194 = vmatmul.bf16.gmra.mxu0 %v847
      %v2195 = vpop.f32.mrf.mxu0
      %v2196 = vadd.f32 %v2182, %v2195
      %v2197 = vpop.f32.mrf.mxu0
      %v2198 = vadd.f32 %v2184, %v2197
      %2199 = vdwg.mxu0
      %2200 = vmatpush.bf16.msra.mxu0 %v1835
      %2201 = vmatpush.bf16.msra.mxu0 %v1834
      %2202 = vmatpush.bf16.msra.mxu0 %v1833
      %2203 = vmatpush.bf16.msra.mxu0 %v1832
      %2204 = vmatpush.bf16.msra.mxu0 %v1831
      %2205 = vmatpush.bf16.msra.mxu0 %v1830
      %2206 = vmatpush.bf16.msra.mxu0 %v1829
      %2207 = vmatpush.bf16.msra.mxu0 %v1828
      %2208 = vmatmul.bf16.gmra.mxu0 %v848
      %v2209 = vpop.f32.mrf.mxu0
      %v2210 = vadd.f32 %v2196, %v2209
      %v2211 = vpop.f32.mrf.mxu0
      %v2212 = vadd.f32 %v2198, %v2211
      %2213 = vdwg.mxu0
      %2214 = vmatpush.bf16.msra.mxu0 %v1843
      %2215 = vmatpush.bf16.msra.mxu0 %v1842
      %2216 = vmatpush.bf16.msra.mxu0 %v1841
      %2217 = vmatpush.bf16.msra.mxu0 %v1840
      %2218 = vmatpush.bf16.msra.mxu0 %v1839
      %2219 = vmatpush.bf16.msra.mxu0 %v1838
      %2220 = vmatpush.bf16.msra.mxu0 %v1837
      %2221 = vmatpush.bf16.msra.mxu0 %v1836
      %2222 = vmatmul.bf16.gmra.mxu0 %v849
      %v2223 = vpop.f32.mrf.mxu0
      %v2224 = vadd.f32 %v2210, %v2223
      %v2225 = vpop.f32.mrf.mxu0
      %v2226 = vadd.f32 %v2212, %v2225
      %2227 = vdwg.mxu0
      %2228 = vmatpush.bf16.msra.mxu0 %v1851
      %2229 = vmatpush.bf16.msra.mxu0 %v1850
      %2230 = vmatpush.bf16.msra.mxu0 %v1849
      %2231 = vmatpush.bf16.msra.mxu0 %v1848
      %2232 = vmatpush.bf16.msra.mxu0 %v1847
      %2233 = vmatpush.bf16.msra.mxu0 %v1846
      %2234 = vmatpush.bf16.msra.mxu0 %v1845
      %2235 = vmatpush.bf16.msra.mxu0 %v1844
      %2236 = vmatmul.bf16.gmra.mxu0 %v850
      %v2237 = vpop.f32.mrf.mxu0
      %v2238 = vadd.f32 %v2224, %v2237
      %v2239 = vpop.f32.mrf.mxu0
      %v2240 = vadd.f32 %v2226, %v2239
      %2241 = vdwg.mxu0
      %2242 = vmatpush.bf16.msra.mxu0 %v1859
      %2243 = vmatpush.bf16.msra.mxu0 %v1858
      %2244 = vmatpush.bf16.msra.mxu0 %v1857
      %2245 = vmatpush.bf16.msra.mxu0 %v1856
      %2246 = vmatpush.bf16.msra.mxu0 %v1855
      %2247 = vmatpush.bf16.msra.mxu0 %v1854
      %2248 = vmatpush.bf16.msra.mxu0 %v1853
      %2249 = vmatpush.bf16.msra.mxu0 %v1852
      %2250 = vmatmul.bf16.gmra.mxu0 %v851
      %v2251 = vpop.f32.mrf.mxu0
      %v2252 = vadd.f32 %v2238, %v2251
      %v2253 = vpop.f32.mrf.mxu0
      %v2254 = vadd.f32 %v2240, %v2253
      %2255 = vdwg.mxu0
      %2256 = vst [vmem:[%s197] sm:$0xff] %v2252
      %2257 = vst [vmem:[%s197 + $0x8] sm:$0xff] %v2254
      %p2258 = scmp.lt.s32.totalorder %s15, 1
      %s2259 = scalar_select %p2258, %s15, 1
      %s2260 = smul.addr %s2259, 2
      %s2261 = smul.addr %s2260, 8
      %s2262 = scalar_lea.vmem %s4, %s2261
      // Predicated region
      $region37: #{_lambda_.2} parent=35 // pred_check
        %p2263 = pneg %p122
      $region38: #{_lambda_.2} parent=35 // pred_check_branch
        %2265 = sbr.rel (%p2263) target = $region40
      $region39: #{_lambda_.2} parent=35 // pred_region
        _
      $region40: #{_lambda_.2} parent=35 // pred_fallthru
        _
    $region36: #{_lambda_.2} parent=5 // pred_fallthru
      _
    %p2266 = scmp.le.s32.totalorder 2, %s10
    // Predicated region
    $region41: #{_lambda_.2} parent=5 // pred_check
      %p2267 = pneg %p2266
    $region42: #{_lambda_.2} parent=5 // pred_check_branch
      %2269 = sbr.rel (%p2267) target = $region44
    $region43: #{_lambda_.2} parent=5 // pred_region
      %s2270 = ssub.s32 %s10, 2
      // Predicated region
      $region45: #{_lambda_.2} parent=43 // pred_check
        %p2271 = pneg %p128
      $region46: #{_lambda_.2} parent=43 // pred_check_branch
        %2273 = sbr.rel (%p2271) target = $region48
      $region47: #{_lambda_.2} parent=43 // pred_region
        %p2274 = scmp.lt.s32.totalorder %s16, 1
        %s2275 = scalar_select %p2274, %s16, 1
        %s2276 = smul.addr %s2275, 2
        %s2277 = smul.addr %s2276, 8
        %s2278 = scalar_lea.vmem %s4, %s2277
      $region48: #{_lambda_.2} parent=43 // pred_fallthru
        _
    $region44: #{_lambda_.2} parent=5 // pred_fallthru
      _
  $region6: #{_lambda_.2} parent=0 // loop_footer
    %s14 = sadd.s32 1, %s10
  $region7: #{_lambda_.2} parent=0 // loop_footer_branch
    %9 = sbr.rel target = $region3
  $region8: #{_lambda_.2} parent=0 // loop_exit
    _

// kernel: _lambda_.3
$region0: #{_lambda_.3}
  #allocation0 [shape = 'u32[]', space=smem, size = 0x4, offset = 0x4, fixed_abs, tag = 'smem constant byte address 0x4 - core index']
  #allocation1 [shape = 'u32[72,128]{1,0:T(1,128)}', space=vmem, size = 0x9000, scoped, tag = 'internal scratch']
  %s0 = inlined_call_operand.vmem [shape: bf16[52,225], index: 0, kind: input, shape index: {}]
  %s1 = inlined_call_operand.vmem [shape: bf16[225,128], index: 1, kind: input, shape index: {}]
  %s2 = inlined_call_operand.vmem [shape: f32[1,128], index: 2, kind: input, shape index: {}]
  %s3 = inlined_call_operand.vmem [shape: bf16[128,128], index: 3, kind: input, shape index: {}]
  %s4 = inlined_call_operand.vmem [shape: f32[1,128], index: 4, kind: input, shape index: {}]
  %s5 = inlined_call_operand.vmem [shape: f32[2,52], index: 5, kind: input, shape index: {}]
  %s6 = inlined_call_operand.vmem [shape: f32[1,128,128], index: 6, kind: input, shape index: {}]
  %s7 = inlined_call_operand.vmem [shape: bf16[98,256], index: 7, kind: input, shape index: {}]
  %s8 = inlined_call_operand.vmem [shape: bf16[256,32], index: 8, kind: input, shape index: {}]
  %s9 = inlined_call_operand.vmem [shape: f32[1,32], index: 9, kind: input, shape index: {}]
  %s10 = inlined_call_operand.vmem [shape: bf16[8,98], index: 10, kind: input, shape index: {}]
  %s11 = inlined_call_operand.vmem [shape: f32[4,32,128], index: 11, kind: input, shape index: {}]
  %s12 = inlined_call_operand.vmem [shape: f32[1,128], index: 12, kind: input, shape index: {}]
  %s13 = inlined_call_operand.vmem [shape: f32[128,128], index: 13, kind: input, shape index: {}]
  %s14 = inlined_call_operand.vmem [shape: f32[1,128], index: 14, kind: input, shape index: {}]
  %s15 = inlined_call_operand.hbm [shape: f32[2,128], index: 15, kind: output, shape index: {}]
  %s16 = sld [smem:[#allocation0]]
  $region70: #{_lambda_.3} parent=0
    _
  %s18 = ssub.s32 1, %s16
  %s19 = scalar_select 0, %s18, %s16
  $region1: #{_lambda_.3} parent=0
    #allocation2 [shape = 'u8[1024]{0}', space=vmem, size = 0x400, scoped, tag = 'output window, operand 0, single buffered']
    #allocation3 [shape = 's32[1]{0}', space=sflag, size = 0x4, scoped, tag = 'scoped memory for _lambda_.3']
    %20 = vsyncpa [#allocation3], 0
    // Predicated region
    $region2: #{_lambda_.3} parent=1 // pred_check
      _
    $region3: #{_lambda_.3} parent=1 // pred_check_branch
      %22 = sbr.rel (0) target = $region5
    $region4: #{_lambda_.3} parent=1 // pred_region
      _
    $region5: #{_lambda_.3} parent=1 // pred_fallthru
      _
    // Predicated region
    $region6: #{_lambda_.3} parent=1 // pred_check
      _
    $region7: #{_lambda_.3} parent=1 // pred_check_branch
      %24 = sbr.rel (0) target = $region9
    $region8: #{_lambda_.3} parent=1 // pred_region
      _
    $region9: #{_lambda_.3} parent=1 // pred_fallthru
      _
    // Predicated region
    $region10: #{_lambda_.3} parent=1 // pred_check
      _
    $region11: #{_lambda_.3} parent=1 // pred_check_branch
      %26 = sbr.rel (0) target = $region13
    $region12: #{_lambda_.3} parent=1 // pred_region
      _
    $region13: #{_lambda_.3} parent=1 // pred_fallthru
      _
    // Predicated region
    $region14: #{_lambda_.3} parent=1 // pred_check
      _
    $region15: #{_lambda_.3} parent=1 // pred_check_branch
      %28 = sbr.rel (0) target = $region17
    $region16: #{_lambda_.3} parent=1 // pred_region
      _
    $region17: #{_lambda_.3} parent=1 // pred_fallthru
      _
    // Predicated region
    $region18: #{_lambda_.3} parent=1 // pred_check
      _
    $region19: #{_lambda_.3} parent=1 // pred_check_branch
      %30 = sbr.rel (0) target = $region21
    $region20: #{_lambda_.3} parent=1 // pred_region
      _
    $region21: #{_lambda_.3} parent=1 // pred_fallthru
      _
    // Predicated region
    $region22: #{_lambda_.3} parent=1 // pred_check
      _
    $region23: #{_lambda_.3} parent=1 // pred_check_branch
      %32 = sbr.rel (0) target = $region25
    $region24: #{_lambda_.3} parent=1 // pred_region
      _
    $region25: #{_lambda_.3} parent=1 // pred_fallthru
      _
    // Predicated region
    $region26: #{_lambda_.3} parent=1 // pred_check
      _
    $region27: #{_lambda_.3} parent=1 // pred_check_branch
      %34 = sbr.rel (0) target = $region29
    $region28: #{_lambda_.3} parent=1 // pred_region
      _
    $region29: #{_lambda_.3} parent=1 // pred_fallthru
      _
    // Predicated region
    $region30: #{_lambda_.3} parent=1 // pred_check
      _
    $region31: #{_lambda_.3} parent=1 // pred_check_branch
      %36 = sbr.rel (0) target = $region33
    $region32: #{_lambda_.3} parent=1 // pred_region
      _
    $region33: #{_lambda_.3} parent=1 // pred_fallthru
      _
    // Predicated region
    $region34: #{_lambda_.3} parent=1 // pred_check
      _
    $region35: #{_lambda_.3} parent=1 // pred_check_branch
      %38 = sbr.rel (0) target = $region37
    $region36: #{_lambda_.3} parent=1 // pred_region
      _
    $region37: #{_lambda_.3} parent=1 // pred_fallthru
      _
    // Predicated region
    $region38: #{_lambda_.3} parent=1 // pred_check
      _
    $region39: #{_lambda_.3} parent=1 // pred_check_branch
      %40 = sbr.rel (0) target = $region41
    $region40: #{_lambda_.3} parent=1 // pred_region
      _
    $region41: #{_lambda_.3} parent=1 // pred_fallthru
      _
    // Predicated region
    $region42: #{_lambda_.3} parent=1 // pred_check
      _
    $region43: #{_lambda_.3} parent=1 // pred_check_branch
      %42 = sbr.rel (0) target = $region45
    $region44: #{_lambda_.3} parent=1 // pred_region
      _
    $region45: #{_lambda_.3} parent=1 // pred_fallthru
      _
    // Predicated region
    $region46: #{_lambda_.3} parent=1 // pred_check
      _
    $region47: #{_lambda_.3} parent=1 // pred_check_branch
      %44 = sbr.rel (0) target = $region49
    $region48: #{_lambda_.3} parent=1 // pred_region
      _
    $region49: #{_lambda_.3} parent=1 // pred_fallthru
      _
    // Predicated region
    $region50: #{_lambda_.3} parent=1 // pred_check
      _
    $region51: #{_lambda_.3} parent=1 // pred_check_branch
      %46 = sbr.rel (0) target = $region53
    $region52: #{_lambda_.3} parent=1 // pred_region
      _
    $region53: #{_lambda_.3} parent=1 // pred_fallthru
      _
    // Predicated region
    $region54: #{_lambda_.3} parent=1 // pred_check
      _
    $region55: #{_lambda_.3} parent=1 // pred_check_branch
      %48 = sbr.rel (0) target = $region57
    $region56: #{_lambda_.3} parent=1 // pred_region
      _
    $region57: #{_lambda_.3} parent=1 // pred_fallthru
      _
    // Predicated region
    $region58: #{_lambda_.3} parent=1 // pred_check
      _
    $region59: #{_lambda_.3} parent=1 // pred_check_branch
      %50 = sbr.rel (0) target = $region61
    $region60: #{_lambda_.3} parent=1 // pred_region
      _
    $region61: #{_lambda_.3} parent=1 // pred_fallthru
      _
    %v52 = vld [vmem:[%s0] sm:$0xff]
    %v53 = vld [vmem:[%s0 + $0x8] sm:$0xff]
    %v54 = vld [vmem:[%s0 + $0x10] sm:$0xff]
    %v55 = vld [vmem:[%s0 + $0x18] sm:$0xff]
    %v56 = vld [vmem:[%s0 + $0x20] sm:$0xff]
    %v57 = vld [vmem:[%s0 + $0x28] sm:$0xff]
    %v58 = vld [vmem:[%s0 + $0x30] sm:$0x33]
    %v59 = vld [vmem:[%s1] sm:$0xf]
    %v60 = vld [vmem:[%s1 + $0x4] sm:$0xf]
    %v61 = vld [vmem:[%s1 + $0x8] sm:$0xf]
    %v62 = vld [vmem:[%s1 + $0xc] sm:$0xf]
    %v63 = vld [vmem:[%s1 + $0x10] sm:$0xf]
    %v64 = vld [vmem:[%s1 + $0x14] sm:$0xf]
    %v65 = vld [vmem:[%s1 + $0x18] sm:$0xf]
    %v66 = vld [vmem:[%s1 + $0x1c] sm:$0xf]
    %v67 = vld [vmem:[%s1 + $0x20] sm:$0xf]
    %v68 = vld [vmem:[%s1 + $0x24] sm:$0xf]
    %v69 = vld [vmem:[%s1 + $0x28] sm:$0xf]
    %v70 = vld [vmem:[%s1 + $0x2c] sm:$0xf]
    %v71 = vld [vmem:[%s1 + $0x30] sm:$0xf]
    %v72 = vld [vmem:[%s1 + $0x34] sm:$0xf]
    %v73 = vld [vmem:[%s1 + $0x38] sm:$0xf]
    %v74 = vld [vmem:[%s1 + $0x3c] sm:$0xf]
    %v75 = vld [vmem:[%s1 + $0x40] sm:$0xf]
    %v76 = vld [vmem:[%s1 + $0x44] sm:$0xf]
    %v77 = vld [vmem:[%s1 + $0x48] sm:$0xf]
    %v78 = vld [vmem:[%s1 + $0x4c] sm:$0xf]
    %v79 = vld [vmem:[%s1 + $0x50] sm:$0xf]
    %v80 = vld [vmem:[%s1 + $0x54] sm:$0xf]
    %v81 = vld [vmem:[%s1 + $0x58] sm:$0xf]
    %v82 = vld [vmem:[%s1 + $0x5c] sm:$0xf]
    %v83 = vld [vmem:[%s1 + $0x60] sm:$0xf]
    %v84 = vld [vmem:[%s1 + $0x64] sm:$0xf]
    %v85 = vld [vmem:[%s1 + $0x68] sm:$0xf]
    %v86 = vld [vmem:[%s1 + $0x6c] sm:$0xf]
    %v87 = vld [vmem:[%s1 + $0x70] sm:$0x1]
    %v88 = vld [vmem:[%s2] sm:$0x1]
    %v90 = vperm.slane %v88, 0
    %v99 = vunpack.c.l.b16 %v52
    %v100 = vunpack.c.h.b16 %v52
    %v101 = vunpack.c.l.b16 %v53
    %v102 = vunpack.c.h.b16 %v53
    %v103 = vunpack.c.l.b16 %v54
    %v104 = vunpack.c.h.b16 %v54
    %v105 = vunpack.c.l.b16 %v55
    %v106 = vunpack.c.h.b16 %v55
    %v107 = vunpack.c.l.b16 %v56
    %v108 = vunpack.c.h.b16 %v56
    %v109 = vunpack.c.l.b16 %v57
    %v110 = vunpack.c.h.b16 %v57
    %v111 = vunpack.c.l.b16 %v58
    %v112 = vunpack.c.h.b16 %v58
    %v113 = vpack.c.b16 %v101, %v99
    %v114 = vpack.c.b16 %v102, %v100
    %v115 = vpack.c.b16 %v105, %v103
    %v116 = vpack.c.b16 %v106, %v104
    %v117 = vpack.c.b16 %v109, %v107
    %v118 = vpack.c.b16 %v110, %v108
    %v119 = vpack.c.b16 %v111, %v111
    %v120 = vpack.c.b16 %v112, %v112
    %v154 = vunpack.c.l.b16 %v59
    %v155 = vunpack.c.l.b16 %v60
    %v156 = vunpack.c.l.b16 %v61
    %v157 = vunpack.c.l.b16 %v62
    %v158 = vunpack.c.l.b16 %v63
    %v159 = vunpack.c.l.b16 %v64
    %v160 = vunpack.c.l.b16 %v65
    %v161 = vunpack.c.l.b16 %v66
    %v162 = vunpack.c.l.b16 %v67
    %v163 = vunpack.c.l.b16 %v68
    %v164 = vunpack.c.l.b16 %v69
    %v165 = vunpack.c.l.b16 %v70
    %v166 = vunpack.c.l.b16 %v71
    %v167 = vunpack.c.l.b16 %v72
    %v168 = vunpack.c.l.b16 %v73
    %v169 = vunpack.c.l.b16 %v74
    %v170 = vunpack.c.l.b16 %v75
    %v171 = vunpack.c.l.b16 %v76
    %v172 = vunpack.c.l.b16 %v77
    %v173 = vunpack.c.l.b16 %v78
    %v174 = vunpack.c.l.b16 %v79
    %v175 = vunpack.c.l.b16 %v80
    %v176 = vunpack.c.l.b16 %v81
    %v177 = vunpack.c.l.b16 %v82
    %v178 = vunpack.c.l.b16 %v83
    %v179 = vunpack.c.l.b16 %v84
    %v180 = vunpack.c.l.b16 %v85
    %v181 = vunpack.c.l.b16 %v86
    %v182 = vunpack.c.l.b16 %v87
    %v183 = vpack.c.b16 %v155, %v154
    %v184 = vpack.c.b16 %v157, %v156
    %v185 = vpack.c.b16 %v159, %v158
    %v186 = vpack.c.b16 %v161, %v160
    %v187 = vpack.c.b16 %v163, %v162
    %v188 = vpack.c.b16 %v165, %v164
    %v189 = vpack.c.b16 %v167, %v166
    %v190 = vpack.c.b16 %v169, %v168
    %v191 = vpack.c.b16 %v171, %v170
    %v192 = vpack.c.b16 %v173, %v172
    %v193 = vpack.c.b16 %v175, %v174
    %v194 = vpack.c.b16 %v177, %v176
    %v195 = vpack.c.b16 %v179, %v178
    %v196 = vpack.c.b16 %v181, %v180
    %v197 = vpack.c.b16 %v182, %v182
    %vm212 = vcmask 793600
    %v214 = vsel %vm212, %v114, 0
    %v217 = vsel %vm212, %v116, 0
    %v220 = vsel %vm212, %v118, 0
    %v223 = vsel %vm212, %v120, 0
    %vm225 = vcmask 1040384
    %v226 = vsel 0, 4294967295, 65535
    %v227 = vsel %vm225, %v226, 0
    %v229 = vand.u32 %v197, %v227
    %231 = vmatpush.bf16.msra.mxu0 %v190
    %232 = vmatpush.bf16.msra.mxu0 %v189
    %233 = vmatpush.bf16.msra.mxu0 %v188
    %234 = vmatpush.bf16.msra.mxu0 %v187
    %235 = vmatpush.bf16.msra.mxu0 %v186
    %236 = vmatpush.bf16.msra.mxu0 %v185
    %237 = vmatpush.bf16.msra.mxu0 %v184
    %238 = vmatpush.bf16.msra.mxu0 %v183
    %239 = vmatmul.bf16.gmra.mxu0 %v113
    %v240 = vpop.f32.mrf.mxu0
    %v241 = vadd.f32 %v90, %v240
    %v242 = vpop.f32.mrf.mxu0
    %v243 = vadd.f32 %v90, %v242
    %244 = vmatmul.bf16.gmra.mxu0 %v115
    %v245 = vpop.f32.mrf.mxu0
    %v246 = vadd.f32 %v90, %v245
    %v247 = vpop.f32.mrf.mxu0
    %v248 = vadd.f32 %v90, %v247
    %249 = vmatmul.bf16.gmra.mxu0 %v117
    %v250 = vpop.f32.mrf.mxu0
    %v251 = vadd.f32 %v90, %v250
    %v252 = vpop.f32.mrf.mxu0
    %v253 = vadd.f32 %v90, %v252
    %254 = vmatmul.bf16.gmra.mxu0 %v119
    %v255 = vpop.f32.mrf.mxu0
    %v256 = vadd.f32 %v90, %v255
    %v257 = vpop.f32.mrf.mxu0
    %258 = vdwg.mxu0
    %259 = vmatpush.bf16.msra.mxu0 0
    %260 = vmatpush.bf16.msra.mxu0 %v229
    %261 = vmatpush.bf16.msra.mxu0 %v196
    %262 = vmatpush.bf16.msra.mxu0 %v195
    %263 = vmatpush.bf16.msra.mxu0 %v194
    %264 = vmatpush.bf16.msra.mxu0 %v193
    %265 = vmatpush.bf16.msra.mxu0 %v192
    %266 = vmatpush.bf16.msra.mxu0 %v191
    %267 = vmatmul.bf16.gmra.mxu0 %v214
    %v268 = vpop.f32.mrf.mxu0
    %v269 = vadd.f32 %v241, %v268
    %v270 = vpop.f32.mrf.mxu0
    %v271 = vadd.f32 %v243, %v270
    %272 = vmatmul.bf16.gmra.mxu0 %v217
    %v273 = vpop.f32.mrf.mxu0
    %v274 = vadd.f32 %v246, %v273
    %v275 = vpop.f32.mrf.mxu0
    %v276 = vadd.f32 %v248, %v275
    %277 = vmatmul.bf16.gmra.mxu0 %v220
    %v278 = vpop.f32.mrf.mxu0
    %v279 = vadd.f32 %v251, %v278
    %v280 = vpop.f32.mrf.mxu0
    %v281 = vadd.f32 %v253, %v280
    %282 = vmatmul.bf16.gmra.mxu0 %v223
    %v283 = vpop.f32.mrf.mxu0
    %v284 = vadd.f32 %v256, %v283
    %v285 = vpop.f32.mrf.mxu0
    %286 = vdwg.mxu0
    %v287 = vmul.f32 %v269, 0.5
    %v288 = vmul.f32 %v271, 0.5
    %v289 = vmul.f32 %v274, 0.5
    %v290 = vmul.f32 %v276, 0.5
    %v291 = vmul.f32 %v279, 0.5
    %v292 = vmul.f32 %v281, 0.5
    %v293 = vmul.f32 %v284, 0.5
    %v294 = vmul.f32 %v269, 0.044715
    %v295 = vmul.f32 %v271, 0.044715
    %v296 = vmul.f32 %v274, 0.044715
    %v297 = vmul.f32 %v276, 0.044715
    %v298 = vmul.f32 %v279, 0.044715
    %v299 = vmul.f32 %v281, 0.044715
    %v300 = vmul.f32 %v284, 0.044715
    %v301 = vmul.f32 %v294, %v269
    %v302 = vmul.f32 %v295, %v271
    %v303 = vmul.f32 %v296, %v274
    %v304 = vmul.f32 %v297, %v276
    %v305 = vmul.f32 %v298, %v279
    %v306 = vmul.f32 %v299, %v281
    %v307 = vmul.f32 %v300, %v284
    %v308 = vmul.f32 %v301, %v269
    %v309 = vmul.f32 %v302, %v271
    %v310 = vmul.f32 %v303, %v274
    %v311 = vmul.f32 %v304, %v276
    %v312 = vmul.f32 %v305, %v279
    %v313 = vmul.f32 %v306, %v281
    %v314 = vmul.f32 %v307, %v284
    %v315 = vadd.f32 %v269, %v308
    %v316 = vadd.f32 %v271, %v309
    %v317 = vadd.f32 %v274, %v310
    %v318 = vadd.f32 %v276, %v311
    %v319 = vadd.f32 %v279, %v312
    %v320 = vadd.f32 %v281, %v313
    %v321 = vadd.f32 %v284, %v314
    %v322 = vmul.f32 %v315, 0.7978846
    %v323 = vmul.f32 %v316, 0.7978846
    %v324 = vmul.f32 %v317, 0.7978846
    %v325 = vmul.f32 %v318, 0.7978846
    %v326 = vmul.f32 %v319, 0.7978846
    %v327 = vmul.f32 %v320, 0.7978846
    %v328 = vmul.f32 %v321, 0.7978846
    %v329 = vtanh.pop %v322
    %v330 = vtanh.pop %v323
    %v331 = vtanh.pop %v324
    %v332 = vtanh.pop %v325
    %v333 = vtanh.pop %v326
    %v334 = vtanh.pop %v327
    %v335 = vtanh.pop %v328
    %v336 = vadd.f32 %v329, 1.0
    %v337 = vadd.f32 %v330, 1.0
    %v338 = vadd.f32 %v331, 1.0
    %v339 = vadd.f32 %v332, 1.0
    %v340 = vadd.f32 %v333, 1.0
    %v341 = vadd.f32 %v334, 1.0
    %v342 = vadd.f32 %v335, 1.0
    %v343 = vmul.f32 %v287, %v336
    %v344 = vmul.f32 %v288, %v337
    %v345 = vmul.f32 %v289, %v338
    %v346 = vmul.f32 %v290, %v339
    %v347 = vmul.f32 %v291, %v340
    %v348 = vmul.f32 %v292, %v341
    %v349 = vmul.f32 %v293, %v342
    %v350 = vpack.c.bf16 %v344, %v343
    %v351 = vpack.c.bf16 %v346, %v345
    %v352 = vpack.c.bf16 %v348, %v347
    %v353 = vpack.c.bf16 %v349, %v349
    %v354 = vld [vmem:[%s3] sm:$0xf]
    %v355 = vld [vmem:[%s3 + $0x4] sm:$0xf]
    %v356 = vld [vmem:[%s3 + $0x8] sm:$0xf]
    %v357 = vld [vmem:[%s3 + $0xc] sm:$0xf]
    %v358 = vld [vmem:[%s3 + $0x10] sm:$0xf]
    %v359 = vld [vmem:[%s3 + $0x14] sm:$0xf]
    %v360 = vld [vmem:[%s3 + $0x18] sm:$0xf]
    %v361 = vld [vmem:[%s3 + $0x1c] sm:$0xf]
    %v362 = vld [vmem:[%s3 + $0x20] sm:$0xf]
    %v363 = vld [vmem:[%s3 + $0x24] sm:$0xf]
    %v364 = vld [vmem:[%s3 + $0x28] sm:$0xf]
    %v365 = vld [vmem:[%s3 + $0x2c] sm:$0xf]
    %v366 = vld [vmem:[%s3 + $0x30] sm:$0xf]
    %v367 = vld [vmem:[%s3 + $0x34] sm:$0xf]
    %v368 = vld [vmem:[%s3 + $0x38] sm:$0xf]
    %v369 = vld [vmem:[%s3 + $0x3c] sm:$0xf]
    %v370 = vld [vmem:[%s4] sm:$0x1]
    %v372 = vperm.slane %v370, 0
    %v390 = vunpack.c.l.b16 %v354
    %v391 = vunpack.c.l.b16 %v355
    %v392 = vunpack.c.l.b16 %v356
    %v393 = vunpack.c.l.b16 %v357
    %v394 = vunpack.c.l.b16 %v358
    %v395 = vunpack.c.l.b16 %v359
    %v396 = vunpack.c.l.b16 %v360
    %v397 = vunpack.c.l.b16 %v361
    %v398 = vunpack.c.l.b16 %v362
    %v399 = vunpack.c.l.b16 %v363
    %v400 = vunpack.c.l.b16 %v364
    %v401 = vunpack.c.l.b16 %v365
    %v402 = vunpack.c.l.b16 %v366
    %v403 = vunpack.c.l.b16 %v367
    %v404 = vunpack.c.l.b16 %v368
    %v405 = vunpack.c.l.b16 %v369
    %v406 = vpack.c.b16 %v391, %v390
    %v407 = vpack.c.b16 %v393, %v392
    %v408 = vpack.c.b16 %v395, %v394
    %v409 = vpack.c.b16 %v397, %v396
    %v410 = vpack.c.b16 %v399, %v398
    %v411 = vpack.c.b16 %v401, %v400
    %v412 = vpack.c.b16 %v403, %v402
    %v413 = vpack.c.b16 %v405, %v404
    %422 = vmatpush.bf16.msra.mxu0 %v413
    %423 = vmatpush.bf16.msra.mxu0 %v412
    %424 = vmatpush.bf16.msra.mxu0 %v411
    %425 = vmatpush.bf16.msra.mxu0 %v410
    %426 = vmatpush.bf16.msra.mxu0 %v409
    %427 = vmatpush.bf16.msra.mxu0 %v408
    %428 = vmatpush.bf16.msra.mxu0 %v407
    %429 = vmatpush.bf16.msra.mxu0 %v406
    %430 = vmatmul.bf16.gmra.mxu0 %v350
    %v431 = vpop.f32.mrf.mxu0
    %v432 = vadd.f32 %v372, %v431
    %v433 = vpop.f32.mrf.mxu0
    %v434 = vadd.f32 %v372, %v433
    %435 = vmatmul.bf16.gmra.mxu0 %v351
    %v436 = vpop.f32.mrf.mxu0
    %v437 = vadd.f32 %v372, %v436
    %v438 = vpop.f32.mrf.mxu0
    %v439 = vadd.f32 %v372, %v438
    %440 = vmatmul.bf16.gmra.mxu0 %v352
    %v441 = vpop.f32.mrf.mxu0
    %v442 = vadd.f32 %v372, %v441
    %v443 = vpop.f32.mrf.mxu0
    %v444 = vadd.f32 %v372, %v443
    %445 = vmatmul.bf16.gmra.mxu0 %v353
    %v446 = vpop.f32.mrf.mxu0
    %v447 = vadd.f32 %v372, %v446
    %v448 = vpop.f32.mrf.mxu0
    %449 = vdwg.mxu0
    %v450 = vmul.f32 %v432, 0.5
    %v451 = vmul.f32 %v434, 0.5
    %v452 = vmul.f32 %v437, 0.5
    %v453 = vmul.f32 %v439, 0.5
    %v454 = vmul.f32 %v442, 0.5
    %v455 = vmul.f32 %v444, 0.5
    %v456 = vmul.f32 %v447, 0.5
    %v457 = vmul.f32 %v432, 0.044715
    %v458 = vmul.f32 %v434, 0.044715
    %v459 = vmul.f32 %v437, 0.044715
    %v460 = vmul.f32 %v439, 0.044715
    %v461 = vmul.f32 %v442, 0.044715
    %v462 = vmul.f32 %v444, 0.044715
    %v463 = vmul.f32 %v447, 0.044715
    %v464 = vmul.f32 %v457, %v432
    %v465 = vmul.f32 %v458, %v434
    %v466 = vmul.f32 %v459, %v437
    %v467 = vmul.f32 %v460, %v439
    %v468 = vmul.f32 %v461, %v442
    %v469 = vmul.f32 %v462, %v444
    %v470 = vmul.f32 %v463, %v447
    %v471 = vmul.f32 %v464, %v432
    %v472 = vmul.f32 %v465, %v434
    %v473 = vmul.f32 %v466, %v437
    %v474 = vmul.f32 %v467, %v439
    %v475 = vmul.f32 %v468, %v442
    %v476 = vmul.f32 %v469, %v444
    %v477 = vmul.f32 %v470, %v447
    %v478 = vadd.f32 %v432, %v471
    %v479 = vadd.f32 %v434, %v472
    %v480 = vadd.f32 %v437, %v473
    %v481 = vadd.f32 %v439, %v474
    %v482 = vadd.f32 %v442, %v475
    %v483 = vadd.f32 %v444, %v476
    %v484 = vadd.f32 %v447, %v477
    %v485 = vmul.f32 %v478, 0.7978846
    %v486 = vmul.f32 %v479, 0.7978846
    %v487 = vmul.f32 %v480, 0.7978846
    %v488 = vmul.f32 %v481, 0.7978846
    %v489 = vmul.f32 %v482, 0.7978846
    %v490 = vmul.f32 %v483, 0.7978846
    %v491 = vmul.f32 %v484, 0.7978846
    %v492 = vtanh.pop %v485
    %v493 = vtanh.pop %v486
    %v494 = vtanh.pop %v487
    %v495 = vtanh.pop %v488
    %v496 = vtanh.pop %v489
    %v497 = vtanh.pop %v490
    %v498 = vtanh.pop %v491
    %v499 = vadd.f32 %v492, 1.0
    %v500 = vadd.f32 %v493, 1.0
    %v501 = vadd.f32 %v494, 1.0
    %v502 = vadd.f32 %v495, 1.0
    %v503 = vadd.f32 %v496, 1.0
    %v504 = vadd.f32 %v497, 1.0
    %v505 = vadd.f32 %v498, 1.0
    %v506 = vmul.f32 %v450, %v499
    %v507 = vmul.f32 %v451, %v500
    %v508 = vmul.f32 %v452, %v501
    %v509 = vmul.f32 %v453, %v502
    %v510 = vmul.f32 %v454, %v503
    %v511 = vmul.f32 %v455, %v504
    %v512 = vmul.f32 %v456, %v505
    %v513 = vld [vmem:[%s5] sm:$0x3]
    %vm514 = vcmask 424960
    %v516 = vsel %vm514, %v513, 0
    %vm518 = vcmask 1043456
    %v520 = vsel %vm518, %v512, 0
    %522 = vmatpush.msra.mxu0 0.0
    %523 = vmatpush.msra.mxu0 0.0
    %524 = vmatpush.msra.mxu0 0.0
    %525 = vmatpush.msra.mxu0 0.0
    %526 = vmatpush.msra.mxu0 0.0
    %527 = vmatpush.msra.mxu0 0.0
    %528 = vmatpush.msra.mxu0 0.0
    %529 = vmatpush.msra.mxu0 0.0
    %530 = vmatpush.msra.mxu0 0.0
    %531 = vmatpush.msra.mxu0 %v520
    %532 = vmatpush.msra.mxu0 %v511
    %533 = vmatpush.msra.mxu0 %v510
    %534 = vmatpush.msra.mxu0 %v509
    %535 = vmatpush.msra.mxu0 %v508
    %536 = vmatpush.msra.mxu0 %v507
    %537 = vmatpush.msra.mxu0 %v506
    %538 = vmatmul.f32.gmra.mxu0 %v516
    %v539 = vpop.f32.mrf.mxu0
    %v540 = vadd.f32 0.0, %v539
    %541 = vdwg.mxu0
    %v542 = vld [vmem:[%s14] sm:$0x1]
    %v544 = vperm.slane %v542, 0
    %v546 = vadd.f32 %v544, 0.0
    %v547 = vld [vmem:[%s6] sm:$0xff]
    %v548 = vld [vmem:[%s6 + $0x8] sm:$0xff]
    %v549 = vld [vmem:[%s6 + $0x10] sm:$0xff]
    %v550 = vld [vmem:[%s6 + $0x18] sm:$0xff]
    %v551 = vld [vmem:[%s6 + $0x20] sm:$0xff]
    %v552 = vld [vmem:[%s6 + $0x28] sm:$0xff]
    %v553 = vld [vmem:[%s6 + $0x30] sm:$0xff]
    %v554 = vld [vmem:[%s6 + $0x38] sm:$0xff]
    %v555 = vld [vmem:[%s6 + $0x40] sm:$0xff]
    %v556 = vld [vmem:[%s6 + $0x48] sm:$0xff]
    %v557 = vld [vmem:[%s6 + $0x50] sm:$0xff]
    %v558 = vld [vmem:[%s6 + $0x58] sm:$0xff]
    %v559 = vld [vmem:[%s6 + $0x60] sm:$0xff]
    %v560 = vld [vmem:[%s6 + $0x68] sm:$0xff]
    %v561 = vld [vmem:[%s6 + $0x70] sm:$0xff]
    %v562 = vld [vmem:[%s6 + $0x78] sm:$0xff]
    %563 = vmatpush.msra.mxu0 %v562
    %564 = vmatpush.msra.mxu0 %v561
    %565 = vmatpush.msra.mxu0 %v560
    %566 = vmatpush.msra.mxu0 %v559
    %567 = vmatpush.msra.mxu0 %v558
    %568 = vmatpush.msra.mxu0 %v557
    %569 = vmatpush.msra.mxu0 %v556
    %570 = vmatpush.msra.mxu0 %v555
    %571 = vmatpush.msra.mxu0 %v554
    %572 = vmatpush.msra.mxu0 %v553
    %573 = vmatpush.msra.mxu0 %v552
    %574 = vmatpush.msra.mxu0 %v551
    %575 = vmatpush.msra.mxu0 %v550
    %576 = vmatpush.msra.mxu0 %v549
    %577 = vmatpush.msra.mxu0 %v548
    %578 = vmatpush.msra.mxu0 %v547
    %579 = vmatmul.f32.gmra.mxu0 %v540
    %v580 = vpop.f32.mrf.mxu0
    %v581 = vadd.f32 0.0, %v580
    %582 = vdwg.mxu0
    %v583 = vadd.f32 %v546, %v581
    %v584 = vld [vmem:[%s7] sm:$0xff]
    %v585 = vld [vmem:[%s7 + $0x8] sm:$0xff]
    %v586 = vld [vmem:[%s7 + $0x10] sm:$0xff]
    %v587 = vld [vmem:[%s7 + $0x18] sm:$0xff]
    %v588 = vld [vmem:[%s7 + $0x20] sm:$0xff]
    %v589 = vld [vmem:[%s7 + $0x28] sm:$0xff]
    %v590 = vld [vmem:[%s7 + $0x30] sm:$0xff]
    %v591 = vld [vmem:[%s7 + $0x38] sm:$0xff]
    %v592 = vld [vmem:[%s7 + $0x40] sm:$0xff]
    %v593 = vld [vmem:[%s7 + $0x48] sm:$0xff]
    %v594 = vld [vmem:[%s7 + $0x50] sm:$0xff]
    %v595 = vld [vmem:[%s7 + $0x58] sm:$0xff]
    %v596 = vld [vmem:[%s7 + $0x60] sm:$0x11]
    %v597 = vld [vmem:[%s8] sm:$0xf]
    %v598 = vld [vmem:[%s8 + $0x4] sm:$0xf]
    %v599 = vld [vmem:[%s8 + $0x8] sm:$0xf]
    %v600 = vld [vmem:[%s8 + $0xc] sm:$0xf]
    %v601 = vld [vmem:[%s8 + $0x10] sm:$0xf]
    %v602 = vld [vmem:[%s8 + $0x14] sm:$0xf]
    %v603 = vld [vmem:[%s8 + $0x18] sm:$0xf]
    %v604 = vld [vmem:[%s8 + $0x1c] sm:$0xf]
    %v605 = vld [vmem:[%s8 + $0x20] sm:$0xf]
    %v606 = vld [vmem:[%s8 + $0x24] sm:$0xf]
    %v607 = vld [vmem:[%s8 + $0x28] sm:$0xf]
    %v608 = vld [vmem:[%s8 + $0x2c] sm:$0xf]
    %v609 = vld [vmem:[%s8 + $0x30] sm:$0xf]
    %v610 = vld [vmem:[%s8 + $0x34] sm:$0xf]
    %v611 = vld [vmem:[%s8 + $0x38] sm:$0xf]
    %v612 = vld [vmem:[%s8 + $0x3c] sm:$0xf]
    %v613 = vld [vmem:[%s8 + $0x40] sm:$0xf]
    %v614 = vld [vmem:[%s8 + $0x44] sm:$0xf]
    %v615 = vld [vmem:[%s8 + $0x48] sm:$0xf]
    %v616 = vld [vmem:[%s8 + $0x4c] sm:$0xf]
    %v617 = vld [vmem:[%s8 + $0x50] sm:$0xf]
    %v618 = vld [vmem:[%s8 + $0x54] sm:$0xf]
    %v619 = vld [vmem:[%s8 + $0x58] sm:$0xf]
    %v620 = vld [vmem:[%s8 + $0x5c] sm:$0xf]
    %v621 = vld [vmem:[%s8 + $0x60] sm:$0xf]
    %v622 = vld [vmem:[%s8 + $0x64] sm:$0xf]
    %v623 = vld [vmem:[%s8 + $0x68] sm:$0xf]
    %v624 = vld [vmem:[%s8 + $0x6c] sm:$0xf]
    %v625 = vld [vmem:[%s8 + $0x70] sm:$0xf]
    %v626 = vld [vmem:[%s8 + $0x74] sm:$0xf]
    %v627 = vld [vmem:[%s8 + $0x78] sm:$0xf]
    %v628 = vld [vmem:[%s8 + $0x7c] sm:$0xf]
    %v629 = vld [vmem:[%s9] sm:$0x1]
    %v631 = vperm.slane %v629, 0
    %v646 = vunpack.c.l.b16 %v584
    %v647 = vunpack.c.h.b16 %v584
    %v648 = vunpack.c.l.b16 %v585
    %v649 = vunpack.c.h.b16 %v585
    %v650 = vunpack.c.l.b16 %v586
    %v651 = vunpack.c.h.b16 %v586
    %v652 = vunpack.c.l.b16 %v587
    %v653 = vunpack.c.h.b16 %v587
    %v654 = vunpack.c.l.b16 %v588
    %v655 = vunpack.c.h.b16 %v588
    %v656 = vunpack.c.l.b16 %v589
    %v657 = vunpack.c.h.b16 %v589
    %v658 = vunpack.c.l.b16 %v590
    %v659 = vunpack.c.h.b16 %v590
    %v660 = vunpack.c.l.b16 %v591
    %v661 = vunpack.c.h.b16 %v591
    %v662 = vunpack.c.l.b16 %v592
    %v663 = vunpack.c.h.b16 %v592
    %v664 = vunpack.c.l.b16 %v593
    %v665 = vunpack.c.h.b16 %v593
    %v666 = vunpack.c.l.b16 %v594
    %v667 = vunpack.c.h.b16 %v594
    %v668 = vunpack.c.l.b16 %v595
    %v669 = vunpack.c.h.b16 %v595
    %v670 = vunpack.c.l.b16 %v596
    %v671 = vunpack.c.h.b16 %v596
    %v672 = vpack.c.b16 %v648, %v646
    %v673 = vpack.c.b16 %v649, %v647
    %v674 = vpack.c.b16 %v652, %v650
    %v675 = vpack.c.b16 %v653, %v651
    %v676 = vpack.c.b16 %v656, %v654
    %v677 = vpack.c.b16 %v657, %v655
    %v678 = vpack.c.b16 %v660, %v658
    %v679 = vpack.c.b16 %v661, %v659
    %v680 = vpack.c.b16 %v664, %v662
    %v681 = vpack.c.b16 %v665, %v663
    %v682 = vpack.c.b16 %v668, %v666
    %v683 = vpack.c.b16 %v669, %v667
    %v684 = vpack.c.b16 %v670, %v670
    %v685 = vpack.c.b16 %v671, %v671
    %v732 = vunpack.c.l.b16 %v597
    %v733 = vunpack.c.l.b16 %v598
    %v734 = vunpack.c.l.b16 %v599
    %v735 = vunpack.c.l.b16 %v600
    %v736 = vunpack.c.l.b16 %v601
    %v737 = vunpack.c.l.b16 %v602
    %v738 = vunpack.c.l.b16 %v603
    %v739 = vunpack.c.l.b16 %v604
    %v740 = vunpack.c.l.b16 %v605
    %v741 = vunpack.c.l.b16 %v606
    %v742 = vunpack.c.l.b16 %v607
    %v743 = vunpack.c.l.b16 %v608
    %v744 = vunpack.c.l.b16 %v609
    %v745 = vunpack.c.l.b16 %v610
    %v746 = vunpack.c.l.b16 %v611
    %v747 = vunpack.c.l.b16 %v612
    %v748 = vunpack.c.l.b16 %v613
    %v749 = vunpack.c.l.b16 %v614
    %v750 = vunpack.c.l.b16 %v615
    %v751 = vunpack.c.l.b16 %v616
    %v752 = vunpack.c.l.b16 %v617
    %v753 = vunpack.c.l.b16 %v618
    %v754 = vunpack.c.l.b16 %v619
    %v755 = vunpack.c.l.b16 %v620
    %v756 = vunpack.c.l.b16 %v621
    %v757 = vunpack.c.l.b16 %v622
    %v758 = vunpack.c.l.b16 %v623
    %v759 = vunpack.c.l.b16 %v624
    %v760 = vunpack.c.l.b16 %v625
    %v761 = vunpack.c.l.b16 %v626
    %v762 = vunpack.c.l.b16 %v627
    %v763 = vunpack.c.l.b16 %v628
    %v764 = vpack.c.b16 %v733, %v732
    %v765 = vpack.c.b16 %v735, %v734
    %v766 = vpack.c.b16 %v737, %v736
    %v767 = vpack.c.b16 %v739, %v738
    %v768 = vpack.c.b16 %v741, %v740
    %v769 = vpack.c.b16 %v743, %v742
    %v770 = vpack.c.b16 %v745, %v744
    %v771 = vpack.c.b16 %v747, %v746
    %v772 = vpack.c.b16 %v749, %v748
    %v773 = vpack.c.b16 %v751, %v750
    %v774 = vpack.c.b16 %v753, %v752
    %v775 = vpack.c.b16 %v755, %v754
    %v776 = vpack.c.b16 %v757, %v756
    %v777 = vpack.c.b16 %v759, %v758
    %v778 = vpack.c.b16 %v761, %v760
    %v779 = vpack.c.b16 %v763, %v762
    %796 = vmatpush.bf16.msra.mxu0 %v771
    %797 = vmatpush.bf16.msra.mxu0 %v770
    %798 = vmatpush.bf16.msra.mxu0 %v769
    %799 = vmatpush.bf16.msra.mxu0 %v768
    %800 = vmatpush.bf16.msra.mxu0 %v767
    %801 = vmatpush.bf16.msra.mxu0 %v766
    %802 = vmatpush.bf16.msra.mxu0 %v765
    %803 = vmatpush.bf16.msra.mxu0 %v764
    %804 = vmatmul.bf16.gmra.mxu0 %v672
    %v805 = vpop.f32.mrf.mxu0
    %v806 = vadd.f32 %v631, %v805
    %v807 = vpop.f32.mrf.mxu0
    %v808 = vadd.f32 %v631, %v807
    %809 = vmatmul.bf16.gmra.mxu0 %v674
    %v810 = vpop.f32.mrf.mxu0
    %v811 = vadd.f32 %v631, %v810
    %v812 = vpop.f32.mrf.mxu0
    %v813 = vadd.f32 %v631, %v812
    %814 = vmatmul.bf16.gmra.mxu0 %v676
    %v815 = vpop.f32.mrf.mxu0
    %v816 = vadd.f32 %v631, %v815
    %v817 = vpop.f32.mrf.mxu0
    %v818 = vadd.f32 %v631, %v817
    %819 = vmatmul.bf16.gmra.mxu0 %v678
    %v820 = vpop.f32.mrf.mxu0
    %v821 = vadd.f32 %v631, %v820
    %v822 = vpop.f32.mrf.mxu0
    %v823 = vadd.f32 %v631, %v822
    %824 = vmatmul.bf16.gmra.mxu0 %v680
    %v825 = vpop.f32.mrf.mxu0
    %v826 = vadd.f32 %v631, %v825
    %v827 = vpop.f32.mrf.mxu0
    %v828 = vadd.f32 %v631, %v827
    %829 = vmatmul.bf16.gmra.mxu0 %v682
    %v830 = vpop.f32.mrf.mxu0
    %v831 = vadd.f32 %v631, %v830
    %v832 = vpop.f32.mrf.mxu0
    %v833 = vadd.f32 %v631, %v832
    %834 = vmatmul.bf16.gmra.mxu0 %v684
    %v835 = vpop.f32.mrf.mxu0
    %v836 = vadd.f32 %v631, %v835
    %v837 = vpop.f32.mrf.mxu0
    %838 = vdwg.mxu0
    %839 = vmatpush.bf16.msra.mxu0 %v779
    %840 = vmatpush.bf16.msra.mxu0 %v778
    %841 = vmatpush.bf16.msra.mxu0 %v777
    %842 = vmatpush.bf16.msra.mxu0 %v776
    %843 = vmatpush.bf16.msra.mxu0 %v775
    %844 = vmatpush.bf16.msra.mxu0 %v774
    %845 = vmatpush.bf16.msra.mxu0 %v773
    %846 = vmatpush.bf16.msra.mxu0 %v772
    %847 = vmatmul.bf16.gmra.mxu0 %v673
    %v848 = vpop.f32.mrf.mxu0
    %v849 = vadd.f32 %v806, %v848
    %v850 = vpop.f32.mrf.mxu0
    %v851 = vadd.f32 %v808, %v850
    %852 = vmatmul.bf16.gmra.mxu0 %v675
    %v853 = vpop.f32.mrf.mxu0
    %v854 = vadd.f32 %v811, %v853
    %v855 = vpop.f32.mrf.mxu0
    %v856 = vadd.f32 %v813, %v855
    %857 = vmatmul.bf16.gmra.mxu0 %v677
    %v858 = vpop.f32.mrf.mxu0
    %v859 = vadd.f32 %v816, %v858
    %v860 = vpop.f32.mrf.mxu0
    %v861 = vadd.f32 %v818, %v860
    %862 = vmatmul.bf16.gmra.mxu0 %v679
    %v863 = vpop.f32.mrf.mxu0
    %v864 = vadd.f32 %v821, %v863
    %v865 = vpop.f32.mrf.mxu0
    %v866 = vadd.f32 %v823, %v865
    %867 = vmatmul.bf16.gmra.mxu0 %v681
    %v868 = vpop.f32.mrf.mxu0
    %v869 = vadd.f32 %v826, %v868
    %v870 = vpop.f32.mrf.mxu0
    %v871 = vadd.f32 %v828, %v870
    %872 = vmatmul.bf16.gmra.mxu0 %v683
    %v873 = vpop.f32.mrf.mxu0
    %v874 = vadd.f32 %v831, %v873
    %v875 = vpop.f32.mrf.mxu0
    %v876 = vadd.f32 %v833, %v875
    %877 = vmatmul.bf16.gmra.mxu0 %v685
    %v878 = vpop.f32.mrf.mxu0
    %v879 = vadd.f32 %v836, %v878
    %v880 = vpop.f32.mrf.mxu0
    %881 = vdwg.mxu0
    %v882 = vmax.f32 %v849, 0.0
    %v883 = vmax.f32 %v851, 0.0
    %v884 = vmax.f32 %v854, 0.0
    %v885 = vmax.f32 %v856, 0.0
    %v886 = vmax.f32 %v859, 0.0
    %v887 = vmax.f32 %v861, 0.0
    %v888 = vmax.f32 %v864, 0.0
    %v889 = vmax.f32 %v866, 0.0
    %v890 = vmax.f32 %v869, 0.0
    %v891 = vmax.f32 %v871, 0.0
    %v892 = vmax.f32 %v874, 0.0
    %v893 = vmax.f32 %v876, 0.0
    %v894 = vmax.f32 %v879, 0.0
    %v895 = vpack.c.bf16 %v883, %v882
    %v896 = vpack.c.bf16 %v885, %v884
    %v897 = vpack.c.bf16 %v887, %v886
    %v898 = vpack.c.bf16 %v889, %v888
    %v899 = vpack.c.bf16 %v891, %v890
    %v900 = vpack.c.bf16 %v893, %v892
    %v901 = vpack.c.bf16 %v894, %v894
    %v902 = vld [vmem:[%s10] sm:$0xf]
    %vm903 = vcmask 801792
    %v905 = vsel %vm903, %v902, 0
    %v908 = vsel %vm225, %v901, 0
    %910 = vmatpush.bf16.msra.mxu0 0
    %911 = vmatpush.bf16.msra.mxu0 %v908
    %912 = vmatpush.bf16.msra.mxu0 %v900
    %913 = vmatpush.bf16.msra.mxu0 %v899
    %914 = vmatpush.bf16.msra.mxu0 %v898
    %915 = vmatpush.bf16.msra.mxu0 %v897
    %916 = vmatpush.bf16.msra.mxu0 %v896
    %917 = vmatpush.bf16.msra.mxu0 %v895
    %918 = vmatmul.bf16.gmra.mxu0 %v905
    %v919 = vpop.f32.mrf.mxu0
    %v920 = vadd.f32 0.0, %v919
    %v921 = vpop.f32.mrf.mxu0
    %922 = vdwg.mxu0
    %v923 = vld [vmem:[%s12] sm:$0x1]
    %v925 = vperm.slane %v923, 0
    %v927 = vadd.f32 %v925, 0.0
    %v928 = vld [vmem:[%s11] sm:$0xff]
    %v929 = vld [vmem:[%s11 + $0x8] sm:$0xff]
    %v930 = vld [vmem:[%s11 + $0x10] sm:$0xff]
    %v931 = vld [vmem:[%s11 + $0x18] sm:$0xff]
    %vm932 = vcmask 261120
    %v934 = vsel %vm932, %v920, 0
    %936 = vmatpush.msra.mxu0 0.0
    %937 = vmatpush.msra.mxu0 0.0
    %938 = vmatpush.msra.mxu0 0.0
    %939 = vmatpush.msra.mxu0 0.0
    %940 = vmatpush.msra.mxu0 0.0
    %941 = vmatpush.msra.mxu0 0.0
    %942 = vmatpush.msra.mxu0 0.0
    %943 = vmatpush.msra.mxu0 0.0
    %944 = vmatpush.msra.mxu0 0.0
    %945 = vmatpush.msra.mxu0 0.0
    %946 = vmatpush.msra.mxu0 0.0
    %947 = vmatpush.msra.mxu0 0.0
    %948 = vmatpush.msra.mxu0 %v931
    %949 = vmatpush.msra.mxu0 %v930
    %950 = vmatpush.msra.mxu0 %v929
    %951 = vmatpush.msra.mxu0 %v928
    %952 = vmatmul.f32.gmra.mxu0 %v934
    %v953 = vpop.f32.mrf.mxu0
    %v954 = vadd.f32 0.0, %v953
    %955 = vdwg.mxu0
    %v956 = vadd.f32 %v927, %v954
    %s957 = scalar_lea.vmem %s11, 32
    %v958 = vld [vmem:[%s957] sm:$0xff]
    %v959 = vld [vmem:[%s957 + $0x8] sm:$0xff]
    %v960 = vld [vmem:[%s957 + $0x10] sm:$0xff]
    %v961 = vld [vmem:[%s957 + $0x18] sm:$0xff]
    %v962 = vrot.slane %v920, 2
    %v963 = vsel %vm932, %v962, 0
    %965 = vmatpush.msra.mxu0 0.0
    %966 = vmatpush.msra.mxu0 0.0
    %967 = vmatpush.msra.mxu0 0.0
    %968 = vmatpush.msra.mxu0 0.0
    %969 = vmatpush.msra.mxu0 0.0
    %970 = vmatpush.msra.mxu0 0.0
    %971 = vmatpush.msra.mxu0 0.0
    %972 = vmatpush.msra.mxu0 0.0
    %973 = vmatpush.msra.mxu0 0.0
    %974 = vmatpush.msra.mxu0 0.0
    %975 = vmatpush.msra.mxu0 0.0
    %976 = vmatpush.msra.mxu0 0.0
    %977 = vmatpush.msra.mxu0 %v961
    %978 = vmatpush.msra.mxu0 %v960
    %979 = vmatpush.msra.mxu0 %v959
    %980 = vmatpush.msra.mxu0 %v958
    %981 = vmatmul.f32.gmra.mxu0 %v963
    %v982 = vpop.f32.mrf.mxu0
    %v983 = vadd.f32 0.0, %v982
    %984 = vdwg.mxu0
    %v985 = vadd.f32 %v956, %v983
    %s986 = scalar_lea.vmem %s11, 64
    %v987 = vld [vmem:[%s986] sm:$0xff]
    %v988 = vld [vmem:[%s986 + $0x8] sm:$0xff]
    %v989 = vld [vmem:[%s986 + $0x10] sm:$0xff]
    %v990 = vld [vmem:[%s986 + $0x18] sm:$0xff]
    %v991 = vrot.slane %v920, 4
    %v992 = vsel %vm932, %v991, 0
    %994 = vmatpush.msra.mxu0 0.0
    %995 = vmatpush.msra.mxu0 0.0
    %996 = vmatpush.msra.mxu0 0.0
    %997 = vmatpush.msra.mxu0 0.0
    %998 = vmatpush.msra.mxu0 0.0
    %999 = vmatpush.msra.mxu0 0.0
    %1000 = vmatpush.msra.mxu0 0.0
    %1001 = vmatpush.msra.mxu0 0.0
    %1002 = vmatpush.msra.mxu0 0.0
    %1003 = vmatpush.msra.mxu0 0.0
    %1004 = vmatpush.msra.mxu0 0.0
    %1005 = vmatpush.msra.mxu0 0.0
    %1006 = vmatpush.msra.mxu0 %v990
    %1007 = vmatpush.msra.mxu0 %v989
    %1008 = vmatpush.msra.mxu0 %v988
    %1009 = vmatpush.msra.mxu0 %v987
    %1010 = vmatmul.f32.gmra.mxu0 %v992
    %v1011 = vpop.f32.mrf.mxu0
    %v1012 = vadd.f32 0.0, %v1011
    %1013 = vdwg.mxu0
    %v1014 = vadd.f32 %v985, %v1012
    %s1015 = scalar_lea.vmem %s11, 96
    %v1016 = vld [vmem:[%s1015] sm:$0xff]
    %v1017 = vld [vmem:[%s1015 + $0x8] sm:$0xff]
    %v1018 = vld [vmem:[%s1015 + $0x10] sm:$0xff]
    %v1019 = vld [vmem:[%s1015 + $0x18] sm:$0xff]
    %v1020 = vrot.slane %v920, 6
    %v1021 = vsel %vm932, %v1020, 0
    %1023 = vmatpush.msra.mxu0 0.0
    %1024 = vmatpush.msra.mxu0 0.0
    %1025 = vmatpush.msra.mxu0 0.0
    %1026 = vmatpush.msra.mxu0 0.0
    %1027 = vmatpush.msra.mxu0 0.0
    %1028 = vmatpush.msra.mxu0 0.0
    %1029 = vmatpush.msra.mxu0 0.0
    %1030 = vmatpush.msra.mxu0 0.0
    %1031 = vmatpush.msra.mxu0 0.0
    %1032 = vmatpush.msra.mxu0 0.0
    %1033 = vmatpush.msra.mxu0 0.0
    %1034 = vmatpush.msra.mxu0 0.0
    %1035 = vmatpush.msra.mxu0 %v1019
    %1036 = vmatpush.msra.mxu0 %v1018
    %1037 = vmatpush.msra.mxu0 %v1017
    %1038 = vmatpush.msra.mxu0 %v1016
    %1039 = vmatmul.f32.gmra.mxu0 %v1021
    %v1040 = vpop.f32.mrf.mxu0
    %v1041 = vadd.f32 0.0, %v1040
    %1042 = vdwg.mxu0
    %v1043 = vadd.f32 %v1014, %v1041
    %v1044 = vmax.f32 %v1043, 0.0
    %v1045 = vld [vmem:[%s13] sm:$0xff]
    %v1046 = vld [vmem:[%s13 + $0x8] sm:$0xff]
    %v1047 = vld [vmem:[%s13 + $0x10] sm:$0xff]
    %v1048 = vld [vmem:[%s13 + $0x18] sm:$0xff]
    %v1049 = vld [vmem:[%s13 + $0x20] sm:$0xff]
    %v1050 = vld [vmem:[%s13 + $0x28] sm:$0xff]
    %v1051 = vld [vmem:[%s13 + $0x30] sm:$0xff]
    %v1052 = vld [vmem:[%s13 + $0x38] sm:$0xff]
    %v1053 = vld [vmem:[%s13 + $0x40] sm:$0xff]
    %v1054 = vld [vmem:[%s13 + $0x48] sm:$0xff]
    %v1055 = vld [vmem:[%s13 + $0x50] sm:$0xff]
    %v1056 = vld [vmem:[%s13 + $0x58] sm:$0xff]
    %v1057 = vld [vmem:[%s13 + $0x60] sm:$0xff]
    %v1058 = vld [vmem:[%s13 + $0x68] sm:$0xff]
    %v1059 = vld [vmem:[%s13 + $0x70] sm:$0xff]
    %v1060 = vld [vmem:[%s13 + $0x78] sm:$0xff]
    %1061 = vmatpush.msra.mxu0 %v1060
    %1062 = vmatpush.msra.mxu0 %v1059
    %1063 = vmatpush.msra.mxu0 %v1058
    %1064 = vmatpush.msra.mxu0 %v1057
    %1065 = vmatpush.msra.mxu0 %v1056
    %1066 = vmatpush.msra.mxu0 %v1055
    %1067 = vmatpush.msra.mxu0 %v1054
    %1068 = vmatpush.msra.mxu0 %v1053
    %1069 = vmatpush.msra.mxu0 %v1052
    %1070 = vmatpush.msra.mxu0 %v1051
    %1071 = vmatpush.msra.mxu0 %v1050
    %1072 = vmatpush.msra.mxu0 %v1049
    %1073 = vmatpush.msra.mxu0 %v1048
    %1074 = vmatpush.msra.mxu0 %v1047
    %1075 = vmatpush.msra.mxu0 %v1046
    %1076 = vmatpush.msra.mxu0 %v1045
    %1077 = vmatmul.f32.gmra.mxu0 %v1044
    %v1078 = vpop.f32.mrf.mxu0
    %v1079 = vadd.f32 0.0, %v1078
    %1080 = vdwg.mxu0
    %v1081 = vadd.f32 %v583, %v1079
    %1082 = vst [vmem:[#allocation2] sm:$0x3] %v1081
    // Predicated region
    $region62: #{_lambda_.3} parent=1 // pred_check
      _
    $region63: #{_lambda_.3} parent=1 // pred_check_branch
      %1084 = sbr.rel (0) target = $region65
    $region64: #{_lambda_.3} parent=1 // pred_region
      %1086 = vsyncadd [#allocation3], 0
      %s1088 = sshll.u32 [#allocation2], 4
      %s1089 = int_to_ptr.vmem [resolvable:$true] %s1088
      %s1090 = sshll.u32 %s15, 4
      %s1091 = int_to_ptr.hbm [resolvable:$true] %s1090
      %1093 = dma.vmem_to_hbm [thread:$0]  %s1089, 32, %s1091, [#allocation3]
    $region65: #{_lambda_.3} parent=1 // pred_fallthru
      _
    // Predicated region
    $region66: #{_lambda_.3} parent=1 // pred_check
      _
    $region67: #{_lambda_.3} parent=1 // pred_check_branch
      %1095 = sbr.rel (0) target = $region69
    $region68: #{_lambda_.3} parent=1 // pred_region
      %1097 = dma.done [#allocation3], 32
    $region69: #{_lambda_.3} parent=1 // pred_fallthru
      _
    %1098 = vsyncpa [#allocation3], 1

</llo_original>
